<compile_context>
chip_gen: v7x
topology: tpu7x:2x2x1
jax: 0.10.0
libtpu: 0.0.40
codegen_flags: <defaults>
</compile_context>

<pallas_src>
import jax
import jax.numpy as jnp
from jax import lax
from jax.experimental import pallas as pl
from jax.experimental.pallas import tpu as pltpu
import numpy as np

# ----------------------------- model dims ----------------------------------
T, B = 8, 2            # seq_len, batch
X_DIM = 16             # x_dim
Z_DIM = 8              # z_dim
H = 32                 # dim_RNN_g_x == dim_RNN_g_z == dim_RNN_h == dense_x_gx[0]


# ------------------------------- kernel ------------------------------------
def rvae_kernel(
    # inputs (all 2-D, flattened over (T, B))
    x_ref, eps_ref,
    wxg_ref, bxg_ref,                         # enc_mlp_x_gx : Linear(16,32) + tanh
    gx_wih_ref, gx_whh_ref, gx_b_ref,         # enc_rnn_g_x  : LSTM(32 -> 32)
    gz_w_ref, gz_b_ref,                       # enc_rnn_g_z  : LSTM(8 -> 32), [Wih;Whh] stacked
    wz_gx_ref, wz_hg_ref, bz_ref,             # merged enc_inf_z_mean|logvar, split by input half
    h_wih_ref, h_whh_ref, h_b_ref,            # dec_rnn_h    : LSTM(8 -> 32)
    wxl_ref, bxl_ref,                         # dec_gen_x_logvar : Linear(32,16)
    # outputs
    y_ref, z_ref, zml_ref,
    # scratch
    gxin_scr, gx_scr, zx_scr, hin_scr, h_scr,
):
    # ---- hoisted (loop-invariant) weight loads / bias broadcasts ----
    gx_whh = gx_whh_ref[...]
    gz_w = gz_w_ref[...]
    wz_hg = wz_hg_ref[...]
    h_whh = h_whh_ref[...]
    gz_bb = jnp.broadcast_to(gz_b_ref[...], (B, 4 * H))     # hoisted, done once

    zeros_h = jnp.zeros((B, H), jnp.float32)
    z0 = jnp.zeros((B, Z_DIM), jnp.float32)

    def gate_nonlin(gates, c):
        # two full-width EUP calls on the (B, 4H)=(B,128) tile, then 32-lane picks
        sig = jax.nn.sigmoid(gates)
        tnh = jnp.tanh(gates)
        i = sig[:, 0 * H:1 * H]
        f = sig[:, 1 * H:2 * H]
        g = tnh[:, 2 * H:3 * H]
        o = sig[:, 3 * H:4 * H]
        c_new = f * c + i * g
        h_new = o * jnp.tanh(c_new)
        return h_new, c_new

    # ---- Phase 0 (batched, off the recurrence chain) ----
    # encoder MLP + input-gate projection of the backward LSTM, all T*B rows at once
    xg = jnp.tanh(
        jnp.dot(x_ref[...], wxg_ref[...], preferred_element_type=jnp.float32)
        + bxg_ref[...])
    gxin_scr[...] = (
        jnp.dot(xg, gx_wih_ref[...], preferred_element_type=jnp.float32)
        + gx_b_ref[...])

    # ---- Phase 1: backward-time encoder LSTM (1 matmul / step) ----
    def bwd_body(k, carry):
        h, c = carry
        s = T - 1 - k
        row = pl.multiple_of(s * B, B)
        gates = (gxin_scr[pl.ds(row, B), :]
                 + jnp.dot(h, gx_whh, preferred_element_type=jnp.float32))
        h, c = gate_nonlin(gates, c)
        gx_scr[pl.ds(row, B), :] = h
        return (h, c)

    lax.fori_loop(0, T, bwd_body, (zeros_h, zeros_h), unroll=True)

    # batched g_x half of the merged [z_mean | z_logvar] heads (+ bias)
    zx_scr[...] = (
        jnp.dot(gx_scr[...], wz_gx_ref[...], preferred_element_type=jnp.float32)
        + bz_ref[...])

    # ---- Phase 2: sequential z inference (2 matmuls / step) ----
    def enc_body(t, carry):
        z_t, hg, cg = carry
        row = pl.multiple_of(t * B, B)
        zin = jnp.concatenate([z_t, hg], axis=-1)            # (B, Z_DIM + H)
        gates = jnp.dot(zin, gz_w, preferred_element_type=jnp.float32) + gz_bb
        hg, cg = gate_nonlin(gates, cg)
        # merged [z_mean | z_logvar] = (gx half, precomputed) + hg half
        zml = (zx_scr[pl.ds(row, B), :]
               + jnp.dot(hg, wz_hg, preferred_element_type=jnp.float32))
        zm = zml[:, 0:Z_DIM]
        zl = zml[:, Z_DIM:2 * Z_DIM]
        z_new = eps_ref[pl.ds(row, B), :] * jnp.exp(0.5 * zl) + zm   # reparameterization
        zml_ref[pl.ds(row, B), :] = zml
        z_ref[pl.ds(row, B), :] = z_new
        return (z_new, hg, cg)

    lax.fori_loop(0, T, enc_body, (z0, zeros_h, zeros_h), unroll=True)

    # ---- Phase 3: decoder LSTM (1 matmul / step) ----
    # batched decoder input-gate projection over the sampled z
    hin_scr[...] = (
        jnp.dot(z_ref[...], h_wih_ref[...], preferred_element_type=jnp.float32)
        + h_b_ref[...])

    def dec_body(t, carry):
        h, c = carry
        row = pl.multiple_of(t * B, B)
        gates = (hin_scr[pl.ds(row, B), :]
                 + jnp.dot(h, h_whh, preferred_element_type=jnp.float32))
        h, c = gate_nonlin(gates, c)
        h_scr[pl.ds(row, B), :] = h
        return (h, c)

    lax.fori_loop(0, T, dec_body, (zeros_h, zeros_h), unroll=True)

    # batched output Linear + exp
    y_ref[...] = jnp.exp(
        jnp.dot(h_scr[...], wxl_ref[...], preferred_element_type=jnp.float32)
        + bxl_ref[...])


# ------------------------------- wrapper ------------------------------------
def rvae_forward(x, eps, p):
    """x: (T, B, X_DIM), eps: (T, B, Z_DIM). Returns dict like PyTorch forward."""
    # Host-side structural weight prep (tiny, once per call):
    #  - gz LSTM: stack [Wih; Whh] so the per-step gz gates are ONE matmul
    #  - merge z_mean / z_logvar heads column-wise; split rows by input half (gx / hg)
    gz_w = jnp.concatenate([p["gz_wih"], p["gz_whh"]], axis=0)             # (Z_DIM+H, 4H)
    wz_gx = jnp.concatenate([p["wzm"][0:H], p["wzl"][0:H]], axis=1)        # (H, 2*Z_DIM)
    wz_hg = jnp.concatenate([p["wzm"][H:2 * H], p["wzl"][H:2 * H]], axis=1)
    bz = jnp.concatenate([p["bzm"], p["bzl"]], axis=1)                     # (1, 2*Z_DIM)

    x2 = x.reshape(T * B, X_DIM)
    eps2 = eps.reshape(T * B, Z_DIM)

    flat_inputs = [
        x2, eps2,
        p["wxg"], p["bxg"],
        p["gx_wih"], p["gx_whh"], p["gx_b"],
        gz_w, p["gz_b"],
        wz_gx, wz_hg, bz,
        p["h_wih"], p["h_whh"], p["h_b"],
        p["wxl"], p["bxl"],
    ]
    vmem_spec = pl.BlockSpec(memory_space=pltpu.MemorySpace.VMEM)
    y2, z2, zml2 = pl.pallas_call(
        rvae_kernel,
        out_shape=(
            jax.ShapeDtypeStruct((T * B, X_DIM), jnp.float32),       # y = exp(x_gen_logvar)
            jax.ShapeDtypeStruct((T * B, Z_DIM), jnp.float32),       # z
            jax.ShapeDtypeStruct((T * B, 2 * Z_DIM), jnp.float32),   # [z_mean | z_logvar]
        ),
        in_specs=[vmem_spec] * len(flat_inputs),
        out_specs=(vmem_spec,) * 3,
        scratch_shapes=[
            pltpu.VMEM((T * B, 4 * H), jnp.float32),      # gxin : batched xg @ Wih_gx
            pltpu.VMEM((T * B, H), jnp.float32),          # gx   : backward LSTM hiddens
            pltpu.VMEM((T * B, 2 * Z_DIM), jnp.float32),  # zx   : gx half of [zm|zl] heads
            pltpu.VMEM((T * B, 4 * H), jnp.float32),      # hin  : batched z @ Wih_h
            pltpu.VMEM((T * B, H), jnp.float32),          # h    : decoder LSTM hiddens
        ],
    )(*flat_inputs)

    y = y2.reshape(T, B, X_DIM)
    z = z2.reshape(T, B, Z_DIM)
    zm = zml2[:, 0:Z_DIM].reshape(T, B, Z_DIM)
    zl = zml2[:, Z_DIM:2 * Z_DIM].reshape(T, B, Z_DIM)

    return {
        "x": x,
        "y": y,
        "z": z,
        "z_mean": zm,
        "z_logvar": zl,
        "z_mean_p": jnp.zeros_like(zm),
        "z_logvar_p": jnp.zeros_like(zl),
    }


# --------------------------- pure-JAX reference ------------------------------
def rvae_ref(x, eps, p):
    def cell(xt, h, c, wih, whh, b):
        gates = xt @ wih + h @ whh + b
        i = jax.nn.sigmoid(gates[:, 0 * H:1 * H])
        f = jax.nn.sigmoid(gates[:, 1 * H:2 * H])
        g = jnp.tanh(gates[:, 2 * H:3 * H])
        o = jax.nn.sigmoid(gates[:, 3 * H:4 * H])
        c = f * c + i * g
        h = o * jnp.tanh(c)
        return h, c

    zeros_h = jnp.zeros((B, H), jnp.float32)
    # encoder MLP + backward LSTM
    xg = jnp.tanh(x @ p["wxg"] + p["bxg"])                 # (T, B, H)
    xg_rev = xg[::-1]

    def scan_bwd(carry, xt):
        h, c = carry
        h, c = cell(xt, h, c, p["gx_wih"], p["gx_whh"], p["gx_b"])
        return (h, c), h

    _, gx_rev = lax.scan(scan_bwd, (zeros_h, zeros_h), xg_rev)
    gx = gx_rev[::-1]

    def scan_enc(carry, inp):
        z_t, hg, cg = carry
        gx_t, eps_t = inp
        hg, cg = cell(z_t, hg, cg, p["gz_wih"], p["gz_whh"], p["gz_b"])
        cat = jnp.concatenate([gx_t, hg], axis=-1)
        zm = cat @ p["wzm"] + p["bzm"]
        zl = cat @ p["wzl"] + p["bzl"]
        z_new = eps_t * jnp.exp(0.5 * zl) + zm
        return (z_new, hg, cg), (z_new, zm, zl)

    z0 = jnp.zeros((B, Z_DIM), jnp.float32)
    _, (z, zm, zl) = lax.scan(scan_enc, (z0, zeros_h, zeros_h), (gx, eps))

    def scan_dec(carry, zt):
        h, c = carry
        h, c = cell(zt, h, c, p["h_wih"], p["h_whh"], p["h_b"])
        logv = h @ p["wxl"] + p["bxl"]
        return (h, c), jnp.exp(logv)

    _, y = lax.scan(scan_dec, (zeros_h, zeros_h), z)
    return y, z, zm, zl


# ------------------------------ param init -----------------------------------
def init_params(key):
    ks = jax.random.split(key, 16)
    s = 0.1

    def w(k, shape):
        return (jax.random.normal(k, shape, jnp.float32) * s)

    return {
        # enc_mlp_x_gx: Linear(X_DIM, H)  (stored transposed: (in, out))
        "wxg": w(ks[0], (X_DIM, H)), "bxg": w(ks[1], (1, H)),
        # enc_rnn_g_x: LSTM(H -> H); weights transposed to (in, 4H); bias = b_ih + b_hh
        "gx_wih": w(ks[2], (H, 4 * H)), "gx_whh": w(ks[3], (H, 4 * H)),
        "gx_b": w(ks[4], (1, 4 * H)),
        # enc_rnn_g_z: LSTM(Z_DIM -> H)
        "gz_wih": w(ks[5], (Z_DIM, 4 * H)), "gz_whh": w(ks[6], (H, 4 * H)),
        "gz_b": w(ks[7], (1, 4 * H)),
        # enc_inf_z_mean / logvar: Linear(2H, Z_DIM), transposed
        "wzm": w(ks[8], (2 * H, Z_DIM)), "bzm": w(ks[9], (1, Z_DIM)),
        "wzl": w(ks[10], (2 * H, Z_DIM)), "bzl": w(ks[11], (1, Z_DIM)),
        # dec_rnn_h: LSTM(Z_DIM -> H)
        "h_wih": w(ks[12], (Z_DIM, 4 * H)), "h_whh": w(ks[13], (H, 4 * H)),
        "h_b": w(ks[14], (1, 4 * H)),
        # dec_gen_x_logvar: Linear(H, X_DIM), transposed
        "wxl": w(ks[15], (H, X_DIM)),
        "bxl": jnp.zeros((1, X_DIM), jnp.float32),
    }
    # TODO(synk): dropout is identity here (p=0.0 / eval mode); other
    # reparameterization modes ('covar', 'complex') are unused in forward().


# --------------------------------- main ---------------------------------------
if __name__ == "__main__":
    key = jax.random.PRNGKey(0)
    kx, keps, kp = jax.random.split(key, 3)
    x = jax.random.normal(kx, (T, B, X_DIM), jnp.float32)
    eps = jax.random.normal(keps, (T, B, Z_DIM), jnp.float32)  # reparam noise
    params = init_params(kp)

    out = jax.jit(rvae_forward)(x, eps, params)
    jax.block_until_ready(out)

    y_r, z_r, zm_r, zl_r = rvae_ref(x, eps, params)
    np.testing.assert_allclose(np.asarray(out["y"]), np.asarray(y_r), atol=1e-4, rtol=1e-4)
    np.testing.assert_allclose(np.asarray(out["z"]), np.asarray(z_r), atol=1e-4, rtol=1e-4)
    np.testing.assert_allclose(np.asarray(out["z_mean"]), np.asarray(zm_r), atol=1e-4, rtol=1e-4)
    np.testing.assert_allclose(np.asarray(out["z_logvar"]), np.asarray(zl_r), atol=1e-4, rtol=1e-4)

    print("KERNEL_OK")
</pallas_src>

<mosaic_0001>
module attributes {stable_mosaic.version = 11 : i64} {
  func.func @rvae_kernel(%arg0: memref<16x16xf32, #tpu.memory_space<vmem>>, %arg1: memref<16x8xf32, #tpu.memory_space<vmem>>, %arg2: memref<16x32xf32, #tpu.memory_space<vmem>>, %arg3: memref<1x32xf32, #tpu.memory_space<vmem>>, %arg4: memref<32x128xf32, #tpu.memory_space<vmem>>, %arg5: memref<32x128xf32, #tpu.memory_space<vmem>>, %arg6: memref<1x128xf32, #tpu.memory_space<vmem>>, %arg7: memref<40x128xf32, #tpu.memory_space<vmem>>, %arg8: memref<1x128xf32, #tpu.memory_space<vmem>>, %arg9: memref<32x16xf32, #tpu.memory_space<vmem>>, %arg10: memref<32x16xf32, #tpu.memory_space<vmem>>, %arg11: memref<1x16xf32, #tpu.memory_space<vmem>>, %arg12: memref<8x128xf32, #tpu.memory_space<vmem>>, %arg13: memref<32x128xf32, #tpu.memory_space<vmem>>, %arg14: memref<1x128xf32, #tpu.memory_space<vmem>>, %arg15: memref<32x16xf32, #tpu.memory_space<vmem>>, %arg16: memref<1x16xf32, #tpu.memory_space<vmem>>, %arg17: memref<16x16xf32, #tpu.memory_space<vmem>>, %arg18: memref<16x8xf32, #tpu.memory_space<vmem>>, %arg19: memref<16x16xf32, #tpu.memory_space<vmem>>, %arg20: memref<16x128xf32, #tpu.memory_space<vmem>>, %arg21: memref<16x32xf32, #tpu.memory_space<vmem>>, %arg22: memref<16x16xf32, #tpu.memory_space<vmem>>, %arg23: memref<16x128xf32, #tpu.memory_space<vmem>>, %arg24: memref<16x32xf32, #tpu.memory_space<vmem>>) attributes {dimension_semantics = [], scalar_prefetch = 0 : i64, scratch_operands = 5 : i64, tpu.core_type = #tpu.core_type<tc>} {
    %c0 = arith.constant 0 : index
    %c0_0 = arith.constant 0 : index
    %0 = vector.load %arg5[%c0, %c0_0] : memref<32x128xf32, #tpu.memory_space<vmem>>, vector<32x128xf32>
    %c0_1 = arith.constant 0 : index
    %c0_2 = arith.constant 0 : index
    %1 = vector.load %arg7[%c0_1, %c0_2] : memref<40x128xf32, #tpu.memory_space<vmem>>, vector<40x128xf32>
    %c0_3 = arith.constant 0 : index
    %c0_4 = arith.constant 0 : index
    %2 = vector.load %arg10[%c0_3, %c0_4] : memref<32x16xf32, #tpu.memory_space<vmem>>, vector<32x16xf32>
    %c0_5 = arith.constant 0 : index
    %c0_6 = arith.constant 0 : index
    %3 = vector.load %arg13[%c0_5, %c0_6] : memref<32x128xf32, #tpu.memory_space<vmem>>, vector<32x128xf32>
    %c0_7 = arith.constant 0 : index
    %c0_8 = arith.constant 0 : index
    %4 = vector.load %arg8[%c0_7, %c0_8] : memref<1x128xf32, #tpu.memory_space<vmem>>, vector<1x128xf32>
    %5 = vector.shape_cast %4 : vector<1x128xf32> to vector<1x128xf32>
    %6 = vector.broadcast %5 : vector<1x128xf32> to vector<2x128xf32>
    %cst = arith.constant 0.000000e+00 : f32
    %7 = vector.broadcast %cst : f32 to vector<2x32xf32>
    %cst_9 = arith.constant 0.000000e+00 : f32
    %8 = vector.broadcast %cst_9 : f32 to vector<2x8xf32>
    %c0_10 = arith.constant 0 : index
    %c0_11 = arith.constant 0 : index
    %9 = vector.load %arg0[%c0_10, %c0_11] : memref<16x16xf32, #tpu.memory_space<vmem>>, vector<16x16xf32>
    %c0_12 = arith.constant 0 : index
    %c0_13 = arith.constant 0 : index
    %10 = vector.load %arg2[%c0_12, %c0_13] : memref<16x32xf32, #tpu.memory_space<vmem>>, vector<16x32xf32>
    %cst_14 = arith.constant dense<0.000000e+00> : vector<16x32xf32>
    %11 = tpu.matmul %9, %10, %cst_14 {dimension_numbers = #tpu.dot_dimension_numbers<[1], [0], [0], [1], [0, 0, 1, 1], [], []>} : vector<16x16xf32>, vector<16x32xf32>, vector<16x32xf32> -> vector<16x32xf32>
    %c0_15 = arith.constant 0 : index
    %c0_16 = arith.constant 0 : index
    %12 = vector.load %arg3[%c0_15, %c0_16] : memref<1x32xf32, #tpu.memory_space<vmem>>, vector<1x32xf32>
    %13 = vector.broadcast %12 : vector<1x32xf32> to vector<16x32xf32>
    %14 = arith.addf %11, %13 : vector<16x32xf32>
    %15 = math.tanh %14 : vector<16x32xf32>
    %c0_17 = arith.constant 0 : index
    %c0_18 = arith.constant 0 : index
    %16 = vector.load %arg4[%c0_17, %c0_18] : memref<32x128xf32, #tpu.memory_space<vmem>>, vector<32x128xf32>
    %cst_19 = arith.constant dense<0.000000e+00> : vector<16x128xf32>
    %17 = tpu.matmul %15, %16, %cst_19 {dimension_numbers = #tpu.dot_dimension_numbers<[1], [0], [0], [1], [0, 0, 1, 1], [], []>} : vector<16x32xf32>, vector<32x128xf32>, vector<16x128xf32> -> vector<16x128xf32>
    %c0_20 = arith.constant 0 : index
    %c0_21 = arith.constant 0 : index
    %18 = vector.load %arg6[%c0_20, %c0_21] : memref<1x128xf32, #tpu.memory_space<vmem>>, vector<1x128xf32>
    %19 = vector.broadcast %18 : vector<1x128xf32> to vector<16x128xf32>
    %20 = arith.addf %17, %19 : vector<16x128xf32>
    %c0_22 = arith.constant 0 : index
    %c0_23 = arith.constant 0 : index
    %21 = vector.load %arg20[%c0_22, %c0_23] : memref<16x128xf32, #tpu.memory_space<vmem>>, vector<16x128xf32>
    tpu.vector_store %arg20[%c0_22, %c0_23], %20 {strides = array<i32>} : memref<16x128xf32, #tpu.memory_space<vmem>>, vector<16x128xf32>,
    %c0_i32 = arith.constant 0 : i32
    %c7_i32 = arith.constant 7 : i32
    %22 = arith.subi %c7_i32, %c0_i32 : i32
    %c2_i32 = arith.constant 2 : i32
    %23 = arith.muli %22, %c2_i32 : i32
    %24 = tpu.assume_multiple %23, 2 : i32
    %25 = arith.index_cast %24 : i32 to index
    %c0_24 = arith.constant 0 : index
    %26 = vector.load %arg20[%25, %c0_24] : memref<16x128xf32, #tpu.memory_space<vmem>>, vector<2x128xf32>
    %cst_25 = arith.constant dense<0.000000e+00> : vector<2x128xf32>
    %27 = tpu.matmul %7, %0, %cst_25 {dimension_numbers = #tpu.dot_dimension_numbers<[1], [0], [0], [1], [0, 0, 1, 1], [], []>} : vector<2x32xf32>, vector<32x128xf32>, vector<2x128xf32> -> vector<2x128xf32>
    %28 = arith.addf %26, %27 : vector<2x128xf32>
    %29 = arith.negf %28 : vector<2x128xf32>
    %30 = math.exp %29 : vector<2x128xf32>
    %cst_26 = arith.constant 1.000000e+00 : f32
    %31 = vector.broadcast %cst_26 : f32 to vector<2x128xf32>
    %32 = arith.addf %31, %30 : vector<2x128xf32>
    %33 = arith.divf %31, %32 : vector<2x128xf32>
    %34 = math.tanh %28 : vector<2x128xf32>
    %35 = vector.extract_strided_slice %33 {offsets = [0, 0], sizes = [2, 32], strides = [1, 1]} : vector<2x128xf32> to vector<2x32xf32>
    %36 = vector.extract_strided_slice %33 {offsets = [0, 32], sizes = [2, 32], strides = [1, 1]} : vector<2x128xf32> to vector<2x32xf32>
    %37 = vector.extract_strided_slice %34 {offsets = [0, 64], sizes = [2, 32], strides = [1, 1]} : vector<2x128xf32> to vector<2x32xf32>
    %38 = vector.extract_strided_slice %33 {offsets = [0, 96], sizes = [2, 32], strides = [1, 1]} : vector<2x128xf32> to vector<2x32xf32>
    %39 = arith.mulf %36, %7 : vector<2x32xf32>
    %40 = arith.mulf %35, %37 : vector<2x32xf32>
    %41 = arith.addf %39, %40 : vector<2x32xf32>
    %42 = math.tanh %41 : vector<2x32xf32>
    %43 = arith.mulf %38, %42 : vector<2x32xf32>
    %44 = arith.index_cast %24 : i32 to index
    %c0_27 = arith.constant 0 : index
    %45 = vector.load %arg21[%44, %c0_27] : memref<16x32xf32, #tpu.memory_space<vmem>>, vector<2x32xf32>
    tpu.vector_store %arg21[%44, %c0_27], %43 {strides = array<i32>} : memref<16x32xf32, #tpu.memory_space<vmem>>, vector<2x32xf32>,
    %c1_i32 = arith.constant 1 : i32
    %c7_i32_28 = arith.constant 7 : i32
    %46 = arith.subi %c7_i32_28, %c1_i32 : i32
    %c2_i32_29 = arith.constant 2 : i32
    %47 = arith.muli %46, %c2_i32_29 : i32
    %48 = tpu.assume_multiple %47, 2 : i32
    %49 = arith.index_cast %48 : i32 to index
    %c0_30 = arith.constant 0 : index
    %50 = vector.load %arg20[%49, %c0_30] : memref<16x128xf32, #tpu.memory_space<vmem>>, vector<2x128xf32>
    %cst_31 = arith.constant dense<0.000000e+00> : vector<2x128xf32>
    %51 = tpu.matmul %43, %0, %cst_31 {dimension_numbers = #tpu.dot_dimension_numbers<[1], [0], [0], [1], [0, 0, 1, 1], [], []>} : vector<2x32xf32>, vector<32x128xf32>, vector<2x128xf32> -> vector<2x128xf32>
    %52 = arith.addf %50, %51 : vector<2x128xf32>
    %53 = arith.negf %52 : vector<2x128xf32>
    %54 = math.exp %53 : vector<2x128xf32>
    %cst_32 = arith.constant 1.000000e+00 : f32
    %55 = vector.broadcast %cst_32 : f32 to vector<2x128xf32>
    %56 = arith.addf %55, %54 : vector<2x128xf32>
    %57 = arith.divf %55, %56 : vector<2x128xf32>
    %58 = math.tanh %52 : vector<2x128xf32>
    %59 = vector.extract_strided_slice %57 {offsets = [0, 0], sizes = [2, 32], strides = [1, 1]} : vector<2x128xf32> to vector<2x32xf32>
    %60 = vector.extract_strided_slice %57 {offsets = [0, 32], sizes = [2, 32], strides = [1, 1]} : vector<2x128xf32> to vector<2x32xf32>
    %61 = vector.extract_strided_slice %58 {offsets = [0, 64], sizes = [2, 32], strides = [1, 1]} : vector<2x128xf32> to vector<2x32xf32>
    %62 = vector.extract_strided_slice %57 {offsets = [0, 96], sizes = [2, 32], strides = [1, 1]} : vector<2x128xf32> to vector<2x32xf32>
    %63 = arith.mulf %60, %41 : vector<2x32xf32>
    %64 = arith.mulf %59, %61 : vector<2x32xf32>
    %65 = arith.addf %63, %64 : vector<2x32xf32>
    %66 = math.tanh %65 : vector<2x32xf32>
    %67 = arith.mulf %62, %66 : vector<2x32xf32>
    %68 = arith.index_cast %48 : i32 to index
    %c0_33 = arith.constant 0 : index
    %69 = vector.load %arg21[%68, %c0_33] : memref<16x32xf32, #tpu.memory_space<vmem>>, vector<2x32xf32>
    tpu.vector_store %arg21[%68, %c0_33], %67 {strides = array<i32>} : memref<16x32xf32, #tpu.memory_space<vmem>>, vector<2x32xf32>,
    %c2_i32_34 = arith.constant 2 : i32
    %c7_i32_35 = arith.constant 7 : i32
    %70 = arith.subi %c7_i32_35, %c2_i32_34 : i32
    %c2_i32_36 = arith.constant 2 : i32
    %71 = arith.muli %70, %c2_i32_36 : i32
    %72 = tpu.assume_multiple %71, 2 : i32
    %73 = arith.index_cast %72 : i32 to index
    %c0_37 = arith.constant 0 : index
    %74 = vector.load %arg20[%73, %c0_37] : memref<16x128xf32, #tpu.memory_space<vmem>>, vector<2x128xf32>
    %cst_38 = arith.constant dense<0.000000e+00> : vector<2x128xf32>
    %75 = tpu.matmul %67, %0, %cst_38 {dimension_numbers = #tpu.dot_dimension_numbers<[1], [0], [0], [1], [0, 0, 1, 1], [], []>} : vector<2x32xf32>, vector<32x128xf32>, vector<2x128xf32> -> vector<2x128xf32>
    %76 = arith.addf %74, %75 : vector<2x128xf32>
    %77 = arith.negf %76 : vector<2x128xf32>
    %78 = math.exp %77 : vector<2x128xf32>
    %cst_39 = arith.constant 1.000000e+00 : f32
    %79 = vector.broadcast %cst_39 : f32 to vector<2x128xf32>
    %80 = arith.addf %79, %78 : vector<2x128xf32>
    %81 = arith.divf %79, %80 : vector<2x128xf32>
    %82 = math.tanh %76 : vector<2x128xf32>
    %83 = vector.extract_strided_slice %81 {offsets = [0, 0], sizes = [2, 32], strides = [1, 1]} : vector<2x128xf32> to vector<2x32xf32>
    %84 = vector.extract_strided_slice %81 {offsets = [0, 32], sizes = [2, 32], strides = [1, 1]} : vector<2x128xf32> to vector<2x32xf32>
    %85 = vector.extract_strided_slice %82 {offsets = [0, 64], sizes = [2, 32], strides = [1, 1]} : vector<2x128xf32> to vector<2x32xf32>
    %86 = vector.extract_strided_slice %81 {offsets = [0, 96], sizes = [2, 32], strides = [1, 1]} : vector<2x128xf32> to vector<2x32xf32>
    %87 = arith.mulf %84, %65 : vector<2x32xf32>
    %88 = arith.mulf %83, %85 : vector<2x32xf32>
    %89 = arith.addf %87, %88 : vector<2x32xf32>
    %90 = math.tanh %89 : vector<2x32xf32>
    %91 = arith.mulf %86, %90 : vector<2x32xf32>
    %92 = arith.index_cast %72 : i32 to index
    %c0_40 = arith.constant 0 : index
    %93 = vector.load %arg21[%92, %c0_40] : memref<16x32xf32, #tpu.memory_space<vmem>>, vector<2x32xf32>
    tpu.vector_store %arg21[%92, %c0_40], %91 {strides = array<i32>} : memref<16x32xf32, #tpu.memory_space<vmem>>, vector<2x32xf32>,
    %c3_i32 = arith.constant 3 : i32
    %c7_i32_41 = arith.constant 7 : i32
    %94 = arith.subi %c7_i32_41, %c3_i32 : i32
    %c2_i32_42 = arith.constant 2 : i32
    %95 = arith.muli %94, %c2_i32_42 : i32
    %96 = tpu.assume_multiple %95, 2 : i32
    %97 = arith.index_cast %96 : i32 to index
    %c0_43 = arith.constant 0 : index
    %98 = vector.load %arg20[%97, %c0_43] : memref<16x128xf32, #tpu.memory_space<vmem>>, vector<2x128xf32>
    %cst_44 = arith.constant dense<0.000000e+00> : vector<2x128xf32>
    %99 = tpu.matmul %91, %0, %cst_44 {dimension_numbers = #tpu.dot_dimension_numbers<[1], [0], [0], [1], [0, 0, 1, 1], [], []>} : vector<2x32xf32>, vector<32x128xf32>, vector<2x128xf32> -> vector<2x128xf32>
    %100 = arith.addf %98, %99 : vector<2x128xf32>
    %101 = arith.negf %100 : vector<2x128xf32>
    %102 = math.exp %101 : vector<2x128xf32>
    %cst_45 = arith.constant 1.000000e+00 : f32
    %103 = vector.broadcast %cst_45 : f32 to vector<2x128xf32>
    %104 = arith.addf %103, %102 : vector<2x128xf32>
    %105 = arith.divf %103, %104 : vector<2x128xf32>
    %106 = math.tanh %100 : vector<2x128xf32>
    %107 = vector.extract_strided_slice %105 {offsets = [0, 0], sizes = [2, 32], strides = [1, 1]} : vector<2x128xf32> to vector<2x32xf32>
    %108 = vector.extract_strided_slice %105 {offsets = [0, 32], sizes = [2, 32], strides = [1, 1]} : vector<2x128xf32> to vector<2x32xf32>
    %109 = vector.extract_strided_slice %106 {offsets = [0, 64], sizes = [2, 32], strides = [1, 1]} : vector<2x128xf32> to vector<2x32xf32>
    %110 = vector.extract_strided_slice %105 {offsets = [0, 96], sizes = [2, 32], strides = [1, 1]} : vector<2x128xf32> to vector<2x32xf32>
    %111 = arith.mulf %108, %89 : vector<2x32xf32>
    %112 = arith.mulf %107, %109 : vector<2x32xf32>
    %113 = arith.addf %111, %112 : vector<2x32xf32>
    %114 = math.tanh %113 : vector<2x32xf32>
    %115 = arith.mulf %110, %114 : vector<2x32xf32>
    %116 = arith.index_cast %96 : i32 to index
    %c0_46 = arith.constant 0 : index
    %117 = vector.load %arg21[%116, %c0_46] : memref<16x32xf32, #tpu.memory_space<vmem>>, vector<2x32xf32>
    tpu.vector_store %arg21[%116, %c0_46], %115 {strides = array<i32>} : memref<16x32xf32, #tpu.memory_space<vmem>>, vector<2x32xf32>,
    %c4_i32 = arith.constant 4 : i32
    %c7_i32_47 = arith.constant 7 : i32
    %118 = arith.subi %c7_i32_47, %c4_i32 : i32
    %c2_i32_48 = arith.constant 2 : i32
    %119 = arith.muli %118, %c2_i32_48 : i32
    %120 = tpu.assume_multiple %119, 2 : i32
    %121 = arith.index_cast %120 : i32 to index
    %c0_49 = arith.constant 0 : index
    %122 = vector.load %arg20[%121, %c0_49] : memref<16x128xf32, #tpu.memory_space<vmem>>, vector<2x128xf32>
    %cst_50 = arith.constant dense<0.000000e+00> : vector<2x128xf32>
    %123 = tpu.matmul %115, %0, %cst_50 {dimension_numbers = #tpu.dot_dimension_numbers<[1], [0], [0], [1], [0, 0, 1, 1], [], []>} : vector<2x32xf32>, vector<32x128xf32>, vector<2x128xf32> -> vector<2x128xf32>
    %124 = arith.addf %122, %123 : vector<2x128xf32>
    %125 = arith.negf %124 : vector<2x128xf32>
    %126 = math.exp %125 : vector<2x128xf32>
    %cst_51 = arith.constant 1.000000e+00 : f32
    %127 = vector.broadcast %cst_51 : f32 to vector<2x128xf32>
    %128 = arith.addf %127, %126 : vector<2x128xf32>
    %129 = arith.divf %127, %128 : vector<2x128xf32>
    %130 = math.tanh %124 : vector<2x128xf32>
    %131 = vector.extract_strided_slice %129 {offsets = [0, 0], sizes = [2, 32], strides = [1, 1]} : vector<2x128xf32> to vector<2x32xf32>
    %132 = vector.extract_strided_slice %129 {offsets = [0, 32], sizes = [2, 32], strides = [1, 1]} : vector<2x128xf32> to vector<2x32xf32>
    %133 = vector.extract_strided_slice %130 {offsets = [0, 64], sizes = [2, 32], strides = [1, 1]} : vector<2x128xf32> to vector<2x32xf32>
    %134 = vector.extract_strided_slice %129 {offsets = [0, 96], sizes = [2, 32], strides = [1, 1]} : vector<2x128xf32> to vector<2x32xf32>
    %135 = arith.mulf %132, %113 : vector<2x32xf32>
    %136 = arith.mulf %131, %133 : vector<2x32xf32>
    %137 = arith.addf %135, %136 : vector<2x32xf32>
    %138 = math.tanh %137 : vector<2x32xf32>
    %139 = arith.mulf %134, %138 : vector<2x32xf32>
    %140 = arith.index_cast %120 : i32 to index
    %c0_52 = arith.constant 0 : index
    %141 = vector.load %arg21[%140, %c0_52] : memref<16x32xf32, #tpu.memory_space<vmem>>, vector<2x32xf32>
    tpu.vector_store %arg21[%140, %c0_52], %139 {strides = array<i32>} : memref<16x32xf32, #tpu.memory_space<vmem>>, vector<2x32xf32>,
    %c5_i32 = arith.constant 5 : i32
    %c7_i32_53 = arith.constant 7 : i32
    %142 = arith.subi %c7_i32_53, %c5_i32 : i32
    %c2_i32_54 = arith.constant 2 : i32
    %143 = arith.muli %142, %c2_i32_54 : i32
    %144 = tpu.assume_multiple %143, 2 : i32
    %145 = arith.index_cast %144 : i32 to index
    %c0_55 = arith.constant 0 : index
    %146 = vector.load %arg20[%145, %c0_55] : memref<16x128xf32, #tpu.memory_space<vmem>>, vector<2x128xf32>
    %cst_56 = arith.constant dense<0.000000e+00> : vector<2x128xf32>
    %147 = tpu.matmul %139, %0, %cst_56 {dimension_numbers = #tpu.dot_dimension_numbers<[1], [0], [0], [1], [0, 0, 1, 1], [], []>} : vector<2x32xf32>, vector<32x128xf32>, vector<2x128xf32> -> vector<2x128xf32>
    %148 = arith.addf %146, %147 : vector<2x128xf32>
    %149 = arith.negf %148 : vector<2x128xf32>
    %150 = math.exp %149 : vector<2x128xf32>
    %cst_57 = arith.constant 1.000000e+00 : f32
    %151 = vector.broadcast %cst_57 : f32 to vector<2x128xf32>
    %152 = arith.addf %151, %150 : vector<2x128xf32>
    %153 = arith.divf %151, %152 : vector<2x128xf32>
    %154 = math.tanh %148 : vector<2x128xf32>
    %155 = vector.extract_strided_slice %153 {offsets = [0, 0], sizes = [2, 32], strides = [1, 1]} : vector<2x128xf32> to vector<2x32xf32>
    %156 = vector.extract_strided_slice %153 {offsets = [0, 32], sizes = [2, 32], strides = [1, 1]} : vector<2x128xf32> to vector<2x32xf32>
    %157 = vector.extract_strided_slice %154 {offsets = [0, 64], sizes = [2, 32], strides = [1, 1]} : vector<2x128xf32> to vector<2x32xf32>
    %158 = vector.extract_strided_slice %153 {offsets = [0, 96], sizes = [2, 32], strides = [1, 1]} : vector<2x128xf32> to vector<2x32xf32>
    %159 = arith.mulf %156, %137 : vector<2x32xf32>
    %160 = arith.mulf %155, %157 : vector<2x32xf32>
    %161 = arith.addf %159, %160 : vector<2x32xf32>
    %162 = math.tanh %161 : vector<2x32xf32>
    %163 = arith.mulf %158, %162 : vector<2x32xf32>
    %164 = arith.index_cast %144 : i32 to index
    %c0_58 = arith.constant 0 : index
    %165 = vector.load %arg21[%164, %c0_58] : memref<16x32xf32, #tpu.memory_space<vmem>>, vector<2x32xf32>
    tpu.vector_store %arg21[%164, %c0_58], %163 {strides = array<i32>} : memref<16x32xf32, #tpu.memory_space<vmem>>, vector<2x32xf32>,
    %c6_i32 = arith.constant 6 : i32
    %c7_i32_59 = arith.constant 7 : i32
    %166 = arith.subi %c7_i32_59, %c6_i32 : i32
    %c2_i32_60 = arith.constant 2 : i32
    %167 = arith.muli %166, %c2_i32_60 : i32
    %168 = tpu.assume_multiple %167, 2 : i32
    %169 = arith.index_cast %168 : i32 to index
    %c0_61 = arith.constant 0 : index
    %170 = vector.load %arg20[%169, %c0_61] : memref<16x128xf32, #tpu.memory_space<vmem>>, vector<2x128xf32>
    %cst_62 = arith.constant dense<0.000000e+00> : vector<2x128xf32>
    %171 = tpu.matmul %163, %0, %cst_62 {dimension_numbers = #tpu.dot_dimension_numbers<[1], [0], [0], [1], [0, 0, 1, 1], [], []>} : vector<2x32xf32>, vector<32x128xf32>, vector<2x128xf32> -> vector<2x128xf32>
    %172 = arith.addf %170, %171 : vector<2x128xf32>
    %173 = arith.negf %172 : vector<2x128xf32>
    %174 = math.exp %173 : vector<2x128xf32>
    %cst_63 = arith.constant 1.000000e+00 : f32
    %175 = vector.broadcast %cst_63 : f32 to vector<2x128xf32>
    %176 = arith.addf %175, %174 : vector<2x128xf32>
    %177 = arith.divf %175, %176 : vector<2x128xf32>
    %178 = math.tanh %172 : vector<2x128xf32>
    %179 = vector.extract_strided_slice %177 {offsets = [0, 0], sizes = [2, 32], strides = [1, 1]} : vector<2x128xf32> to vector<2x32xf32>
    %180 = vector.extract_strided_slice %177 {offsets = [0, 32], sizes = [2, 32], strides = [1, 1]} : vector<2x128xf32> to vector<2x32xf32>
    %181 = vector.extract_strided_slice %178 {offsets = [0, 64], sizes = [2, 32], strides = [1, 1]} : vector<2x128xf32> to vector<2x32xf32>
    %182 = vector.extract_strided_slice %177 {offsets = [0, 96], sizes = [2, 32], strides = [1, 1]} : vector<2x128xf32> to vector<2x32xf32>
    %183 = arith.mulf %180, %161 : vector<2x32xf32>
    %184 = arith.mulf %179, %181 : vector<2x32xf32>
    %185 = arith.addf %183, %184 : vector<2x32xf32>
    %186 = math.tanh %185 : vector<2x32xf32>
    %187 = arith.mulf %182, %186 : vector<2x32xf32>
    %188 = arith.index_cast %168 : i32 to index
    %c0_64 = arith.constant 0 : index
    %189 = vector.load %arg21[%188, %c0_64] : memref<16x32xf32, #tpu.memory_space<vmem>>, vector<2x32xf32>
    tpu.vector_store %arg21[%188, %c0_64], %187 {strides = array<i32>} : memref<16x32xf32, #tpu.memory_space<vmem>>, vector<2x32xf32>,
    %c7_i32_65 = arith.constant 7 : i32
    %c7_i32_66 = arith.constant 7 : i32
    %190 = arith.subi %c7_i32_66, %c7_i32_65 : i32
    %c2_i32_67 = arith.constant 2 : i32
    %191 = arith.muli %190, %c2_i32_67 : i32
    %192 = tpu.assume_multiple %191, 2 : i32
    %193 = arith.index_cast %192 : i32 to index
    %c0_68 = arith.constant 0 : index
    %194 = vector.load %arg20[%193, %c0_68] : memref<16x128xf32, #tpu.memory_space<vmem>>, vector<2x128xf32>
    %cst_69 = arith.constant dense<0.000000e+00> : vector<2x128xf32>
    %195 = tpu.matmul %187, %0, %cst_69 {dimension_numbers = #tpu.dot_dimension_numbers<[1], [0], [0], [1], [0, 0, 1, 1], [], []>} : vector<2x32xf32>, vector<32x128xf32>, vector<2x128xf32> -> vector<2x128xf32>
    %196 = arith.addf %194, %195 : vector<2x128xf32>
    %197 = arith.negf %196 : vector<2x128xf32>
    %198 = math.exp %197 : vector<2x128xf32>
    %cst_70 = arith.constant 1.000000e+00 : f32
    %199 = vector.broadcast %cst_70 : f32 to vector<2x128xf32>
    %200 = arith.addf %199, %198 : vector<2x128xf32>
    %201 = arith.divf %199, %200 : vector<2x128xf32>
    %202 = math.tanh %196 : vector<2x128xf32>
    %203 = vector.extract_strided_slice %201 {offsets = [0, 0], sizes = [2, 32], strides = [1, 1]} : vector<2x128xf32> to vector<2x32xf32>
    %204 = vector.extract_strided_slice %201 {offsets = [0, 32], sizes = [2, 32], strides = [1, 1]} : vector<2x128xf32> to vector<2x32xf32>
    %205 = vector.extract_strided_slice %202 {offsets = [0, 64], sizes = [2, 32], strides = [1, 1]} : vector<2x128xf32> to vector<2x32xf32>
    %206 = vector.extract_strided_slice %201 {offsets = [0, 96], sizes = [2, 32], strides = [1, 1]} : vector<2x128xf32> to vector<2x32xf32>
    %207 = arith.mulf %204, %185 : vector<2x32xf32>
    %208 = arith.mulf %203, %205 : vector<2x32xf32>
    %209 = arith.addf %207, %208 : vector<2x32xf32>
    %210 = math.tanh %209 : vector<2x32xf32>
    %211 = arith.mulf %206, %210 : vector<2x32xf32>
    %212 = arith.index_cast %192 : i32 to index
    %c0_71 = arith.constant 0 : index
    %213 = vector.load %arg21[%212, %c0_71] : memref<16x32xf32, #tpu.memory_space<vmem>>, vector<2x32xf32>
    tpu.vector_store %arg21[%212, %c0_71], %211 {strides = array<i32>} : memref<16x32xf32, #tpu.memory_space<vmem>>, vector<2x32xf32>,
    %c8_i32 = arith.constant 8 : i32
    %c0_72 = arith.constant 0 : index
    %c0_73 = arith.constant 0 : index
    %214 = vector.load %arg21[%c0_72, %c0_73] : memref<16x32xf32, #tpu.memory_space<vmem>>, vector<16x32xf32>
    %c0_74 = arith.constant 0 : index
    %c0_75 = arith.constant 0 : index
    %215 = vector.load %arg9[%c0_74, %c0_75] : memref<32x16xf32, #tpu.memory_space<vmem>>, vector<32x16xf32>
    %cst_76 = arith.constant dense<0.000000e+00> : vector<16x16xf32>
    %216 = tpu.matmul %214, %215, %cst_76 {dimension_numbers = #tpu.dot_dimension_numbers<[1], [0], [0], [1], [0, 0, 1, 1], [], []>} : vector<16x32xf32>, vector<32x16xf32>, vector<16x16xf32> -> vector<16x16xf32>
    %c0_77 = arith.constant 0 : index
    %c0_78 = arith.constant 0 : index
    %217 = vector.load %arg11[%c0_77, %c0_78] : memref<1x16xf32, #tpu.memory_space<vmem>>, vector<1x16xf32>
    %218 = vector.broadcast %217 : vector<1x16xf32> to vector<16x16xf32>
    %219 = arith.addf %216, %218 : vector<16x16xf32>
    %c0_79 = arith.constant 0 : index
    %c0_80 = arith.constant 0 : index
    %220 = vector.load %arg22[%c0_79, %c0_80] : memref<16x16xf32, #tpu.memory_space<vmem>>, vector<16x16xf32>
    tpu.vector_store %arg22[%c0_79, %c0_80], %219 {strides = array<i32>} : memref<16x16xf32, #tpu.memory_space<vmem>>, vector<16x16xf32>,
    %c0_i32_81 = arith.constant 0 : i32
    %c2_i32_82 = arith.constant 2 : i32
    %221 = arith.muli %c0_i32_81, %c2_i32_82 : i32
    %222 = tpu.assume_multiple %221, 2 : i32
    %223 = tpu.concatenate %8, %7 in 1 : vector<2x8xf32>, vector<2x32xf32> -> vector<2x40xf32>
    %cst_83 = arith.constant dense<0.000000e+00> : vector<2x128xf32>
    %224 = tpu.matmul %223, %1, %cst_83 {dimension_numbers = #tpu.dot_dimension_numbers<[1], [0], [0], [1], [0, 0, 1, 1], [], []>} : vector<2x40xf32>, vector<40x128xf32>, vector<2x128xf32> -> vector<2x128xf32>
    %225 = arith.addf %224, %6 : vector<2x128xf32>
    %226 = arith.negf %225 : vector<2x128xf32>
    %227 = math.exp %226 : vector<2x128xf32>
    %cst_84 = arith.constant 1.000000e+00 : f32
    %228 = vector.broadcast %cst_84 : f32 to vector<2x128xf32>
    %229 = arith.addf %228, %227 : vector<2x128xf32>
    %230 = arith.divf %228, %229 : vector<2x128xf32>
    %231 = math.tanh %225 : vector<2x128xf32>
    %232 = vector.extract_strided_slice %230 {offsets = [0, 0], sizes = [2, 32], strides = [1, 1]} : vector<2x128xf32> to vector<2x32xf32>
    %233 = vector.extract_strided_slice %230 {offsets = [0, 32], sizes = [2, 32], strides = [1, 1]} : vector<2x128xf32> to vector<2x32xf32>
    %234 = vector.extract_strided_slice %231 {offsets = [0, 64], sizes = [2, 32], strides = [1, 1]} : vector<2x128xf32> to vector<2x32xf32>
    %235 = vector.extract_strided_slice %230 {offsets = [0, 96], sizes = [2, 32], strides = [1, 1]} : vector<2x128xf32> to vector<2x32xf32>
    %236 = arith.mulf %233, %7 : vector<2x32xf32>
    %237 = arith.mulf %232, %234 : vector<2x32xf32>
    %238 = arith.addf %236, %237 : vector<2x32xf32>
    %239 = math.tanh %238 : vector<2x32xf32>
    %240 = arith.mulf %235, %239 : vector<2x32xf32>
    %241 = arith.index_cast %222 : i32 to index
    %c0_85 = arith.constant 0 : index
    %242 = vector.load %arg22[%241, %c0_85] : memref<16x16xf32, #tpu.memory_space<vmem>>, vector<2x16xf32>
    %cst_86 = arith.constant dense<0.000000e+00> : vector<2x16xf32>
    %243 = tpu.matmul %240, %2, %cst_86 {dimension_numbers = #tpu.dot_dimension_numbers<[1], [0], [0], [1], [0, 0, 1, 1], [], []>} : vector<2x32xf32>, vector<32x16xf32>, vector<2x16xf32> -> vector<2x16xf32>
    %244 = arith.addf %242, %243 : vector<2x16xf32>
    %245 = vector.extract_strided_slice %244 {offsets = [0, 0], sizes = [2, 8], strides = [1, 1]} : vector<2x16xf32> to vector<2x8xf32>
    %246 = vector.extract_strided_slice %244 {offsets = [0, 8], sizes = [2, 8], strides = [1, 1]} : vector<2x16xf32> to vector<2x8xf32>
    %247 = arith.index_cast %222 : i32 to index
    %c0_87 = arith.constant 0 : index
    %248 = vector.load %arg1[%247, %c0_87] : memref<16x8xf32, #tpu.memory_space<vmem>>, vector<2x8xf32>
    %cst_88 = arith.constant 5.000000e-01 : f32
    %249 = vector.broadcast %cst_88 : f32 to vector<2x8xf32>
    %250 = arith.mulf %249, %246 : vector<2x8xf32>
    %251 = math.exp %250 : vector<2x8xf32>
    %252 = arith.mulf %248, %251 : vector<2x8xf32>
    %253 = arith.addf %252, %245 : vector<2x8xf32>
    %254 = arith.index_cast %222 : i32 to index
    %c0_89 = arith.constant 0 : index
    %255 = vector.load %arg19[%254, %c0_89] : memref<16x16xf32, #tpu.memory_space<vmem>>, vector<2x16xf32>
    tpu.vector_store %arg19[%254, %c0_89], %244 {strides = array<i32>} : memref<16x16xf32, #tpu.memory_space<vmem>>, vector<2x16xf32>,
    %256 = arith.index_cast %222 : i32 to index
    %c0_90 = arith.constant 0 : index
    %257 = vector.load %arg18[%256, %c0_90] : memref<16x8xf32, #tpu.memory_space<vmem>>, vector<2x8xf32>
    tpu.vector_store %arg18[%256, %c0_90], %253 {strides = array<i32>} : memref<16x8xf32, #tpu.memory_space<vmem>>, vector<2x8xf32>,
    %c1_i32_91 = arith.constant 1 : i32
    %c2_i32_92 = arith.constant 2 : i32
    %258 = arith.muli %c1_i32_91, %c2_i32_92 : i32
    %259 = tpu.assume_multiple %258, 2 : i32
    %260 = tpu.concatenate %253, %240 in 1 : vector<2x8xf32>, vector<2x32xf32> -> vector<2x40xf32>
    %cst_93 = arith.constant dense<0.000000e+00> : vector<2x128xf32>
    %261 = tpu.matmul %260, %1, %cst_93 {dimension_numbers = #tpu.dot_dimension_numbers<[1], [0], [0], [1], [0, 0, 1, 1], [], []>} : vector<2x40xf32>, vector<40x128xf32>, vector<2x128xf32> -> vector<2x128xf32>
    %262 = arith.addf %261, %6 : vector<2x128xf32>
    %263 = arith.negf %262 : vector<2x128xf32>
    %264 = math.exp %263 : vector<2x128xf32>
    %cst_94 = arith.constant 1.000000e+00 : f32
    %265 = vector.broadcast %cst_94 : f32 to vector<2x128xf32>
    %266 = arith.addf %265, %264 : vector<2x128xf32>
    %267 = arith.divf %265, %266 : vector<2x128xf32>
    %268 = math.tanh %262 : vector<2x128xf32>
    %269 = vector.extract_strided_slice %267 {offsets = [0, 0], sizes = [2, 32], strides = [1, 1]} : vector<2x128xf32> to vector<2x32xf32>
    %270 = vector.extract_strided_slice %267 {offsets = [0, 32], sizes = [2, 32], strides = [1, 1]} : vector<2x128xf32> to vector<2x32xf32>
    %271 = vector.extract_strided_slice %268 {offsets = [0, 64], sizes = [2, 32], strides = [1, 1]} : vector<2x128xf32> to vector<2x32xf32>
    %272 = vector.extract_strided_slice %267 {offsets = [0, 96], sizes = [2, 32], strides = [1, 1]} : vector<2x128xf32> to vector<2x32xf32>
    %273 = arith.mulf %270, %238 : vector<2x32xf32>
    %274 = arith.mulf %269, %271 : vector<2x32xf32>
    %275 = arith.addf %273, %274 : vector<2x32xf32>
    %276 = math.tanh %275 : vector<2x32xf32>
    %277 = arith.mulf %272, %276 : vector<2x32xf32>
    %278 = arith.index_cast %259 : i32 to index
    %c0_95 = arith.constant 0 : index
    %279 = vector.load %arg22[%278, %c0_95] : memref<16x16xf32, #tpu.memory_space<vmem>>, vector<2x16xf32>
    %cst_96 = arith.constant dense<0.000000e+00> : vector<2x16xf32>
    %280 = tpu.matmul %277, %2, %cst_96 {dimension_numbers = #tpu.dot_dimension_numbers<[1], [0], [0], [1], [0, 0, 1, 1], [], []>} : vector<2x32xf32>, vector<32x16xf32>, vector<2x16xf32> -> vector<2x16xf32>
    %281 = arith.addf %279, %280 : vector<2x16xf32>
    %282 = vector.extract_strided_slice %281 {offsets = [0, 0], sizes = [2, 8], strides = [1, 1]} : vector<2x16xf32> to vector<2x8xf32>
    %283 = vector.extract_strided_slice %281 {offsets = [0, 8], sizes = [2, 8], strides = [1, 1]} : vector<2x16xf32> to vector<2x8xf32>
    %284 = arith.index_cast %259 : i32 to index
    %c0_97 = arith.constant 0 : index
    %285 = vector.load %arg1[%284, %c0_97] : memref<16x8xf32, #tpu.memory_space<vmem>>, vector<2x8xf32>
    %cst_98 = arith.constant 5.000000e-01 : f32
    %286 = vector.broadcast %cst_98 : f32 to vector<2x8xf32>
    %287 = arith.mulf %286, %283 : vector<2x8xf32>
    %288 = math.exp %287 : vector<2x8xf32>
    %289 = arith.mulf %285, %288 : vector<2x8xf32>
    %290 = arith.addf %289, %282 : vector<2x8xf32>
    %291 = arith.index_cast %259 : i32 to index
    %c0_99 = arith.constant 0 : index
    %292 = vector.load %arg19[%291, %c0_99] : memref<16x16xf32, #tpu.memory_space<vmem>>, vector<2x16xf32>
    tpu.vector_store %arg19[%291, %c0_99], %281 {strides = array<i32>} : memref<16x16xf32, #tpu.memory_space<vmem>>, vector<2x16xf32>,
    %293 = arith.index_cast %259 : i32 to index
    %c0_100 = arith.constant 0 : index
    %294 = vector.load %arg18[%293, %c0_100] : memref<16x8xf32, #tpu.memory_space<vmem>>, vector<2x8xf32>
    tpu.vector_store %arg18[%293, %c0_100], %290 {strides = array<i32>} : memref<16x8xf32, #tpu.memory_space<vmem>>, vector<2x8xf32>,
    %c2_i32_101 = arith.constant 2 : i32
    %c2_i32_102 = arith.constant 2 : i32
    %295 = arith.muli %c2_i32_101, %c2_i32_102 : i32
    %296 = tpu.assume_multiple %295, 2 : i32
    %297 = tpu.concatenate %290, %277 in 1 : vector<2x8xf32>, vector<2x32xf32> -> vector<2x40xf32>
    %cst_103 = arith.constant dense<0.000000e+00> : vector<2x128xf32>
    %298 = tpu.matmul %297, %1, %cst_103 {dimension_numbers = #tpu.dot_dimension_numbers<[1], [0], [0], [1], [0, 0, 1, 1], [], []>} : vector<2x40xf32>, vector<40x128xf32>, vector<2x128xf32> -> vector<2x128xf32>
    %299 = arith.addf %298, %6 : vector<2x128xf32>
    %300 = arith.negf %299 : vector<2x128xf32>
    %301 = math.exp %300 : vector<2x128xf32>
    %cst_104 = arith.constant 1.000000e+00 : f32
    %302 = vector.broadcast %cst_104 : f32 to vector<2x128xf32>
    %303 = arith.addf %302, %301 : vector<2x128xf32>
    %304 = arith.divf %302, %303 : vector<2x128xf32>
    %305 = math.tanh %299 : vector<2x128xf32>
    %306 = vector.extract_strided_slice %304 {offsets = [0, 0], sizes = [2, 32], strides = [1, 1]} : vector<2x128xf32> to vector<2x32xf32>
    %307 = vector.extract_strided_slice %304 {offsets = [0, 32], sizes = [2, 32], strides = [1, 1]} : vector<2x128xf32> to vector<2x32xf32>
    %308 = vector.extract_strided_slice %305 {offsets = [0, 64], sizes = [2, 32], strides = [1, 1]} : vector<2x128xf32> to vector<2x32xf32>
    %309 = vector.extract_strided_slice %304 {offsets = [0, 96], sizes = [2, 32], strides = [1, 1]} : vector<2x128xf32> to vector<2x32xf32>
    %310 = arith.mulf %307, %275 : vector<2x32xf32>
    %311 = arith.mulf %306, %308 : vector<2x32xf32>
    %312 = arith.addf %310, %311 : vector<2x32xf32>
    %313 = math.tanh %312 : vector<2x32xf32>
    %314 = arith.mulf %309, %313 : vector<2x32xf32>
    %315 = arith.index_cast %296 : i32 to index
    %c0_105 = arith.constant 0 : index
    %316 = vector.load %arg22[%315, %c0_105] : memref<16x16xf32, #tpu.memory_space<vmem>>, vector<2x16xf32>
    %cst_106 = arith.constant dense<0.000000e+00> : vector<2x16xf32>
    %317 = tpu.matmul %314, %2, %cst_106 {dimension_numbers = #tpu.dot_dimension_numbers<[1], [0], [0], [1], [0, 0, 1, 1], [], []>} : vector<2x32xf32>, vector<32x16xf32>, vector<2x16xf32> -> vector<2x16xf32>
    %318 = arith.addf %316, %317 : vector<2x16xf32>
    %319 = vector.extract_strided_slice %318 {offsets = [0, 0], sizes = [2, 8], strides = [1, 1]} : vector<2x16xf32> to vector<2x8xf32>
    %320 = vector.extract_strided_slice %318 {offsets = [0, 8], sizes = [2, 8], strides = [1, 1]} : vector<2x16xf32> to vector<2x8xf32>
    %321 = arith.index_cast %296 : i32 to index
    %c0_107 = arith.constant 0 : index
    %322 = vector.load %arg1[%321, %c0_107] : memref<16x8xf32, #tpu.memory_space<vmem>>, vector<2x8xf32>
    %cst_108 = arith.constant 5.000000e-01 : f32
    %323 = vector.broadcast %cst_108 : f32 to vector<2x8xf32>
    %324 = arith.mulf %323, %320 : vector<2x8xf32>
    %325 = math.exp %324 : vector<2x8xf32>
    %326 = arith.mulf %322, %325 : vector<2x8xf32>
    %327 = arith.addf %326, %319 : vector<2x8xf32>
    %328 = arith.index_cast %296 : i32 to index
    %c0_109 = arith.constant 0 : index
    %329 = vector.load %arg19[%328, %c0_109] : memref<16x16xf32, #tpu.memory_space<vmem>>, vector<2x16xf32>
    tpu.vector_store %arg19[%328, %c0_109], %318 {strides = array<i32>} : memref<16x16xf32, #tpu.memory_space<vmem>>, vector<2x16xf32>,
    %330 = arith.index_cast %296 : i32 to index
    %c0_110 = arith.constant 0 : index
    %331 = vector.load %arg18[%330, %c0_110] : memref<16x8xf32, #tpu.memory_space<vmem>>, vector<2x8xf32>
    tpu.vector_store %arg18[%330, %c0_110], %327 {strides = array<i32>} : memref<16x8xf32, #tpu.memory_space<vmem>>, vector<2x8xf32>,
    %c3_i32_111 = arith.constant 3 : i32
    %c2_i32_112 = arith.constant 2 : i32
    %332 = arith.muli %c3_i32_111, %c2_i32_112 : i32
    %333 = tpu.assume_multiple %332, 2 : i32
    %334 = tpu.concatenate %327, %314 in 1 : vector<2x8xf32>, vector<2x32xf32> -> vector<2x40xf32>
    %cst_113 = arith.constant dense<0.000000e+00> : vector<2x128xf32>
    %335 = tpu.matmul %334, %1, %cst_113 {dimension_numbers = #tpu.dot_dimension_numbers<[1], [0], [0], [1], [0, 0, 1, 1], [], []>} : vector<2x40xf32>, vector<40x128xf32>, vector<2x128xf32> -> vector<2x128xf32>
    %336 = arith.addf %335, %6 : vector<2x128xf32>
    %337 = arith.negf %336 : vector<2x128xf32>
    %338 = math.exp %337 : vector<2x128xf32>
    %cst_114 = arith.constant 1.000000e+00 : f32
    %339 = vector.broadcast %cst_114 : f32 to vector<2x128xf32>
    %340 = arith.addf %339, %338 : vector<2x128xf32>
    %341 = arith.divf %339, %340 : vector<2x128xf32>
    %342 = math.tanh %336 : vector<2x128xf32>
    %343 = vector.extract_strided_slice %341 {offsets = [0, 0], sizes = [2, 32], strides = [1, 1]} : vector<2x128xf32> to vector<2x32xf32>
    %344 = vector.extract_strided_slice %341 {offsets = [0, 32], sizes = [2, 32], strides = [1, 1]} : vector<2x128xf32> to vector<2x32xf32>
    %345 = vector.extract_strided_slice %342 {offsets = [0, 64], sizes = [2, 32], strides = [1, 1]} : vector<2x128xf32> to vector<2x32xf32>
    %346 = vector.extract_strided_slice %341 {offsets = [0, 96], sizes = [2, 32], strides = [1, 1]} : vector<2x128xf32> to vector<2x32xf32>
    %347 = arith.mulf %344, %312 : vector<2x32xf32>
    %348 = arith.mulf %343, %345 : vector<2x32xf32>
    %349 = arith.addf %347, %348 : vector<2x32xf32>
    %350 = math.tanh %349 : vector<2x32xf32>
    %351 = arith.mulf %346, %350 : vector<2x32xf32>
    %352 = arith.index_cast %333 : i32 to index
    %c0_115 = arith.constant 0 : index
    %353 = vector.load %arg22[%352, %c0_115] : memref<16x16xf32, #tpu.memory_space<vmem>>, vector<2x16xf32>
    %cst_116 = arith.constant dense<0.000000e+00> : vector<2x16xf32>
    %354 = tpu.matmul %351, %2, %cst_116 {dimension_numbers = #tpu.dot_dimension_numbers<[1], [0], [0], [1], [0, 0, 1, 1], [], []>} : vector<2x32xf32>, vector<32x16xf32>, vector<2x16xf32> -> vector<2x16xf32>
    %355 = arith.addf %353, %354 : vector<2x16xf32>
    %356 = vector.extract_strided_slice %355 {offsets = [0, 0], sizes = [2, 8], strides = [1, 1]} : vector<2x16xf32> to vector<2x8xf32>
    %357 = vector.extract_strided_slice %355 {offsets = [0, 8], sizes = [2, 8], strides = [1, 1]} : vector<2x16xf32> to vector<2x8xf32>
    %358 = arith.index_cast %333 : i32 to index
    %c0_117 = arith.constant 0 : index
    %359 = vector.load %arg1[%358, %c0_117] : memref<16x8xf32, #tpu.memory_space<vmem>>, vector<2x8xf32>
    %cst_118 = arith.constant 5.000000e-01 : f32
    %360 = vector.broadcast %cst_118 : f32 to vector<2x8xf32>
    %361 = arith.mulf %360, %357 : vector<2x8xf32>
    %362 = math.exp %361 : vector<2x8xf32>
    %363 = arith.mulf %359, %362 : vector<2x8xf32>
    %364 = arith.addf %363, %356 : vector<2x8xf32>
    %365 = arith.index_cast %333 : i32 to index
    %c0_119 = arith.constant 0 : index
    %366 = vector.load %arg19[%365, %c0_119] : memref<16x16xf32, #tpu.memory_space<vmem>>, vector<2x16xf32>
    tpu.vector_store %arg19[%365, %c0_119], %355 {strides = array<i32>} : memref<16x16xf32, #tpu.memory_space<vmem>>, vector<2x16xf32>,
    %367 = arith.index_cast %333 : i32 to index
    %c0_120 = arith.constant 0 : index
    %368 = vector.load %arg18[%367, %c0_120] : memref<16x8xf32, #tpu.memory_space<vmem>>, vector<2x8xf32>
    tpu.vector_store %arg18[%367, %c0_120], %364 {strides = array<i32>} : memref<16x8xf32, #tpu.memory_space<vmem>>, vector<2x8xf32>,
    %c4_i32_121 = arith.constant 4 : i32
    %c2_i32_122 = arith.constant 2 : i32
    %369 = arith.muli %c4_i32_121, %c2_i32_122 : i32
    %370 = tpu.assume_multiple %369, 2 : i32
    %371 = tpu.concatenate %364, %351 in 1 : vector<2x8xf32>, vector<2x32xf32> -> vector<2x40xf32>
    %cst_123 = arith.constant dense<0.000000e+00> : vector<2x128xf32>
    %372 = tpu.matmul %371, %1, %cst_123 {dimension_numbers = #tpu.dot_dimension_numbers<[1], [0], [0], [1], [0, 0, 1, 1], [], []>} : vector<2x40xf32>, vector<40x128xf32>, vector<2x128xf32> -> vector<2x128xf32>
    %373 = arith.addf %372, %6 : vector<2x128xf32>
    %374 = arith.negf %373 : vector<2x128xf32>
    %375 = math.exp %374 : vector<2x128xf32>
    %cst_124 = arith.constant 1.000000e+00 : f32
    %376 = vector.broadcast %cst_124 : f32 to vector<2x128xf32>
    %377 = arith.addf %376, %375 : vector<2x128xf32>
    %378 = arith.divf %376, %377 : vector<2x128xf32>
    %379 = math.tanh %373 : vector<2x128xf32>
    %380 = vector.extract_strided_slice %378 {offsets = [0, 0], sizes = [2, 32], strides = [1, 1]} : vector<2x128xf32> to vector<2x32xf32>
    %381 = vector.extract_strided_slice %378 {offsets = [0, 32], sizes = [2, 32], strides = [1, 1]} : vector<2x128xf32> to vector<2x32xf32>
    %382 = vector.extract_strided_slice %379 {offsets = [0, 64], sizes = [2, 32], strides = [1, 1]} : vector<2x128xf32> to vector<2x32xf32>
    %383 = vector.extract_strided_slice %378 {offsets = [0, 96], sizes = [2, 32], strides = [1, 1]} : vector<2x128xf32> to vector<2x32xf32>
    %384 = arith.mulf %381, %349 : vector<2x32xf32>
    %385 = arith.mulf %380, %382 : vector<2x32xf32>
    %386 = arith.addf %384, %385 : vector<2x32xf32>
    %387 = math.tanh %386 : vector<2x32xf32>
    %388 = arith.mulf %383, %387 : vector<2x32xf32>
    %389 = arith.index_cast %370 : i32 to index
    %c0_125 = arith.constant 0 : index
    %390 = vector.load %arg22[%389, %c0_125] : memref<16x16xf32, #tpu.memory_space<vmem>>, vector<2x16xf32>
    %cst_126 = arith.constant dense<0.000000e+00> : vector<2x16xf32>
    %391 = tpu.matmul %388, %2, %cst_126 {dimension_numbers = #tpu.dot_dimension_numbers<[1], [0], [0], [1], [0, 0, 1, 1], [], []>} : vector<2x32xf32>, vector<32x16xf32>, vector<2x16xf32> -> vector<2x16xf32>
    %392 = arith.addf %390, %391 : vector<2x16xf32>
    %393 = vector.extract_strided_slice %392 {offsets = [0, 0], sizes = [2, 8], strides = [1, 1]} : vector<2x16xf32> to vector<2x8xf32>
    %394 = vector.extract_strided_slice %392 {offsets = [0, 8], sizes = [2, 8], strides = [1, 1]} : vector<2x16xf32> to vector<2x8xf32>
    %395 = arith.index_cast %370 : i32 to index
    %c0_127 = arith.constant 0 : index
    %396 = vector.load %arg1[%395, %c0_127] : memref<16x8xf32, #tpu.memory_space<vmem>>, vector<2x8xf32>
    %cst_128 = arith.constant 5.000000e-01 : f32
    %397 = vector.broadcast %cst_128 : f32 to vector<2x8xf32>
    %398 = arith.mulf %397, %394 : vector<2x8xf32>
    %399 = math.exp %398 : vector<2x8xf32>
    %400 = arith.mulf %396, %399 : vector<2x8xf32>
    %401 = arith.addf %400, %393 : vector<2x8xf32>
    %402 = arith.index_cast %370 : i32 to index
    %c0_129 = arith.constant 0 : index
    %403 = vector.load %arg19[%402, %c0_129] : memref<16x16xf32, #tpu.memory_space<vmem>>, vector<2x16xf32>
    tpu.vector_store %arg19[%402, %c0_129], %392 {strides = array<i32>} : memref<16x16xf32, #tpu.memory_space<vmem>>, vector<2x16xf32>,
    %404 = arith.index_cast %370 : i32 to index
    %c0_130 = arith.constant 0 : index
    %405 = vector.load %arg18[%404, %c0_130] : memref<16x8xf32, #tpu.memory_space<vmem>>, vector<2x8xf32>
    tpu.vector_store %arg18[%404, %c0_130], %401 {strides = array<i32>} : memref<16x8xf32, #tpu.memory_space<vmem>>, vector<2x8xf32>,
    %c5_i32_131 = arith.constant 5 : i32
    %c2_i32_132 = arith.constant 2 : i32
    %406 = arith.muli %c5_i32_131, %c2_i32_132 : i32
    %407 = tpu.assume_multiple %406, 2 : i32
    %408 = tpu.concatenate %401, %388 in 1 : vector<2x8xf32>, vector<2x32xf32> -> vector<2x40xf32>
    %cst_133 = arith.constant dense<0.000000e+00> : vector<2x128xf32>
    %409 = tpu.matmul %408, %1, %cst_133 {dimension_numbers = #tpu.dot_dimension_numbers<[1], [0], [0], [1], [0, 0, 1, 1], [], []>} : vector<2x40xf32>, vector<40x128xf32>, vector<2x128xf32> -> vector<2x128xf32>
    %410 = arith.addf %409, %6 : vector<2x128xf32>
    %411 = arith.negf %410 : vector<2x128xf32>
    %412 = math.exp %411 : vector<2x128xf32>
    %cst_134 = arith.constant 1.000000e+00 : f32
    %413 = vector.broadcast %cst_134 : f32 to vector<2x128xf32>
    %414 = arith.addf %413, %412 : vector<2x128xf32>
    %415 = arith.divf %413, %414 : vector<2x128xf32>
    %416 = math.tanh %410 : vector<2x128xf32>
    %417 = vector.extract_strided_slice %415 {offsets = [0, 0], sizes = [2, 32], strides = [1, 1]} : vector<2x128xf32> to vector<2x32xf32>
    %418 = vector.extract_strided_slice %415 {offsets = [0, 32], sizes = [2, 32], strides = [1, 1]} : vector<2x128xf32> to vector<2x32xf32>
    %419 = vector.extract_strided_slice %416 {offsets = [0, 64], sizes = [2, 32], strides = [1, 1]} : vector<2x128xf32> to vector<2x32xf32>
    %420 = vector.extract_strided_slice %415 {offsets = [0, 96], sizes = [2, 32], strides = [1, 1]} : vector<2x128xf32> to vector<2x32xf32>
    %421 = arith.mulf %418, %386 : vector<2x32xf32>
    %422 = arith.mulf %417, %419 : vector<2x32xf32>
    %423 = arith.addf %421, %422 : vector<2x32xf32>
    %424 = math.tanh %423 : vector<2x32xf32>
    %425 = arith.mulf %420, %424 : vector<2x32xf32>
    %426 = arith.index_cast %407 : i32 to index
    %c0_135 = arith.constant 0 : index
    %427 = vector.load %arg22[%426, %c0_135] : memref<16x16xf32, #tpu.memory_space<vmem>>, vector<2x16xf32>
    %cst_136 = arith.constant dense<0.000000e+00> : vector<2x16xf32>
    %428 = tpu.matmul %425, %2, %cst_136 {dimension_numbers = #tpu.dot_dimension_numbers<[1], [0], [0], [1], [0, 0, 1, 1], [], []>} : vector<2x32xf32>, vector<32x16xf32>, vector<2x16xf32> -> vector<2x16xf32>
    %429 = arith.addf %427, %428 : vector<2x16xf32>
    %430 = vector.extract_strided_slice %429 {offsets = [0, 0], sizes = [2, 8], strides = [1, 1]} : vector<2x16xf32> to vector<2x8xf32>
    %431 = vector.extract_strided_slice %429 {offsets = [0, 8], sizes = [2, 8], strides = [1, 1]} : vector<2x16xf32> to vector<2x8xf32>
    %432 = arith.index_cast %407 : i32 to index
    %c0_137 = arith.constant 0 : index
    %433 = vector.load %arg1[%432, %c0_137] : memref<16x8xf32, #tpu.memory_space<vmem>>, vector<2x8xf32>
    %cst_138 = arith.constant 5.000000e-01 : f32
    %434 = vector.broadcast %cst_138 : f32 to vector<2x8xf32>
    %435 = arith.mulf %434, %431 : vector<2x8xf32>
    %436 = math.exp %435 : vector<2x8xf32>
    %437 = arith.mulf %433, %436 : vector<2x8xf32>
    %438 = arith.addf %437, %430 : vector<2x8xf32>
    %439 = arith.index_cast %407 : i32 to index
    %c0_139 = arith.constant 0 : index
    %440 = vector.load %arg19[%439, %c0_139] : memref<16x16xf32, #tpu.memory_space<vmem>>, vector<2x16xf32>
    tpu.vector_store %arg19[%439, %c0_139], %429 {strides = array<i32>} : memref<16x16xf32, #tpu.memory_space<vmem>>, vector<2x16xf32>,
    %441 = arith.index_cast %407 : i32 to index
    %c0_140 = arith.constant 0 : index
    %442 = vector.load %arg18[%441, %c0_140] : memref<16x8xf32, #tpu.memory_space<vmem>>, vector<2x8xf32>
    tpu.vector_store %arg18[%441, %c0_140], %438 {strides = array<i32>} : memref<16x8xf32, #tpu.memory_space<vmem>>, vector<2x8xf32>,
    %c6_i32_141 = arith.constant 6 : i32
    %c2_i32_142 = arith.constant 2 : i32
    %443 = arith.muli %c6_i32_141, %c2_i32_142 : i32
    %444 = tpu.assume_multiple %443, 2 : i32
    %445 = tpu.concatenate %438, %425 in 1 : vector<2x8xf32>, vector<2x32xf32> -> vector<2x40xf32>
    %cst_143 = arith.constant dense<0.000000e+00> : vector<2x128xf32>
    %446 = tpu.matmul %445, %1, %cst_143 {dimension_numbers = #tpu.dot_dimension_numbers<[1], [0], [0], [1], [0, 0, 1, 1], [], []>} : vector<2x40xf32>, vector<40x128xf32>, vector<2x128xf32> -> vector<2x128xf32>
    %447 = arith.addf %446, %6 : vector<2x128xf32>
    %448 = arith.negf %447 : vector<2x128xf32>
    %449 = math.exp %448 : vector<2x128xf32>
    %cst_144 = arith.constant 1.000000e+00 : f32
    %450 = vector.broadcast %cst_144 : f32 to vector<2x128xf32>
    %451 = arith.addf %450, %449 : vector<2x128xf32>
    %452 = arith.divf %450, %451 : vector<2x128xf32>
    %453 = math.tanh %447 : vector<2x128xf32>
    %454 = vector.extract_strided_slice %452 {offsets = [0, 0], sizes = [2, 32], strides = [1, 1]} : vector<2x128xf32> to vector<2x32xf32>
    %455 = vector.extract_strided_slice %452 {offsets = [0, 32], sizes = [2, 32], strides = [1, 1]} : vector<2x128xf32> to vector<2x32xf32>
    %456 = vector.extract_strided_slice %453 {offsets = [0, 64], sizes = [2, 32], strides = [1, 1]} : vector<2x128xf32> to vector<2x32xf32>
    %457 = vector.extract_strided_slice %452 {offsets = [0, 96], sizes = [2, 32], strides = [1, 1]} : vector<2x128xf32> to vector<2x32xf32>
    %458 = arith.mulf %455, %423 : vector<2x32xf32>
    %459 = arith.mulf %454, %456 : vector<2x32xf32>
    %460 = arith.addf %458, %459 : vector<2x32xf32>
    %461 = math.tanh %460 : vector<2x32xf32>
    %462 = arith.mulf %457, %461 : vector<2x32xf32>
    %463 = arith.index_cast %444 : i32 to index
    %c0_145 = arith.constant 0 : index
    %464 = vector.load %arg22[%463, %c0_145] : memref<16x16xf32, #tpu.memory_space<vmem>>, vector<2x16xf32>
    %cst_146 = arith.constant dense<0.000000e+00> : vector<2x16xf32>
    %465 = tpu.matmul %462, %2, %cst_146 {dimension_numbers = #tpu.dot_dimension_numbers<[1], [0], [0], [1], [0, 0, 1, 1], [], []>} : vector<2x32xf32>, vector<32x16xf32>, vector<2x16xf32> -> vector<2x16xf32>
    %466 = arith.addf %464, %465 : vector<2x16xf32>
    %467 = vector.extract_strided_slice %466 {offsets = [0, 0], sizes = [2, 8], strides = [1, 1]} : vector<2x16xf32> to vector<2x8xf32>
    %468 = vector.extract_strided_slice %466 {offsets = [0, 8], sizes = [2, 8], strides = [1, 1]} : vector<2x16xf32> to vector<2x8xf32>
    %469 = arith.index_cast %444 : i32 to index
    %c0_147 = arith.constant 0 : index
    %470 = vector.load %arg1[%469, %c0_147] : memref<16x8xf32, #tpu.memory_space<vmem>>, vector<2x8xf32>
    %cst_148 = arith.constant 5.000000e-01 : f32
    %471 = vector.broadcast %cst_148 : f32 to vector<2x8xf32>
    %472 = arith.mulf %471, %468 : vector<2x8xf32>
    %473 = math.exp %472 : vector<2x8xf32>
    %474 = arith.mulf %470, %473 : vector<2x8xf32>
    %475 = arith.addf %474, %467 : vector<2x8xf32>
    %476 = arith.index_cast %444 : i32 to index
    %c0_149 = arith.constant 0 : index
    %477 = vector.load %arg19[%476, %c0_149] : memref<16x16xf32, #tpu.memory_space<vmem>>, vector<2x16xf32>
    tpu.vector_store %arg19[%476, %c0_149], %466 {strides = array<i32>} : memref<16x16xf32, #tpu.memory_space<vmem>>, vector<2x16xf32>,
    %478 = arith.index_cast %444 : i32 to index
    %c0_150 = arith.constant 0 : index
    %479 = vector.load %arg18[%478, %c0_150] : memref<16x8xf32, #tpu.memory_space<vmem>>, vector<2x8xf32>
    tpu.vector_store %arg18[%478, %c0_150], %475 {strides = array<i32>} : memref<16x8xf32, #tpu.memory_space<vmem>>, vector<2x8xf32>,
    %c7_i32_151 = arith.constant 7 : i32
    %c2_i32_152 = arith.constant 2 : i32
    %480 = arith.muli %c7_i32_151, %c2_i32_152 : i32
    %481 = tpu.assume_multiple %480, 2 : i32
    %482 = tpu.concatenate %475, %462 in 1 : vector<2x8xf32>, vector<2x32xf32> -> vector<2x40xf32>
    %cst_153 = arith.constant dense<0.000000e+00> : vector<2x128xf32>
    %483 = tpu.matmul %482, %1, %cst_153 {dimension_numbers = #tpu.dot_dimension_numbers<[1], [0], [0], [1], [0, 0, 1, 1], [], []>} : vector<2x40xf32>, vector<40x128xf32>, vector<2x128xf32> -> vector<2x128xf32>
    %484 = arith.addf %483, %6 : vector<2x128xf32>
    %485 = arith.negf %484 : vector<2x128xf32>
    %486 = math.exp %485 : vector<2x128xf32>
    %cst_154 = arith.constant 1.000000e+00 : f32
    %487 = vector.broadcast %cst_154 : f32 to vector<2x128xf32>
    %488 = arith.addf %487, %486 : vector<2x128xf32>
    %489 = arith.divf %487, %488 : vector<2x128xf32>
    %490 = math.tanh %484 : vector<2x128xf32>
    %491 = vector.extract_strided_slice %489 {offsets = [0, 0], sizes = [2, 32], strides = [1, 1]} : vector<2x128xf32> to vector<2x32xf32>
    %492 = vector.extract_strided_slice %489 {offsets = [0, 32], sizes = [2, 32], strides = [1, 1]} : vector<2x128xf32> to vector<2x32xf32>
    %493 = vector.extract_strided_slice %490 {offsets = [0, 64], sizes = [2, 32], strides = [1, 1]} : vector<2x128xf32> to vector<2x32xf32>
    %494 = vector.extract_strided_slice %489 {offsets = [0, 96], sizes = [2, 32], strides = [1, 1]} : vector<2x128xf32> to vector<2x32xf32>
    %495 = arith.mulf %492, %460 : vector<2x32xf32>
    %496 = arith.mulf %491, %493 : vector<2x32xf32>
    %497 = arith.addf %495, %496 : vector<2x32xf32>
    %498 = math.tanh %497 : vector<2x32xf32>
    %499 = arith.mulf %494, %498 : vector<2x32xf32>
    %500 = arith.index_cast %481 : i32 to index
    %c0_155 = arith.constant 0 : index
    %501 = vector.load %arg22[%500, %c0_155] : memref<16x16xf32, #tpu.memory_space<vmem>>, vector<2x16xf32>
    %cst_156 = arith.constant dense<0.000000e+00> : vector<2x16xf32>
    %502 = tpu.matmul %499, %2, %cst_156 {dimension_numbers = #tpu.dot_dimension_numbers<[1], [0], [0], [1], [0, 0, 1, 1], [], []>} : vector<2x32xf32>, vector<32x16xf32>, vector<2x16xf32> -> vector<2x16xf32>
    %503 = arith.addf %501, %502 : vector<2x16xf32>
    %504 = vector.extract_strided_slice %503 {offsets = [0, 0], sizes = [2, 8], strides = [1, 1]} : vector<2x16xf32> to vector<2x8xf32>
    %505 = vector.extract_strided_slice %503 {offsets = [0, 8], sizes = [2, 8], strides = [1, 1]} : vector<2x16xf32> to vector<2x8xf32>
    %506 = arith.index_cast %481 : i32 to index
    %c0_157 = arith.constant 0 : index
    %507 = vector.load %arg1[%506, %c0_157] : memref<16x8xf32, #tpu.memory_space<vmem>>, vector<2x8xf32>
    %cst_158 = arith.constant 5.000000e-01 : f32
    %508 = vector.broadcast %cst_158 : f32 to vector<2x8xf32>
    %509 = arith.mulf %508, %505 : vector<2x8xf32>
    %510 = math.exp %509 : vector<2x8xf32>
    %511 = arith.mulf %507, %510 : vector<2x8xf32>
    %512 = arith.addf %511, %504 : vector<2x8xf32>
    %513 = arith.index_cast %481 : i32 to index
    %c0_159 = arith.constant 0 : index
    %514 = vector.load %arg19[%513, %c0_159] : memref<16x16xf32, #tpu.memory_space<vmem>>, vector<2x16xf32>
    tpu.vector_store %arg19[%513, %c0_159], %503 {strides = array<i32>} : memref<16x16xf32, #tpu.memory_space<vmem>>, vector<2x16xf32>,
    %515 = arith.index_cast %481 : i32 to index
    %c0_160 = arith.constant 0 : index
    %516 = vector.load %arg18[%515, %c0_160] : memref<16x8xf32, #tpu.memory_space<vmem>>, vector<2x8xf32>
    tpu.vector_store %arg18[%515, %c0_160], %512 {strides = array<i32>} : memref<16x8xf32, #tpu.memory_space<vmem>>, vector<2x8xf32>,
    %c8_i32_161 = arith.constant 8 : i32
    %c0_162 = arith.constant 0 : index
    %c0_163 = arith.constant 0 : index
    %517 = vector.load %arg18[%c0_162, %c0_163] : memref<16x8xf32, #tpu.memory_space<vmem>>, vector<16x8xf32>
    %c0_164 = arith.constant 0 : index
    %c0_165 = arith.constant 0 : index
    %518 = vector.load %arg12[%c0_164, %c0_165] : memref<8x128xf32, #tpu.memory_space<vmem>>, vector<8x128xf32>
    %cst_166 = arith.constant dense<0.000000e+00> : vector<16x128xf32>
    %519 = tpu.matmul %517, %518, %cst_166 {dimension_numbers = #tpu.dot_dimension_numbers<[1], [0], [0], [1], [0, 0, 1, 1], [], []>} : vector<16x8xf32>, vector<8x128xf32>, vector<16x128xf32> -> vector<16x128xf32>
    %c0_167 = arith.constant 0 : index
    %c0_168 = arith.constant 0 : index
    %520 = vector.load %arg14[%c0_167, %c0_168] : memref<1x128xf32, #tpu.memory_space<vmem>>, vector<1x128xf32>
    %521 = vector.broadcast %520 : vector<1x128xf32> to vector<16x128xf32>
    %522 = arith.addf %519, %521 : vector<16x128xf32>
    %c0_169 = arith.constant 0 : index
    %c0_170 = arith.constant 0 : index
    %523 = vector.load %arg23[%c0_169, %c0_170] : memref<16x128xf32, #tpu.memory_space<vmem>>, vector<16x128xf32>
    tpu.vector_store %arg23[%c0_169, %c0_170], %522 {strides = array<i32>} : memref<16x128xf32, #tpu.memory_space<vmem>>, vector<16x128xf32>,
    %c0_i32_171 = arith.constant 0 : i32
    %c2_i32_172 = arith.constant 2 : i32
    %524 = arith.muli %c0_i32_171, %c2_i32_172 : i32
    %525 = tpu.assume_multiple %524, 2 : i32
    %526 = arith.index_cast %525 : i32 to index
    %c0_173 = arith.constant 0 : index
    %527 = vector.load %arg23[%526, %c0_173] : memref<16x128xf32, #tpu.memory_space<vmem>>, vector<2x128xf32>
    %cst_174 = arith.constant dense<0.000000e+00> : vector<2x128xf32>
    %528 = tpu.matmul %7, %3, %cst_174 {dimension_numbers = #tpu.dot_dimension_numbers<[1], [0], [0], [1], [0, 0, 1, 1], [], []>} : vector<2x32xf32>, vector<32x128xf32>, vector<2x128xf32> -> vector<2x128xf32>
    %529 = arith.addf %527, %528 : vector<2x128xf32>
    %530 = arith.negf %529 : vector<2x128xf32>
    %531 = math.exp %530 : vector<2x128xf32>
    %cst_175 = arith.constant 1.000000e+00 : f32
    %532 = vector.broadcast %cst_175 : f32 to vector<2x128xf32>
    %533 = arith.addf %532, %531 : vector<2x128xf32>
    %534 = arith.divf %532, %533 : vector<2x128xf32>
    %535 = math.tanh %529 : vector<2x128xf32>
    %536 = vector.extract_strided_slice %534 {offsets = [0, 0], sizes = [2, 32], strides = [1, 1]} : vector<2x128xf32> to vector<2x32xf32>
    %537 = vector.extract_strided_slice %534 {offsets = [0, 32], sizes = [2, 32], strides = [1, 1]} : vector<2x128xf32> to vector<2x32xf32>
    %538 = vector.extract_strided_slice %535 {offsets = [0, 64], sizes = [2, 32], strides = [1, 1]} : vector<2x128xf32> to vector<2x32xf32>
    %539 = vector.extract_strided_slice %534 {offsets = [0, 96], sizes = [2, 32], strides = [1, 1]} : vector<2x128xf32> to vector<2x32xf32>
    %540 = arith.mulf %537, %7 : vector<2x32xf32>
    %541 = arith.mulf %536, %538 : vector<2x32xf32>
    %542 = arith.addf %540, %541 : vector<2x32xf32>
    %543 = math.tanh %542 : vector<2x32xf32>
    %544 = arith.mulf %539, %543 : vector<2x32xf32>
    %545 = arith.index_cast %525 : i32 to index
    %c0_176 = arith.constant 0 : index
    %546 = vector.load %arg24[%545, %c0_176] : memref<16x32xf32, #tpu.memory_space<vmem>>, vector<2x32xf32>
    tpu.vector_store %arg24[%545, %c0_176], %544 {strides = array<i32>} : memref<16x32xf32, #tpu.memory_space<vmem>>, vector<2x32xf32>,
    %c1_i32_177 = arith.constant 1 : i32
    %c2_i32_178 = arith.constant 2 : i32
    %547 = arith.muli %c1_i32_177, %c2_i32_178 : i32
    %548 = tpu.assume_multiple %547, 2 : i32
    %549 = arith.index_cast %548 : i32 to index
    %c0_179 = arith.constant 0 : index
    %550 = vector.load %arg23[%549, %c0_179] : memref<16x128xf32, #tpu.memory_space<vmem>>, vector<2x128xf32>
    %cst_180 = arith.constant dense<0.000000e+00> : vector<2x128xf32>
    %551 = tpu.matmul %544, %3, %cst_180 {dimension_numbers = #tpu.dot_dimension_numbers<[1], [0], [0], [1], [0, 0, 1, 1], [], []>} : vector<2x32xf32>, vector<32x128xf32>, vector<2x128xf32> -> vector<2x128xf32>
    %552 = arith.addf %550, %551 : vector<2x128xf32>
    %553 = arith.negf %552 : vector<2x128xf32>
    %554 = math.exp %553 : vector<2x128xf32>
    %cst_181 = arith.constant 1.000000e+00 : f32
    %555 = vector.broadcast %cst_181 : f32 to vector<2x128xf32>
    %556 = arith.addf %555, %554 : vector<2x128xf32>
    %557 = arith.divf %555, %556 : vector<2x128xf32>
    %558 = math.tanh %552 : vector<2x128xf32>
    %559 = vector.extract_strided_slice %557 {offsets = [0, 0], sizes = [2, 32], strides = [1, 1]} : vector<2x128xf32> to vector<2x32xf32>
    %560 = vector.extract_strided_slice %557 {offsets = [0, 32], sizes = [2, 32], strides = [1, 1]} : vector<2x128xf32> to vector<2x32xf32>
    %561 = vector.extract_strided_slice %558 {offsets = [0, 64], sizes = [2, 32], strides = [1, 1]} : vector<2x128xf32> to vector<2x32xf32>
    %562 = vector.extract_strided_slice %557 {offsets = [0, 96], sizes = [2, 32], strides = [1, 1]} : vector<2x128xf32> to vector<2x32xf32>
    %563 = arith.mulf %560, %542 : vector<2x32xf32>
    %564 = arith.mulf %559, %561 : vector<2x32xf32>
    %565 = arith.addf %563, %564 : vector<2x32xf32>
    %566 = math.tanh %565 : vector<2x32xf32>
    %567 = arith.mulf %562, %566 : vector<2x32xf32>
    %568 = arith.index_cast %548 : i32 to index
    %c0_182 = arith.constant 0 : index
    %569 = vector.load %arg24[%568, %c0_182] : memref<16x32xf32, #tpu.memory_space<vmem>>, vector<2x32xf32>
    tpu.vector_store %arg24[%568, %c0_182], %567 {strides = array<i32>} : memref<16x32xf32, #tpu.memory_space<vmem>>, vector<2x32xf32>,
    %c2_i32_183 = arith.constant 2 : i32
    %c2_i32_184 = arith.constant 2 : i32
    %570 = arith.muli %c2_i32_183, %c2_i32_184 : i32
    %571 = tpu.assume_multiple %570, 2 : i32
    %572 = arith.index_cast %571 : i32 to index
    %c0_185 = arith.constant 0 : index
    %573 = vector.load %arg23[%572, %c0_185] : memref<16x128xf32, #tpu.memory_space<vmem>>, vector<2x128xf32>
    %cst_186 = arith.constant dense<0.000000e+00> : vector<2x128xf32>
    %574 = tpu.matmul %567, %3, %cst_186 {dimension_numbers = #tpu.dot_dimension_numbers<[1], [0], [0], [1], [0, 0, 1, 1], [], []>} : vector<2x32xf32>, vector<32x128xf32>, vector<2x128xf32> -> vector<2x128xf32>
    %575 = arith.addf %573, %574 : vector<2x128xf32>
    %576 = arith.negf %575 : vector<2x128xf32>
    %577 = math.exp %576 : vector<2x128xf32>
    %cst_187 = arith.constant 1.000000e+00 : f32
    %578 = vector.broadcast %cst_187 : f32 to vector<2x128xf32>
    %579 = arith.addf %578, %577 : vector<2x128xf32>
    %580 = arith.divf %578, %579 : vector<2x128xf32>
    %581 = math.tanh %575 : vector<2x128xf32>
    %582 = vector.extract_strided_slice %580 {offsets = [0, 0], sizes = [2, 32], strides = [1, 1]} : vector<2x128xf32> to vector<2x32xf32>
    %583 = vector.extract_strided_slice %580 {offsets = [0, 32], sizes = [2, 32], strides = [1, 1]} : vector<2x128xf32> to vector<2x32xf32>
    %584 = vector.extract_strided_slice %581 {offsets = [0, 64], sizes = [2, 32], strides = [1, 1]} : vector<2x128xf32> to vector<2x32xf32>
    %585 = vector.extract_strided_slice %580 {offsets = [0, 96], sizes = [2, 32], strides = [1, 1]} : vector<2x128xf32> to vector<2x32xf32>
    %586 = arith.mulf %583, %565 : vector<2x32xf32>
    %587 = arith.mulf %582, %584 : vector<2x32xf32>
    %588 = arith.addf %586, %587 : vector<2x32xf32>
    %589 = math.tanh %588 : vector<2x32xf32>
    %590 = arith.mulf %585, %589 : vector<2x32xf32>
    %591 = arith.index_cast %571 : i32 to index
    %c0_188 = arith.constant 0 : index
    %592 = vector.load %arg24[%591, %c0_188] : memref<16x32xf32, #tpu.memory_space<vmem>>, vector<2x32xf32>
    tpu.vector_store %arg24[%591, %c0_188], %590 {strides = array<i32>} : memref<16x32xf32, #tpu.memory_space<vmem>>, vector<2x32xf32>,
    %c3_i32_189 = arith.constant 3 : i32
    %c2_i32_190 = arith.constant 2 : i32
    %593 = arith.muli %c3_i32_189, %c2_i32_190 : i32
    %594 = tpu.assume_multiple %593, 2 : i32
    %595 = arith.index_cast %594 : i32 to index
    %c0_191 = arith.constant 0 : index
    %596 = vector.load %arg23[%595, %c0_191] : memref<16x128xf32, #tpu.memory_space<vmem>>, vector<2x128xf32>
    %cst_192 = arith.constant dense<0.000000e+00> : vector<2x128xf32>
    %597 = tpu.matmul %590, %3, %cst_192 {dimension_numbers = #tpu.dot_dimension_numbers<[1], [0], [0], [1], [0, 0, 1, 1], [], []>} : vector<2x32xf32>, vector<32x128xf32>, vector<2x128xf32> -> vector<2x128xf32>
    %598 = arith.addf %596, %597 : vector<2x128xf32>
    %599 = arith.negf %598 : vector<2x128xf32>
    %600 = math.exp %599 : vector<2x128xf32>
    %cst_193 = arith.constant 1.000000e+00 : f32
    %601 = vector.broadcast %cst_193 : f32 to vector<2x128xf32>
    %602 = arith.addf %601, %600 : vector<2x128xf32>
    %603 = arith.divf %601, %602 : vector<2x128xf32>
    %604 = math.tanh %598 : vector<2x128xf32>
    %605 = vector.extract_strided_slice %603 {offsets = [0, 0], sizes = [2, 32], strides = [1, 1]} : vector<2x128xf32> to vector<2x32xf32>
    %606 = vector.extract_strided_slice %603 {offsets = [0, 32], sizes = [2, 32], strides = [1, 1]} : vector<2x128xf32> to vector<2x32xf32>
    %607 = vector.extract_strided_slice %604 {offsets = [0, 64], sizes = [2, 32], strides = [1, 1]} : vector<2x128xf32> to vector<2x32xf32>
    %608 = vector.extract_strided_slice %603 {offsets = [0, 96], sizes = [2, 32], strides = [1, 1]} : vector<2x128xf32> to vector<2x32xf32>
    %609 = arith.mulf %606, %588 : vector<2x32xf32>
    %610 = arith.mulf %605, %607 : vector<2x32xf32>
    %611 = arith.addf %609, %610 : vector<2x32xf32>
    %612 = math.tanh %611 : vector<2x32xf32>
    %613 = arith.mulf %608, %612 : vector<2x32xf32>
    %614 = arith.index_cast %594 : i32 to index
    %c0_194 = arith.constant 0 : index
    %615 = vector.load %arg24[%614, %c0_194] : memref<16x32xf32, #tpu.memory_space<vmem>>, vector<2x32xf32>
    tpu.vector_store %arg24[%614, %c0_194], %613 {strides = array<i32>} : memref<16x32xf32, #tpu.memory_space<vmem>>, vector<2x32xf32>,
    %c4_i32_195 = arith.constant 4 : i32
    %c2_i32_196 = arith.constant 2 : i32
    %616 = arith.muli %c4_i32_195, %c2_i32_196 : i32
    %617 = tpu.assume_multiple %616, 2 : i32
    %618 = arith.index_cast %617 : i32 to index
    %c0_197 = arith.constant 0 : index
    %619 = vector.load %arg23[%618, %c0_197] : memref<16x128xf32, #tpu.memory_space<vmem>>, vector<2x128xf32>
    %cst_198 = arith.constant dense<0.000000e+00> : vector<2x128xf32>
    %620 = tpu.matmul %613, %3, %cst_198 {dimension_numbers = #tpu.dot_dimension_numbers<[1], [0], [0], [1], [0, 0, 1, 1], [], []>} : vector<2x32xf32>, vector<32x128xf32>, vector<2x128xf32> -> vector<2x128xf32>
    %621 = arith.addf %619, %620 : vector<2x128xf32>
    %622 = arith.negf %621 : vector<2x128xf32>
    %623 = math.exp %622 : vector<2x128xf32>
    %cst_199 = arith.constant 1.000000e+00 : f32
    %624 = vector.broadcast %cst_199 : f32 to vector<2x128xf32>
    %625 = arith.addf %624, %623 : vector<2x128xf32>
    %626 = arith.divf %624, %625 : vector<2x128xf32>
    %627 = math.tanh %621 : vector<2x128xf32>
    %628 = vector.extract_strided_slice %626 {offsets = [0, 0], sizes = [2, 32], strides = [1, 1]} : vector<2x128xf32> to vector<2x32xf32>
    %629 = vector.extract_strided_slice %626 {offsets = [0, 32], sizes = [2, 32], strides = [1, 1]} : vector<2x128xf32> to vector<2x32xf32>
    %630 = vector.extract_strided_slice %627 {offsets = [0, 64], sizes = [2, 32], strides = [1, 1]} : vector<2x128xf32> to vector<2x32xf32>
    %631 = vector.extract_strided_slice %626 {offsets = [0, 96], sizes = [2, 32], strides = [1, 1]} : vector<2x128xf32> to vector<2x32xf32>
    %632 = arith.mulf %629, %611 : vector<2x32xf32>
    %633 = arith.mulf %628, %630 : vector<2x32xf32>
    %634 = arith.addf %632, %633 : vector<2x32xf32>
    %635 = math.tanh %634 : vector<2x32xf32>
    %636 = arith.mulf %631, %635 : vector<2x32xf32>
    %637 = arith.index_cast %617 : i32 to index
    %c0_200 = arith.constant 0 : index
    %638 = vector.load %arg24[%637, %c0_200] : memref<16x32xf32, #tpu.memory_space<vmem>>, vector<2x32xf32>
    tpu.vector_store %arg24[%637, %c0_200], %636 {strides = array<i32>} : memref<16x32xf32, #tpu.memory_space<vmem>>, vector<2x32xf32>,
    %c5_i32_201 = arith.constant 5 : i32
    %c2_i32_202 = arith.constant 2 : i32
    %639 = arith.muli %c5_i32_201, %c2_i32_202 : i32
    %640 = tpu.assume_multiple %639, 2 : i32
    %641 = arith.index_cast %640 : i32 to index
    %c0_203 = arith.constant 0 : index
    %642 = vector.load %arg23[%641, %c0_203] : memref<16x128xf32, #tpu.memory_space<vmem>>, vector<2x128xf32>
    %cst_204 = arith.constant dense<0.000000e+00> : vector<2x128xf32>
    %643 = tpu.matmul %636, %3, %cst_204 {dimension_numbers = #tpu.dot_dimension_numbers<[1], [0], [0], [1], [0, 0, 1, 1], [], []>} : vector<2x32xf32>, vector<32x128xf32>, vector<2x128xf32> -> vector<2x128xf32>
    %644 = arith.addf %642, %643 : vector<2x128xf32>
    %645 = arith.negf %644 : vector<2x128xf32>
    %646 = math.exp %645 : vector<2x128xf32>
    %cst_205 = arith.constant 1.000000e+00 : f32
    %647 = vector.broadcast %cst_205 : f32 to vector<2x128xf32>
    %648 = arith.addf %647, %646 : vector<2x128xf32>
    %649 = arith.divf %647, %648 : vector<2x128xf32>
    %650 = math.tanh %644 : vector<2x128xf32>
    %651 = vector.extract_strided_slice %649 {offsets = [0, 0], sizes = [2, 32], strides = [1, 1]} : vector<2x128xf32> to vector<2x32xf32>
    %652 = vector.extract_strided_slice %649 {offsets = [0, 32], sizes = [2, 32], strides = [1, 1]} : vector<2x128xf32> to vector<2x32xf32>
    %653 = vector.extract_strided_slice %650 {offsets = [0, 64], sizes = [2, 32], strides = [1, 1]} : vector<2x128xf32> to vector<2x32xf32>
    %654 = vector.extract_strided_slice %649 {offsets = [0, 96], sizes = [2, 32], strides = [1, 1]} : vector<2x128xf32> to vector<2x32xf32>
    %655 = arith.mulf %652, %634 : vector<2x32xf32>
    %656 = arith.mulf %651, %653 : vector<2x32xf32>
    %657 = arith.addf %655, %656 : vector<2x32xf32>
    %658 = math.tanh %657 : vector<2x32xf32>
    %659 = arith.mulf %654, %658 : vector<2x32xf32>
    %660 = arith.index_cast %640 : i32 to index
    %c0_206 = arith.constant 0 : index
    %661 = vector.load %arg24[%660, %c0_206] : memref<16x32xf32, #tpu.memory_space<vmem>>, vector<2x32xf32>
    tpu.vector_store %arg24[%660, %c0_206], %659 {strides = array<i32>} : memref<16x32xf32, #tpu.memory_space<vmem>>, vector<2x32xf32>,
    %c6_i32_207 = arith.constant 6 : i32
    %c2_i32_208 = arith.constant 2 : i32
    %662 = arith.muli %c6_i32_207, %c2_i32_208 : i32
    %663 = tpu.assume_multiple %662, 2 : i32
    %664 = arith.index_cast %663 : i32 to index
    %c0_209 = arith.constant 0 : index
    %665 = vector.load %arg23[%664, %c0_209] : memref<16x128xf32, #tpu.memory_space<vmem>>, vector<2x128xf32>
    %cst_210 = arith.constant dense<0.000000e+00> : vector<2x128xf32>
    %666 = tpu.matmul %659, %3, %cst_210 {dimension_numbers = #tpu.dot_dimension_numbers<[1], [0], [0], [1], [0, 0, 1, 1], [], []>} : vector<2x32xf32>, vector<32x128xf32>, vector<2x128xf32> -> vector<2x128xf32>
    %667 = arith.addf %665, %666 : vector<2x128xf32>
    %668 = arith.negf %667 : vector<2x128xf32>
    %669 = math.exp %668 : vector<2x128xf32>
    %cst_211 = arith.constant 1.000000e+00 : f32
    %670 = vector.broadcast %cst_211 : f32 to vector<2x128xf32>
    %671 = arith.addf %670, %669 : vector<2x128xf32>
    %672 = arith.divf %670, %671 : vector<2x128xf32>
    %673 = math.tanh %667 : vector<2x128xf32>
    %674 = vector.extract_strided_slice %672 {offsets = [0, 0], sizes = [2, 32], strides = [1, 1]} : vector<2x128xf32> to vector<2x32xf32>
    %675 = vector.extract_strided_slice %672 {offsets = [0, 32], sizes = [2, 32], strides = [1, 1]} : vector<2x128xf32> to vector<2x32xf32>
    %676 = vector.extract_strided_slice %673 {offsets = [0, 64], sizes = [2, 32], strides = [1, 1]} : vector<2x128xf32> to vector<2x32xf32>
    %677 = vector.extract_strided_slice %672 {offsets = [0, 96], sizes = [2, 32], strides = [1, 1]} : vector<2x128xf32> to vector<2x32xf32>
    %678 = arith.mulf %675, %657 : vector<2x32xf32>
    %679 = arith.mulf %674, %676 : vector<2x32xf32>
    %680 = arith.addf %678, %679 : vector<2x32xf32>
    %681 = math.tanh %680 : vector<2x32xf32>
    %682 = arith.mulf %677, %681 : vector<2x32xf32>
    %683 = arith.index_cast %663 : i32 to index
    %c0_212 = arith.constant 0 : index
    %684 = vector.load %arg24[%683, %c0_212] : memref<16x32xf32, #tpu.memory_space<vmem>>, vector<2x32xf32>
    tpu.vector_store %arg24[%683, %c0_212], %682 {strides = array<i32>} : memref<16x32xf32, #tpu.memory_space<vmem>>, vector<2x32xf32>,
    %c7_i32_213 = arith.constant 7 : i32
    %c2_i32_214 = arith.constant 2 : i32
    %685 = arith.muli %c7_i32_213, %c2_i32_214 : i32
    %686 = tpu.assume_multiple %685, 2 : i32
    %687 = arith.index_cast %686 : i32 to index
    %c0_215 = arith.constant 0 : index
    %688 = vector.load %arg23[%687, %c0_215] : memref<16x128xf32, #tpu.memory_space<vmem>>, vector<2x128xf32>
    %cst_216 = arith.constant dense<0.000000e+00> : vector<2x128xf32>
    %689 = tpu.matmul %682, %3, %cst_216 {dimension_numbers = #tpu.dot_dimension_numbers<[1], [0], [0], [1], [0, 0, 1, 1], [], []>} : vector<2x32xf32>, vector<32x128xf32>, vector<2x128xf32> -> vector<2x128xf32>
    %690 = arith.addf %688, %689 : vector<2x128xf32>
    %691 = arith.negf %690 : vector<2x128xf32>
    %692 = math.exp %691 : vector<2x128xf32>
    %cst_217 = arith.constant 1.000000e+00 : f32
    %693 = vector.broadcast %cst_217 : f32 to vector<2x128xf32>
    %694 = arith.addf %693, %692 : vector<2x128xf32>
    %695 = arith.divf %693, %694 : vector<2x128xf32>
    %696 = math.tanh %690 : vector<2x128xf32>
    %697 = vector.extract_strided_slice %695 {offsets = [0, 0], sizes = [2, 32], strides = [1, 1]} : vector<2x128xf32> to vector<2x32xf32>
    %698 = vector.extract_strided_slice %695 {offsets = [0, 32], sizes = [2, 32], strides = [1, 1]} : vector<2x128xf32> to vector<2x32xf32>
    %699 = vector.extract_strided_slice %696 {offsets = [0, 64], sizes = [2, 32], strides = [1, 1]} : vector<2x128xf32> to vector<2x32xf32>
    %700 = vector.extract_strided_slice %695 {offsets = [0, 96], sizes = [2, 32], strides = [1, 1]} : vector<2x128xf32> to vector<2x32xf32>
    %701 = arith.mulf %698, %680 : vector<2x32xf32>
    %702 = arith.mulf %697, %699 : vector<2x32xf32>
    %703 = arith.addf %701, %702 : vector<2x32xf32>
    %704 = math.tanh %703 : vector<2x32xf32>
    %705 = arith.mulf %700, %704 : vector<2x32xf32>
    %706 = arith.index_cast %686 : i32 to index
    %c0_218 = arith.constant 0 : index
    %707 = vector.load %arg24[%706, %c0_218] : memref<16x32xf32, #tpu.memory_space<vmem>>, vector<2x32xf32>
    tpu.vector_store %arg24[%706, %c0_218], %705 {strides = array<i32>} : memref<16x32xf32, #tpu.memory_space<vmem>>, vector<2x32xf32>,
    %c8_i32_219 = arith.constant 8 : i32
    %c0_220 = arith.constant 0 : index
    %c0_221 = arith.constant 0 : index
    %708 = vector.load %arg24[%c0_220, %c0_221] : memref<16x32xf32, #tpu.memory_space<vmem>>, vector<16x32xf32>
    %c0_222 = arith.constant 0 : index
    %c0_223 = arith.constant 0 : index
    %709 = vector.load %arg15[%c0_222, %c0_223] : memref<32x16xf32, #tpu.memory_space<vmem>>, vector<32x16xf32>
    %cst_224 = arith.constant dense<0.000000e+00> : vector<16x16xf32>
    %710 = tpu.matmul %708, %709, %cst_224 {dimension_numbers = #tpu.dot_dimension_numbers<[1], [0], [0], [1], [0, 0, 1, 1], [], []>} : vector<16x32xf32>, vector<32x16xf32>, vector<16x16xf32> -> vector<16x16xf32>
    %c0_225 = arith.constant 0 : index
    %c0_226 = arith.constant 0 : index
    %711 = vector.load %arg16[%c0_225, %c0_226] : memref<1x16xf32, #tpu.memory_space<vmem>>, vector<1x16xf32>
    %712 = vector.broadcast %711 : vector<1x16xf32> to vector<16x16xf32>
    %713 = arith.addf %710, %712 : vector<16x16xf32>
    %714 = math.exp %713 : vector<16x16xf32>
    %c0_227 = arith.constant 0 : index
    %c0_228 = arith.constant 0 : index
    %715 = vector.load %arg17[%c0_227, %c0_228] : memref<16x16xf32, #tpu.memory_space<vmem>>, vector<16x16xf32>
    tpu.vector_store %arg17[%c0_227, %c0_228], %714 {strides = array<i32>} : memref<16x16xf32, #tpu.memory_space<vmem>>, vector<16x16xf32>,
    return
  }
}

</mosaic_0001>

<llo_original>
// kernel: rvae_forward.1
$region0: #{rvae_forward.1}
  #allocation0 [shape = 'u32[]', space=smem, size = 0x4, offset = 0x4, fixed_abs, tag = 'smem constant byte address 0x4 - core index']
  #allocation1 [shape = 'u32[144,128]{1,0:T(1,128)}', space=vmem, size = 0x12000, scoped, tag = 'internal scratch']
  #allocation2 [shape = 'f32[16,128]{1,0:T(8,128)}', space=vmem, size = 0x2000, scoped, tag = 'scratch operand']
  #allocation3 [shape = 'f32[16,32]{1,0:T(8,128)}', space=vmem, size = 0x2000, scoped, tag = 'scratch operand']
  #allocation4 [shape = 'f32[16,16]{1,0:T(8,128)}', space=vmem, size = 0x2000, scoped, tag = 'scratch operand']
  #allocation5 [shape = 'f32[16,128]{1,0:T(8,128)}', space=vmem, size = 0x2000, scoped, tag = 'scratch operand']
  #allocation6 [shape = 'f32[16,32]{1,0:T(8,128)}', space=vmem, size = 0x2000, scoped, tag = 'scratch operand']
  %s0 = inlined_call_operand.vmem [shape: f32[16,16], index: 0, kind: input, shape index: {}]
  %s1 = inlined_call_operand.vmem [shape: f32[16,8], index: 1, kind: input, shape index: {}]
  %s2 = inlined_call_operand.vmem [shape: f32[16,32], index: 2, kind: input, shape index: {}]
  %s3 = inlined_call_operand.vmem [shape: f32[1,32], index: 3, kind: input, shape index: {}]
  %s4 = inlined_call_operand.vmem [shape: f32[32,128], index: 4, kind: input, shape index: {}]
  %s5 = inlined_call_operand.vmem [shape: f32[32,128], index: 5, kind: input, shape index: {}]
  %s6 = inlined_call_operand.vmem [shape: f32[1,128], index: 6, kind: input, shape index: {}]
  %s7 = inlined_call_operand.vmem [shape: f32[40,128], index: 7, kind: input, shape index: {}]
  %s8 = inlined_call_operand.vmem [shape: f32[1,128], index: 8, kind: input, shape index: {}]
  %s9 = inlined_call_operand.vmem [shape: f32[32,16], index: 9, kind: input, shape index: {}]
  %s10 = inlined_call_operand.vmem [shape: f32[32,16], index: 10, kind: input, shape index: {}]
  %s11 = inlined_call_operand.vmem [shape: f32[1,16], index: 11, kind: input, shape index: {}]
  %s12 = inlined_call_operand.vmem [shape: f32[8,128], index: 12, kind: input, shape index: {}]
  %s13 = inlined_call_operand.vmem [shape: f32[32,128], index: 13, kind: input, shape index: {}]
  %s14 = inlined_call_operand.vmem [shape: f32[1,128], index: 14, kind: input, shape index: {}]
  %s15 = inlined_call_operand.vmem [shape: f32[32,16], index: 15, kind: input, shape index: {}]
  %s16 = inlined_call_operand.vmem [shape: f32[1,16], index: 16, kind: input, shape index: {}]
  %s17 = inlined_call_operand.hbm [shape: f32[16,16], index: 17, kind: output, shape index: {0}]
  %s18 = inlined_call_operand.hbm [shape: f32[16,8], index: 18, kind: output, shape index: {1}]
  %s19 = inlined_call_operand.vmem [shape: f32[16,16], index: 19, kind: output, shape index: {2}]
  %20 = xla_tuple %s17, %s18, %s19
  %s21 = sld [smem:[#allocation0]]
  $region94: #{rvae_forward.1} parent=0
    _
  %s23 = ssub.s32 1, %s21
  %s24 = scalar_select 0, %s23, %s21
  $region1: #{rvae_forward.1} parent=0
    #allocation7 [shape = 'u8[8192]{0}', space=vmem, size = 0x2000, scoped, tag = 'output window, operand 0, single buffered']
    #allocation8 [shape = 's32[1]{0}', space=sflag, size = 0x4, scoped, tag = 'scoped memory for rvae_forward.1']
    #allocation9 [shape = 'u8[8192]{0}', space=vmem, size = 0x2000, scoped, tag = 'output window, operand 1, single buffered']
    #allocation10 [shape = 's32[1]{0}', space=sflag, size = 0x4, scoped, tag = 'scoped memory for rvae_forward.1']
    %25 = vsyncpa [#allocation8], 0
    %26 = vsyncpa [#allocation10], 0
    // Predicated region
    $region2: #{rvae_forward.1} parent=1 // pred_check
      _
    $region3: #{rvae_forward.1} parent=1 // pred_check_branch
      %28 = sbr.rel (0) target = $region5
    $region4: #{rvae_forward.1} parent=1 // pred_region
      _
    $region5: #{rvae_forward.1} parent=1 // pred_fallthru
      _
    // Predicated region
    $region6: #{rvae_forward.1} parent=1 // pred_check
      _
    $region7: #{rvae_forward.1} parent=1 // pred_check_branch
      %30 = sbr.rel (0) target = $region9
    $region8: #{rvae_forward.1} parent=1 // pred_region
      _
    $region9: #{rvae_forward.1} parent=1 // pred_fallthru
      _
    // Predicated region
    $region10: #{rvae_forward.1} parent=1 // pred_check
      _
    $region11: #{rvae_forward.1} parent=1 // pred_check_branch
      %32 = sbr.rel (0) target = $region13
    $region12: #{rvae_forward.1} parent=1 // pred_region
      _
    $region13: #{rvae_forward.1} parent=1 // pred_fallthru
      _
    // Predicated region
    $region14: #{rvae_forward.1} parent=1 // pred_check
      _
    $region15: #{rvae_forward.1} parent=1 // pred_check_branch
      %34 = sbr.rel (0) target = $region17
    $region16: #{rvae_forward.1} parent=1 // pred_region
      _
    $region17: #{rvae_forward.1} parent=1 // pred_fallthru
      _
    // Predicated region
    $region18: #{rvae_forward.1} parent=1 // pred_check
      _
    $region19: #{rvae_forward.1} parent=1 // pred_check_branch
      %36 = sbr.rel (0) target = $region21
    $region20: #{rvae_forward.1} parent=1 // pred_region
      _
    $region21: #{rvae_forward.1} parent=1 // pred_fallthru
      _
    // Predicated region
    $region22: #{rvae_forward.1} parent=1 // pred_check
      _
    $region23: #{rvae_forward.1} parent=1 // pred_check_branch
      %38 = sbr.rel (0) target = $region25
    $region24: #{rvae_forward.1} parent=1 // pred_region
      _
    $region25: #{rvae_forward.1} parent=1 // pred_fallthru
      _
    // Predicated region
    $region26: #{rvae_forward.1} parent=1 // pred_check
      _
    $region27: #{rvae_forward.1} parent=1 // pred_check_branch
      %40 = sbr.rel (0) target = $region29
    $region28: #{rvae_forward.1} parent=1 // pred_region
      _
    $region29: #{rvae_forward.1} parent=1 // pred_fallthru
      _
    // Predicated region
    $region30: #{rvae_forward.1} parent=1 // pred_check
      _
    $region31: #{rvae_forward.1} parent=1 // pred_check_branch
      %42 = sbr.rel (0) target = $region33
    $region32: #{rvae_forward.1} parent=1 // pred_region
      _
    $region33: #{rvae_forward.1} parent=1 // pred_fallthru
      _
    // Predicated region
    $region34: #{rvae_forward.1} parent=1 // pred_check
      _
    $region35: #{rvae_forward.1} parent=1 // pred_check_branch
      %44 = sbr.rel (0) target = $region37
    $region36: #{rvae_forward.1} parent=1 // pred_region
      _
    $region37: #{rvae_forward.1} parent=1 // pred_fallthru
      _
    // Predicated region
    $region38: #{rvae_forward.1} parent=1 // pred_check
      _
    $region39: #{rvae_forward.1} parent=1 // pred_check_branch
      %46 = sbr.rel (0) target = $region41
    $region40: #{rvae_forward.1} parent=1 // pred_region
      _
    $region41: #{rvae_forward.1} parent=1 // pred_fallthru
      _
    // Predicated region
    $region42: #{rvae_forward.1} parent=1 // pred_check
      _
    $region43: #{rvae_forward.1} parent=1 // pred_check_branch
      %48 = sbr.rel (0) target = $region45
    $region44: #{rvae_forward.1} parent=1 // pred_region
      _
    $region45: #{rvae_forward.1} parent=1 // pred_fallthru
      _
    // Predicated region
    $region46: #{rvae_forward.1} parent=1 // pred_check
      _
    $region47: #{rvae_forward.1} parent=1 // pred_check_branch
      %50 = sbr.rel (0) target = $region49
    $region48: #{rvae_forward.1} parent=1 // pred_region
      _
    $region49: #{rvae_forward.1} parent=1 // pred_fallthru
      _
    // Predicated region
    $region50: #{rvae_forward.1} parent=1 // pred_check
      _
    $region51: #{rvae_forward.1} parent=1 // pred_check_branch
      %52 = sbr.rel (0) target = $region53
    $region52: #{rvae_forward.1} parent=1 // pred_region
      _
    $region53: #{rvae_forward.1} parent=1 // pred_fallthru
      _
    // Predicated region
    $region54: #{rvae_forward.1} parent=1 // pred_check
      _
    $region55: #{rvae_forward.1} parent=1 // pred_check_branch
      %54 = sbr.rel (0) target = $region57
    $region56: #{rvae_forward.1} parent=1 // pred_region
      _
    $region57: #{rvae_forward.1} parent=1 // pred_fallthru
      _
    // Predicated region
    $region58: #{rvae_forward.1} parent=1 // pred_check
      _
    $region59: #{rvae_forward.1} parent=1 // pred_check_branch
      %56 = sbr.rel (0) target = $region61
    $region60: #{rvae_forward.1} parent=1 // pred_region
      _
    $region61: #{rvae_forward.1} parent=1 // pred_fallthru
      _
    // Predicated region
    $region62: #{rvae_forward.1} parent=1 // pred_check
      _
    $region63: #{rvae_forward.1} parent=1 // pred_check_branch
      %58 = sbr.rel (0) target = $region65
    $region64: #{rvae_forward.1} parent=1 // pred_region
      _
    $region65: #{rvae_forward.1} parent=1 // pred_fallthru
      _
    // Predicated region
    $region66: #{rvae_forward.1} parent=1 // pred_check
      _
    $region67: #{rvae_forward.1} parent=1 // pred_check_branch
      %60 = sbr.rel (0) target = $region69
    $region68: #{rvae_forward.1} parent=1 // pred_region
      _
    $region69: #{rvae_forward.1} parent=1 // pred_fallthru
      _
    %v61 = vld [vmem:[%s5] sm:$0xff]
    %v62 = vld [vmem:[%s5 + $0x8] sm:$0xff]
    %v63 = vld [vmem:[%s5 + $0x10] sm:$0xff]
    %v64 = vld [vmem:[%s5 + $0x18] sm:$0xff]
    %v65 = vld [vmem:[%s7] sm:$0xff]
    %v66 = vld [vmem:[%s7 + $0x8] sm:$0xff]
    %v67 = vld [vmem:[%s7 + $0x10] sm:$0xff]
    %v68 = vld [vmem:[%s7 + $0x18] sm:$0xff]
    %v69 = vld [vmem:[%s7 + $0x20] sm:$0xff]
    %v70 = vld [vmem:[%s10] sm:$0xff]
    %v71 = vld [vmem:[%s10 + $0x8] sm:$0xff]
    %v72 = vld [vmem:[%s10 + $0x10] sm:$0xff]
    %v73 = vld [vmem:[%s10 + $0x18] sm:$0xff]
    %v74 = vld [vmem:[%s13] sm:$0xff]
    %v75 = vld [vmem:[%s13 + $0x8] sm:$0xff]
    %v76 = vld [vmem:[%s13 + $0x10] sm:$0xff]
    %v77 = vld [vmem:[%s13 + $0x18] sm:$0xff]
    %v78 = vld [vmem:[%s8] sm:$0x1]
    %v80 = vlaneseq
    %v81 = vshrl.u32 %v80, 7
    %v82 = vsub.s32 0, %v81
    %v83 = vrot.slane %v78, %v82
    %v85 = vld [vmem:[%s0] sm:$0xff]
    %v86 = vld [vmem:[%s0 + $0x8] sm:$0xff]
    %v87 = vld [vmem:[%s2] sm:$0xff]
    %v88 = vld [vmem:[%s2 + $0x8] sm:$0xff]
    %v89 = vld [vmem:[%s3] sm:$0x1]
    %v91 = vlaneseq
    %v92 = vshrl.u32 %v91, 7
    %v93 = vsub.s32 0, %v92
    %v94 = vrot.slane %v89, %v93
    %vm96 = vcmask 130048
    %v98 = vsel %vm96, %v85, 0
    %v101 = vsel %vm96, %v86, 0
    %103 = vmatprep.subr.mxu0 0.0
    %104 = vmatpush1.msra.mxu0 %v87
    %105 = vmatprep.subr.mxu0 0.0
    %106 = vmatpush1.msra.mxu0 %v88
    %107 = vmatprep.subr.mxu0 0.0
    %108 = vmatpush1.msra.mxu0 0.0
    %109 = vmatprep.subr.mxu0 0.0
    %110 = vmatpush1.msra.mxu0 0.0
    %111 = vmatprep.subr.mxu0 0.0
    %112 = vmatpush1.msra.mxu0 0.0
    %113 = vmatprep.subr.mxu0 0.0
    %114 = vmatpush1.msra.mxu0 0.0
    %115 = vmatprep.subr.mxu0 0.0
    %116 = vmatpush1.msra.mxu0 0.0
    %117 = vmatprep.subr.mxu0 0.0
    %118 = vmatpush1.msra.mxu0 0.0
    %119 = vmatprep.subr.mxu0 0.0
    %120 = vmatpush1.msra.mxu0 0.0
    %121 = vmatprep.subr.mxu0 0.0
    %122 = vmatpush1.msra.mxu0 0.0
    %123 = vmatprep.subr.mxu0 0.0
    %124 = vmatpush1.msra.mxu0 0.0
    %125 = vmatprep.subr.mxu0 0.0
    %126 = vmatpush1.msra.mxu0 0.0
    %127 = vmatprep.subr.mxu0 0.0
    %128 = vmatpush1.msra.mxu0 0.0
    %129 = vmatprep.subr.mxu0 0.0
    %130 = vmatpush1.msra.mxu0 0.0
    %131 = vmatprep.subr.mxu0 0.0
    %132 = vmatpush1.msra.mxu0 0.0
    %133 = vmatprep.subr.mxu0 0.0
    %134 = vmatpush1.msra.mxu0 0.0
    %135 = vmatprep.subr.mxu0 0.0
    %136 = vmatpush1.msra.mxu0 0.0
    %137 = vmatprep.subr.mxu0 0.0
    %138 = vmatpush1.msra.mxu0 0.0
    %139 = vmatprep.subr.mxu0 0.0
    %140 = vmatpush1.msra.mxu0 0.0
    %141 = vmatprep.subr.mxu0 0.0
    %142 = vmatpush1.msra.mxu0 0.0
    %143 = vmatprep.subr.mxu0 0.0
    %144 = vmatpush1.msra.mxu0 0.0
    %145 = vmatprep.subr.mxu0 0.0
    %146 = vmatpush1.msra.mxu0 0.0
    %147 = vmatprep.subr.mxu0 0.0
    %148 = vmatpush1.msra.mxu0 0.0
    %149 = vmatprep.subr.mxu0 0.0
    %150 = vmatpush1.msra.mxu0 0.0
    %151 = vmatprep.subr.mxu0 0.0
    %152 = vmatpush1.msra.mxu0 0.0
    %153 = vmatprep.subr.mxu0 0.0
    %154 = vmatpush1.msra.mxu0 0.0
    %155 = vmatprep.subr.mxu0 0.0
    %156 = vmatpush1.msra.mxu0 0.0
    %157 = vmatprep.subr.mxu0 0.0
    %158 = vmatpush1.msra.mxu0 0.0
    %159 = vmatprep.subr.mxu0 0.0
    %160 = vmatpush1.msra.mxu0 0.0
    %161 = vmatprep.subr.mxu0 0.0
    %162 = vmatpush1.msra.mxu0 0.0
    %163 = vmatprep.subr.mxu0 0.0
    %164 = vmatpush1.msra.mxu0 0.0
    %165 = vmatprep.subr.mxu0 0.0
    %166 = vmatpush1.msra.mxu0 0.0
    %167 = vmatprep.mubr.f32.mxu0 0.0
    %168 = vmatmul.mubr.f32.gmra.mrb[0].mxu0 %v98
    %v169 = vpop.f32.mrb[0].mxu0
    %v170 = vadd.f32 %v94, %v169
    %v171 = vpop.f32.mrb[0].mxu0
    %172 = vmatprep.mubr.f32.mxu0 0.0
    %173 = vmatmul.mubr.f32.gmra.mrb[0].mxu0 %v101
    %v174 = vpop.f32.mrb[0].mxu0
    %v175 = vadd.f32 %v94, %v174
    %v176 = vpop.f32.mrb[0].mxu0
    %177 = vdwg.mxu0
    %v178 = vtanh.pop %v170
    %v179 = vtanh.pop %v175
    %v180 = vld [vmem:[%s4] sm:$0xff]
    %v181 = vld [vmem:[%s4 + $0x8] sm:$0xff]
    %v182 = vld [vmem:[%s4 + $0x10] sm:$0xff]
    %v183 = vld [vmem:[%s4 + $0x18] sm:$0xff]
    %v184 = vld [vmem:[%s6] sm:$0x1]
    %v186 = vlaneseq
    %v187 = vshrl.u32 %v186, 7
    %v188 = vsub.s32 0, %v187
    %v189 = vrot.slane %v184, %v188
    %vm191 = vcmask 261120
    %v193 = vsel %vm191, %v178, 0
    %v196 = vsel %vm191, %v179, 0
    %198 = vmatprep.subr.mxu0 0.0
    %199 = vmatpush1.msra.mxu0 %v180
    %200 = vmatprep.subr.mxu0 0.0
    %201 = vmatpush1.msra.mxu0 %v181
    %202 = vmatprep.subr.mxu0 0.0
    %203 = vmatpush1.msra.mxu0 %v182
    %204 = vmatprep.subr.mxu0 0.0
    %205 = vmatpush1.msra.mxu0 %v183
    %206 = vmatprep.subr.mxu0 0.0
    %207 = vmatpush1.msra.mxu0 0.0
    %208 = vmatprep.subr.mxu0 0.0
    %209 = vmatpush1.msra.mxu0 0.0
    %210 = vmatprep.subr.mxu0 0.0
    %211 = vmatpush1.msra.mxu0 0.0
    %212 = vmatprep.subr.mxu0 0.0
    %213 = vmatpush1.msra.mxu0 0.0
    %214 = vmatprep.subr.mxu0 0.0
    %215 = vmatpush1.msra.mxu0 0.0
    %216 = vmatprep.subr.mxu0 0.0
    %217 = vmatpush1.msra.mxu0 0.0
    %218 = vmatprep.subr.mxu0 0.0
    %219 = vmatpush1.msra.mxu0 0.0
    %220 = vmatprep.subr.mxu0 0.0
    %221 = vmatpush1.msra.mxu0 0.0
    %222 = vmatprep.subr.mxu0 0.0
    %223 = vmatpush1.msra.mxu0 0.0
    %224 = vmatprep.subr.mxu0 0.0
    %225 = vmatpush1.msra.mxu0 0.0
    %226 = vmatprep.subr.mxu0 0.0
    %227 = vmatpush1.msra.mxu0 0.0
    %228 = vmatprep.subr.mxu0 0.0
    %229 = vmatpush1.msra.mxu0 0.0
    %230 = vmatprep.subr.mxu0 0.0
    %231 = vmatpush1.msra.mxu0 0.0
    %232 = vmatprep.subr.mxu0 0.0
    %233 = vmatpush1.msra.mxu0 0.0
    %234 = vmatprep.subr.mxu0 0.0
    %235 = vmatpush1.msra.mxu0 0.0
    %236 = vmatprep.subr.mxu0 0.0
    %237 = vmatpush1.msra.mxu0 0.0
    %238 = vmatprep.subr.mxu0 0.0
    %239 = vmatpush1.msra.mxu0 0.0
    %240 = vmatprep.subr.mxu0 0.0
    %241 = vmatpush1.msra.mxu0 0.0
    %242 = vmatprep.subr.mxu0 0.0
    %243 = vmatpush1.msra.mxu0 0.0
    %244 = vmatprep.subr.mxu0 0.0
    %245 = vmatpush1.msra.mxu0 0.0
    %246 = vmatprep.subr.mxu0 0.0
    %247 = vmatpush1.msra.mxu0 0.0
    %248 = vmatprep.subr.mxu0 0.0
    %249 = vmatpush1.msra.mxu0 0.0
    %250 = vmatprep.subr.mxu0 0.0
    %251 = vmatpush1.msra.mxu0 0.0
    %252 = vmatprep.subr.mxu0 0.0
    %253 = vmatpush1.msra.mxu0 0.0
    %254 = vmatprep.subr.mxu0 0.0
    %255 = vmatpush1.msra.mxu0 0.0
    %256 = vmatprep.subr.mxu0 0.0
    %257 = vmatpush1.msra.mxu0 0.0
    %258 = vmatprep.subr.mxu0 0.0
    %259 = vmatpush1.msra.mxu0 0.0
    %260 = vmatprep.subr.mxu0 0.0
    %261 = vmatpush1.msra.mxu0 0.0
    %262 = vmatprep.mubr.f32.mxu0 0.0
    %263 = vmatmul.mubr.f32.gmra.mrb[0].mxu0 %v193
    %v264 = vpop.f32.mrb[0].mxu0
    %v265 = vadd.f32 %v189, %v264
    %v266 = vpop.f32.mrb[0].mxu0
    %267 = vmatprep.mubr.f32.mxu0 0.0
    %268 = vmatmul.mubr.f32.gmra.mrb[0].mxu0 %v196
    %v269 = vpop.f32.mrb[0].mxu0
    %v270 = vadd.f32 %v189, %v269
    %v271 = vpop.f32.mrb[0].mxu0
    %272 = vdwg.mxu0
    %273 = vst [vmem:[#allocation2] sm:$0xff] %v265
    %274 = vst [vmem:[#allocation2 + $0x8] sm:$0xff] %v270
    %s275 = scalar_lea.vmem [#allocation2], 14
    %v276 = vld [vmem:[%s275] sm:$0x3]
    %v278 = vsel %vm191, 0.0, 0
    %280 = vmatprep.subr.mxu0 0.0
    %281 = vmatpush1.msra.mxu0 %v61
    %282 = vmatprep.subr.mxu0 0.0
    %283 = vmatpush1.msra.mxu0 %v62
    %284 = vmatprep.subr.mxu0 0.0
    %285 = vmatpush1.msra.mxu0 %v63
    %286 = vmatprep.subr.mxu0 0.0
    %287 = vmatpush1.msra.mxu0 %v64
    %288 = vmatprep.subr.mxu0 0.0
    %289 = vmatpush1.msra.mxu0 0.0
    %290 = vmatprep.subr.mxu0 0.0
    %291 = vmatpush1.msra.mxu0 0.0
    %292 = vmatprep.subr.mxu0 0.0
    %293 = vmatpush1.msra.mxu0 0.0
    %294 = vmatprep.subr.mxu0 0.0
    %295 = vmatpush1.msra.mxu0 0.0
    %296 = vmatprep.subr.mxu0 0.0
    %297 = vmatpush1.msra.mxu0 0.0
    %298 = vmatprep.subr.mxu0 0.0
    %299 = vmatpush1.msra.mxu0 0.0
    %300 = vmatprep.subr.mxu0 0.0
    %301 = vmatpush1.msra.mxu0 0.0
    %302 = vmatprep.subr.mxu0 0.0
    %303 = vmatpush1.msra.mxu0 0.0
    %304 = vmatprep.subr.mxu0 0.0
    %305 = vmatpush1.msra.mxu0 0.0
    %306 = vmatprep.subr.mxu0 0.0
    %307 = vmatpush1.msra.mxu0 0.0
    %308 = vmatprep.subr.mxu0 0.0
    %309 = vmatpush1.msra.mxu0 0.0
    %310 = vmatprep.subr.mxu0 0.0
    %311 = vmatpush1.msra.mxu0 0.0
    %312 = vmatprep.subr.mxu0 0.0
    %313 = vmatpush1.msra.mxu0 0.0
    %314 = vmatprep.subr.mxu0 0.0
    %315 = vmatpush1.msra.mxu0 0.0
    %316 = vmatprep.subr.mxu0 0.0
    %317 = vmatpush1.msra.mxu0 0.0
    %318 = vmatprep.subr.mxu0 0.0
    %319 = vmatpush1.msra.mxu0 0.0
    %320 = vmatprep.subr.mxu0 0.0
    %321 = vmatpush1.msra.mxu0 0.0
    %322 = vmatprep.subr.mxu0 0.0
    %323 = vmatpush1.msra.mxu0 0.0
    %324 = vmatprep.subr.mxu0 0.0
    %325 = vmatpush1.msra.mxu0 0.0
    %326 = vmatprep.subr.mxu0 0.0
    %327 = vmatpush1.msra.mxu0 0.0
    %328 = vmatprep.subr.mxu0 0.0
    %329 = vmatpush1.msra.mxu0 0.0
    %330 = vmatprep.subr.mxu0 0.0
    %331 = vmatpush1.msra.mxu0 0.0
    %332 = vmatprep.subr.mxu0 0.0
    %333 = vmatpush1.msra.mxu0 0.0
    %334 = vmatprep.subr.mxu0 0.0
    %335 = vmatpush1.msra.mxu0 0.0
    %336 = vmatprep.subr.mxu0 0.0
    %337 = vmatpush1.msra.mxu0 0.0
    %338 = vmatprep.subr.mxu0 0.0
    %339 = vmatpush1.msra.mxu0 0.0
    %340 = vmatprep.subr.mxu0 0.0
    %341 = vmatpush1.msra.mxu0 0.0
    %342 = vmatprep.subr.mxu0 0.0
    %343 = vmatpush1.msra.mxu0 0.0
    %344 = vmatprep.mubr.f32.mxu0 0.0
    %345 = vmatmul.mubr.f32.gmra.mrb[0].mxu0 %v278
    %v346 = vpop.f32.mrb[0].mxu0
    %v347 = vadd.f32 0.0, %v346
    %v348 = vpop.f32.mrb[0].mxu0
    %349 = vdwg.mxu0
    %v350 = vadd.f32 %v276, %v347
    %v351 = vxor.u32 %v350, 2147483648
    %v352 = vmul.f32 %v351, 1.442695
    %v353 = vpow.pop %v352
    %v354 = vadd.f32 %v353, 1.0
    %v355 = vrcp.pop %v354
    %v356 = vmul.f32 1.0, %v355
    %v357 = vtanh.pop %v350
    %v358 = vmul.f32 %v356, 0.0
    %360 = vrot.lane.b32.xlu0 %v357, 64
    %v361 = vpop.permute.xlu0 %360
    %v363 = vmul.f32 %v356, %v361
    %365 = vrot.lane.b32.xlu0 %v363, 32
    %v366 = vpop.permute.xlu0 %365
    %v368 = vadd.f32 %v358, %v366
    %v369 = vtanh.pop %v368
    %371 = vrot.lane.b32.xlu0 %v369, 64
    %v372 = vpop.permute.xlu0 %371
    %v374 = vmul.f32 %v356, %v372
    %376 = vrot.lane.b32.xlu0 %v374, 32
    %v377 = vpop.permute.xlu0 %376
    %s379 = scalar_lea.vmem [#allocation3], 14
    %vm380 = vcmask 254976
    %381 = vst.msk [vmem:[%s379] sm:$0x3] %vm380, %v377
    %s382 = scalar_lea.vmem [#allocation2], 12
    %v383 = vld [vmem:[%s382] sm:$0x3]
    %v384 = vsel %vm191, %v377, 0
    %386 = vmatprep.subr.mxu0 0.0
    %387 = vmatpush1.msra.mxu0 %v61
    %388 = vmatprep.subr.mxu0 0.0
    %389 = vmatpush1.msra.mxu0 %v62
    %390 = vmatprep.subr.mxu0 0.0
    %391 = vmatpush1.msra.mxu0 %v63
    %392 = vmatprep.subr.mxu0 0.0
    %393 = vmatpush1.msra.mxu0 %v64
    %394 = vmatprep.subr.mxu0 0.0
    %395 = vmatpush1.msra.mxu0 0.0
    %396 = vmatprep.subr.mxu0 0.0
    %397 = vmatpush1.msra.mxu0 0.0
    %398 = vmatprep.subr.mxu0 0.0
    %399 = vmatpush1.msra.mxu0 0.0
    %400 = vmatprep.subr.mxu0 0.0
    %401 = vmatpush1.msra.mxu0 0.0
    %402 = vmatprep.subr.mxu0 0.0
    %403 = vmatpush1.msra.mxu0 0.0
    %404 = vmatprep.subr.mxu0 0.0
    %405 = vmatpush1.msra.mxu0 0.0
    %406 = vmatprep.subr.mxu0 0.0
    %407 = vmatpush1.msra.mxu0 0.0
    %408 = vmatprep.subr.mxu0 0.0
    %409 = vmatpush1.msra.mxu0 0.0
    %410 = vmatprep.subr.mxu0 0.0
    %411 = vmatpush1.msra.mxu0 0.0
    %412 = vmatprep.subr.mxu0 0.0
    %413 = vmatpush1.msra.mxu0 0.0
    %414 = vmatprep.subr.mxu0 0.0
    %415 = vmatpush1.msra.mxu0 0.0
    %416 = vmatprep.subr.mxu0 0.0
    %417 = vmatpush1.msra.mxu0 0.0
    %418 = vmatprep.subr.mxu0 0.0
    %419 = vmatpush1.msra.mxu0 0.0
    %420 = vmatprep.subr.mxu0 0.0
    %421 = vmatpush1.msra.mxu0 0.0
    %422 = vmatprep.subr.mxu0 0.0
    %423 = vmatpush1.msra.mxu0 0.0
    %424 = vmatprep.subr.mxu0 0.0
    %425 = vmatpush1.msra.mxu0 0.0
    %426 = vmatprep.subr.mxu0 0.0
    %427 = vmatpush1.msra.mxu0 0.0
    %428 = vmatprep.subr.mxu0 0.0
    %429 = vmatpush1.msra.mxu0 0.0
    %430 = vmatprep.subr.mxu0 0.0
    %431 = vmatpush1.msra.mxu0 0.0
    %432 = vmatprep.subr.mxu0 0.0
    %433 = vmatpush1.msra.mxu0 0.0
    %434 = vmatprep.subr.mxu0 0.0
    %435 = vmatpush1.msra.mxu0 0.0
    %436 = vmatprep.subr.mxu0 0.0
    %437 = vmatpush1.msra.mxu0 0.0
    %438 = vmatprep.subr.mxu0 0.0
    %439 = vmatpush1.msra.mxu0 0.0
    %440 = vmatprep.subr.mxu0 0.0
    %441 = vmatpush1.msra.mxu0 0.0
    %442 = vmatprep.subr.mxu0 0.0
    %443 = vmatpush1.msra.mxu0 0.0
    %444 = vmatprep.subr.mxu0 0.0
    %445 = vmatpush1.msra.mxu0 0.0
    %446 = vmatprep.subr.mxu0 0.0
    %447 = vmatpush1.msra.mxu0 0.0
    %448 = vmatprep.subr.mxu0 0.0
    %449 = vmatpush1.msra.mxu0 0.0
    %450 = vmatprep.mubr.f32.mxu0 0.0
    %451 = vmatmul.mubr.f32.gmra.mrb[0].mxu0 %v384
    %v452 = vpop.f32.mrb[0].mxu0
    %v453 = vadd.f32 0.0, %v452
    %v454 = vpop.f32.mrb[0].mxu0
    %455 = vdwg.mxu0
    %v456 = vadd.f32 %v383, %v453
    %v457 = vxor.u32 %v456, 2147483648
    %v458 = vmul.f32 %v457, 1.442695
    %v459 = vpow.pop %v458
    %v460 = vadd.f32 %v459, 1.0
    %v461 = vrcp.pop %v460
    %v462 = vmul.f32 1.0, %v461
    %v463 = vtanh.pop %v456
    %v464 = vmul.f32 %v462, %v368
    %466 = vrot.lane.b32.xlu0 %v463, 64
    %v467 = vpop.permute.xlu0 %466
    %v469 = vmul.f32 %v462, %v467
    %471 = vrot.lane.b32.xlu0 %v469, 32
    %v472 = vpop.permute.xlu0 %471
    %v474 = vadd.f32 %v464, %v472
    %v475 = vtanh.pop %v474
    %477 = vrot.lane.b32.xlu0 %v475, 64
    %v478 = vpop.permute.xlu0 %477
    %v480 = vmul.f32 %v462, %v478
    %482 = vrot.lane.b32.xlu0 %v480, 32
    %v483 = vpop.permute.xlu0 %482
    %s485 = scalar_lea.vmem [#allocation3], 12
    %486 = vst.msk [vmem:[%s485] sm:$0x3] %vm380, %v483
    %s487 = scalar_lea.vmem [#allocation2], 10
    %v488 = vld [vmem:[%s487] sm:$0x3]
    %v489 = vsel %vm191, %v483, 0
    %491 = vmatprep.subr.mxu0 0.0
    %492 = vmatpush1.msra.mxu0 %v61
    %493 = vmatprep.subr.mxu0 0.0
    %494 = vmatpush1.msra.mxu0 %v62
    %495 = vmatprep.subr.mxu0 0.0
    %496 = vmatpush1.msra.mxu0 %v63
    %497 = vmatprep.subr.mxu0 0.0
    %498 = vmatpush1.msra.mxu0 %v64
    %499 = vmatprep.subr.mxu0 0.0
    %500 = vmatpush1.msra.mxu0 0.0
    %501 = vmatprep.subr.mxu0 0.0
    %502 = vmatpush1.msra.mxu0 0.0
    %503 = vmatprep.subr.mxu0 0.0
    %504 = vmatpush1.msra.mxu0 0.0
    %505 = vmatprep.subr.mxu0 0.0
    %506 = vmatpush1.msra.mxu0 0.0
    %507 = vmatprep.subr.mxu0 0.0
    %508 = vmatpush1.msra.mxu0 0.0
    %509 = vmatprep.subr.mxu0 0.0
    %510 = vmatpush1.msra.mxu0 0.0
    %511 = vmatprep.subr.mxu0 0.0
    %512 = vmatpush1.msra.mxu0 0.0
    %513 = vmatprep.subr.mxu0 0.0
    %514 = vmatpush1.msra.mxu0 0.0
    %515 = vmatprep.subr.mxu0 0.0
    %516 = vmatpush1.msra.mxu0 0.0
    %517 = vmatprep.subr.mxu0 0.0
    %518 = vmatpush1.msra.mxu0 0.0
    %519 = vmatprep.subr.mxu0 0.0
    %520 = vmatpush1.msra.mxu0 0.0
    %521 = vmatprep.subr.mxu0 0.0
    %522 = vmatpush1.msra.mxu0 0.0
    %523 = vmatprep.subr.mxu0 0.0
    %524 = vmatpush1.msra.mxu0 0.0
    %525 = vmatprep.subr.mxu0 0.0
    %526 = vmatpush1.msra.mxu0 0.0
    %527 = vmatprep.subr.mxu0 0.0
    %528 = vmatpush1.msra.mxu0 0.0
    %529 = vmatprep.subr.mxu0 0.0
    %530 = vmatpush1.msra.mxu0 0.0
    %531 = vmatprep.subr.mxu0 0.0
    %532 = vmatpush1.msra.mxu0 0.0
    %533 = vmatprep.subr.mxu0 0.0
    %534 = vmatpush1.msra.mxu0 0.0
    %535 = vmatprep.subr.mxu0 0.0
    %536 = vmatpush1.msra.mxu0 0.0
    %537 = vmatprep.subr.mxu0 0.0
    %538 = vmatpush1.msra.mxu0 0.0
    %539 = vmatprep.subr.mxu0 0.0
    %540 = vmatpush1.msra.mxu0 0.0
    %541 = vmatprep.subr.mxu0 0.0
    %542 = vmatpush1.msra.mxu0 0.0
    %543 = vmatprep.subr.mxu0 0.0
    %544 = vmatpush1.msra.mxu0 0.0
    %545 = vmatprep.subr.mxu0 0.0
    %546 = vmatpush1.msra.mxu0 0.0
    %547 = vmatprep.subr.mxu0 0.0
    %548 = vmatpush1.msra.mxu0 0.0
    %549 = vmatprep.subr.mxu0 0.0
    %550 = vmatpush1.msra.mxu0 0.0
    %551 = vmatprep.subr.mxu0 0.0
    %552 = vmatpush1.msra.mxu0 0.0
    %553 = vmatprep.subr.mxu0 0.0
    %554 = vmatpush1.msra.mxu0 0.0
    %555 = vmatprep.mubr.f32.mxu0 0.0
    %556 = vmatmul.mubr.f32.gmra.mrb[0].mxu0 %v489
    %v557 = vpop.f32.mrb[0].mxu0
    %v558 = vadd.f32 0.0, %v557
    %v559 = vpop.f32.mrb[0].mxu0
    %560 = vdwg.mxu0
    %v561 = vadd.f32 %v488, %v558
    %v562 = vxor.u32 %v561, 2147483648
    %v563 = vmul.f32 %v562, 1.442695
    %v564 = vpow.pop %v563
    %v565 = vadd.f32 %v564, 1.0
    %v566 = vrcp.pop %v565
    %v567 = vmul.f32 1.0, %v566
    %v568 = vtanh.pop %v561
    %v569 = vmul.f32 %v567, %v474
    %571 = vrot.lane.b32.xlu0 %v568, 64
    %v572 = vpop.permute.xlu0 %571
    %v574 = vmul.f32 %v567, %v572
    %576 = vrot.lane.b32.xlu0 %v574, 32
    %v577 = vpop.permute.xlu0 %576
    %v579 = vadd.f32 %v569, %v577
    %v580 = vtanh.pop %v579
    %582 = vrot.lane.b32.xlu0 %v580, 64
    %v583 = vpop.permute.xlu0 %582
    %v585 = vmul.f32 %v567, %v583
    %587 = vrot.lane.b32.xlu0 %v585, 32
    %v588 = vpop.permute.xlu0 %587
    %s590 = scalar_lea.vmem [#allocation3], 10
    %591 = vst.msk [vmem:[%s590] sm:$0x3] %vm380, %v588
    %s592 = scalar_lea.vmem [#allocation2], 8
    %v593 = vld [vmem:[%s592] sm:$0x3]
    %v594 = vsel %vm191, %v588, 0
    %596 = vmatprep.subr.mxu0 0.0
    %597 = vmatpush1.msra.mxu0 %v61
    %598 = vmatprep.subr.mxu0 0.0
    %599 = vmatpush1.msra.mxu0 %v62
    %600 = vmatprep.subr.mxu0 0.0
    %601 = vmatpush1.msra.mxu0 %v63
    %602 = vmatprep.subr.mxu0 0.0
    %603 = vmatpush1.msra.mxu0 %v64
    %604 = vmatprep.subr.mxu0 0.0
    %605 = vmatpush1.msra.mxu0 0.0
    %606 = vmatprep.subr.mxu0 0.0
    %607 = vmatpush1.msra.mxu0 0.0
    %608 = vmatprep.subr.mxu0 0.0
    %609 = vmatpush1.msra.mxu0 0.0
    %610 = vmatprep.subr.mxu0 0.0
    %611 = vmatpush1.msra.mxu0 0.0
    %612 = vmatprep.subr.mxu0 0.0
    %613 = vmatpush1.msra.mxu0 0.0
    %614 = vmatprep.subr.mxu0 0.0
    %615 = vmatpush1.msra.mxu0 0.0
    %616 = vmatprep.subr.mxu0 0.0
    %617 = vmatpush1.msra.mxu0 0.0
    %618 = vmatprep.subr.mxu0 0.0
    %619 = vmatpush1.msra.mxu0 0.0
    %620 = vmatprep.subr.mxu0 0.0
    %621 = vmatpush1.msra.mxu0 0.0
    %622 = vmatprep.subr.mxu0 0.0
    %623 = vmatpush1.msra.mxu0 0.0
    %624 = vmatprep.subr.mxu0 0.0
    %625 = vmatpush1.msra.mxu0 0.0
    %626 = vmatprep.subr.mxu0 0.0
    %627 = vmatpush1.msra.mxu0 0.0
    %628 = vmatprep.subr.mxu0 0.0
    %629 = vmatpush1.msra.mxu0 0.0
    %630 = vmatprep.subr.mxu0 0.0
    %631 = vmatpush1.msra.mxu0 0.0
    %632 = vmatprep.subr.mxu0 0.0
    %633 = vmatpush1.msra.mxu0 0.0
    %634 = vmatprep.subr.mxu0 0.0
    %635 = vmatpush1.msra.mxu0 0.0
    %636 = vmatprep.subr.mxu0 0.0
    %637 = vmatpush1.msra.mxu0 0.0
    %638 = vmatprep.subr.mxu0 0.0
    %639 = vmatpush1.msra.mxu0 0.0
    %640 = vmatprep.subr.mxu0 0.0
    %641 = vmatpush1.msra.mxu0 0.0
    %642 = vmatprep.subr.mxu0 0.0
    %643 = vmatpush1.msra.mxu0 0.0
    %644 = vmatprep.subr.mxu0 0.0
    %645 = vmatpush1.msra.mxu0 0.0
    %646 = vmatprep.subr.mxu0 0.0
    %647 = vmatpush1.msra.mxu0 0.0
    %648 = vmatprep.subr.mxu0 0.0
    %649 = vmatpush1.msra.mxu0 0.0
    %650 = vmatprep.subr.mxu0 0.0
    %651 = vmatpush1.msra.mxu0 0.0
    %652 = vmatprep.subr.mxu0 0.0
    %653 = vmatpush1.msra.mxu0 0.0
    %654 = vmatprep.subr.mxu0 0.0
    %655 = vmatpush1.msra.mxu0 0.0
    %656 = vmatprep.subr.mxu0 0.0
    %657 = vmatpush1.msra.mxu0 0.0
    %658 = vmatprep.subr.mxu0 0.0
    %659 = vmatpush1.msra.mxu0 0.0
    %660 = vmatprep.mubr.f32.mxu0 0.0
    %661 = vmatmul.mubr.f32.gmra.mrb[0].mxu0 %v594
    %v662 = vpop.f32.mrb[0].mxu0
    %v663 = vadd.f32 0.0, %v662
    %v664 = vpop.f32.mrb[0].mxu0
    %665 = vdwg.mxu0
    %v666 = vadd.f32 %v593, %v663
    %v667 = vxor.u32 %v666, 2147483648
    %v668 = vmul.f32 %v667, 1.442695
    %v669 = vpow.pop %v668
    %v670 = vadd.f32 %v669, 1.0
    %v671 = vrcp.pop %v670
    %v672 = vmul.f32 1.0, %v671
    %v673 = vtanh.pop %v666
    %v674 = vmul.f32 %v672, %v579
    %676 = vrot.lane.b32.xlu0 %v673, 64
    %v677 = vpop.permute.xlu0 %676
    %v679 = vmul.f32 %v672, %v677
    %681 = vrot.lane.b32.xlu0 %v679, 32
    %v682 = vpop.permute.xlu0 %681
    %v684 = vadd.f32 %v674, %v682
    %v685 = vtanh.pop %v684
    %687 = vrot.lane.b32.xlu0 %v685, 64
    %v688 = vpop.permute.xlu0 %687
    %v690 = vmul.f32 %v672, %v688
    %692 = vrot.lane.b32.xlu0 %v690, 32
    %v693 = vpop.permute.xlu0 %692
    %s695 = scalar_lea.vmem [#allocation3], 8
    %696 = vst.msk [vmem:[%s695] sm:$0x3] %vm380, %v693
    %s697 = scalar_lea.vmem [#allocation2], 6
    %v698 = vld [vmem:[%s697] sm:$0x3]
    %v699 = vsel %vm191, %v693, 0
    %701 = vmatprep.subr.mxu0 0.0
    %702 = vmatpush1.msra.mxu0 %v61
    %703 = vmatprep.subr.mxu0 0.0
    %704 = vmatpush1.msra.mxu0 %v62
    %705 = vmatprep.subr.mxu0 0.0
    %706 = vmatpush1.msra.mxu0 %v63
    %707 = vmatprep.subr.mxu0 0.0
    %708 = vmatpush1.msra.mxu0 %v64
    %709 = vmatprep.subr.mxu0 0.0
    %710 = vmatpush1.msra.mxu0 0.0
    %711 = vmatprep.subr.mxu0 0.0
    %712 = vmatpush1.msra.mxu0 0.0
    %713 = vmatprep.subr.mxu0 0.0
    %714 = vmatpush1.msra.mxu0 0.0
    %715 = vmatprep.subr.mxu0 0.0
    %716 = vmatpush1.msra.mxu0 0.0
    %717 = vmatprep.subr.mxu0 0.0
    %718 = vmatpush1.msra.mxu0 0.0
    %719 = vmatprep.subr.mxu0 0.0
    %720 = vmatpush1.msra.mxu0 0.0
    %721 = vmatprep.subr.mxu0 0.0
    %722 = vmatpush1.msra.mxu0 0.0
    %723 = vmatprep.subr.mxu0 0.0
    %724 = vmatpush1.msra.mxu0 0.0
    %725 = vmatprep.subr.mxu0 0.0
    %726 = vmatpush1.msra.mxu0 0.0
    %727 = vmatprep.subr.mxu0 0.0
    %728 = vmatpush1.msra.mxu0 0.0
    %729 = vmatprep.subr.mxu0 0.0
    %730 = vmatpush1.msra.mxu0 0.0
    %731 = vmatprep.subr.mxu0 0.0
    %732 = vmatpush1.msra.mxu0 0.0
    %733 = vmatprep.subr.mxu0 0.0
    %734 = vmatpush1.msra.mxu0 0.0
    %735 = vmatprep.subr.mxu0 0.0
    %736 = vmatpush1.msra.mxu0 0.0
    %737 = vmatprep.subr.mxu0 0.0
    %738 = vmatpush1.msra.mxu0 0.0
    %739 = vmatprep.subr.mxu0 0.0
    %740 = vmatpush1.msra.mxu0 0.0
    %741 = vmatprep.subr.mxu0 0.0
    %742 = vmatpush1.msra.mxu0 0.0
    %743 = vmatprep.subr.mxu0 0.0
    %744 = vmatpush1.msra.mxu0 0.0
    %745 = vmatprep.subr.mxu0 0.0
    %746 = vmatpush1.msra.mxu0 0.0
    %747 = vmatprep.subr.mxu0 0.0
    %748 = vmatpush1.msra.mxu0 0.0
    %749 = vmatprep.subr.mxu0 0.0
    %750 = vmatpush1.msra.mxu0 0.0
    %751 = vmatprep.subr.mxu0 0.0
    %752 = vmatpush1.msra.mxu0 0.0
    %753 = vmatprep.subr.mxu0 0.0
    %754 = vmatpush1.msra.mxu0 0.0
    %755 = vmatprep.subr.mxu0 0.0
    %756 = vmatpush1.msra.mxu0 0.0
    %757 = vmatprep.subr.mxu0 0.0
    %758 = vmatpush1.msra.mxu0 0.0
    %759 = vmatprep.subr.mxu0 0.0
    %760 = vmatpush1.msra.mxu0 0.0
    %761 = vmatprep.subr.mxu0 0.0
    %762 = vmatpush1.msra.mxu0 0.0
    %763 = vmatprep.subr.mxu0 0.0
    %764 = vmatpush1.msra.mxu0 0.0
    %765 = vmatprep.mubr.f32.mxu0 0.0
    %766 = vmatmul.mubr.f32.gmra.mrb[0].mxu0 %v699
    %v767 = vpop.f32.mrb[0].mxu0
    %v768 = vadd.f32 0.0, %v767
    %v769 = vpop.f32.mrb[0].mxu0
    %770 = vdwg.mxu0
    %v771 = vadd.f32 %v698, %v768
    %v772 = vxor.u32 %v771, 2147483648
    %v773 = vmul.f32 %v772, 1.442695
    %v774 = vpow.pop %v773
    %v775 = vadd.f32 %v774, 1.0
    %v776 = vrcp.pop %v775
    %v777 = vmul.f32 1.0, %v776
    %v778 = vtanh.pop %v771
    %v779 = vmul.f32 %v777, %v684
    %781 = vrot.lane.b32.xlu0 %v778, 64
    %v782 = vpop.permute.xlu0 %781
    %v784 = vmul.f32 %v777, %v782
    %786 = vrot.lane.b32.xlu0 %v784, 32
    %v787 = vpop.permute.xlu0 %786
    %v789 = vadd.f32 %v779, %v787
    %v790 = vtanh.pop %v789
    %792 = vrot.lane.b32.xlu0 %v790, 64
    %v793 = vpop.permute.xlu0 %792
    %v795 = vmul.f32 %v777, %v793
    %797 = vrot.lane.b32.xlu0 %v795, 32
    %v798 = vpop.permute.xlu0 %797
    %s800 = scalar_lea.vmem [#allocation3], 6
    %801 = vst.msk [vmem:[%s800] sm:$0x3] %vm380, %v798
    %s802 = scalar_lea.vmem [#allocation2], 4
    %v803 = vld [vmem:[%s802] sm:$0x3]
    %v804 = vsel %vm191, %v798, 0
    %806 = vmatprep.subr.mxu0 0.0
    %807 = vmatpush1.msra.mxu0 %v61
    %808 = vmatprep.subr.mxu0 0.0
    %809 = vmatpush1.msra.mxu0 %v62
    %810 = vmatprep.subr.mxu0 0.0
    %811 = vmatpush1.msra.mxu0 %v63
    %812 = vmatprep.subr.mxu0 0.0
    %813 = vmatpush1.msra.mxu0 %v64
    %814 = vmatprep.subr.mxu0 0.0
    %815 = vmatpush1.msra.mxu0 0.0
    %816 = vmatprep.subr.mxu0 0.0
    %817 = vmatpush1.msra.mxu0 0.0
    %818 = vmatprep.subr.mxu0 0.0
    %819 = vmatpush1.msra.mxu0 0.0
    %820 = vmatprep.subr.mxu0 0.0
    %821 = vmatpush1.msra.mxu0 0.0
    %822 = vmatprep.subr.mxu0 0.0
    %823 = vmatpush1.msra.mxu0 0.0
    %824 = vmatprep.subr.mxu0 0.0
    %825 = vmatpush1.msra.mxu0 0.0
    %826 = vmatprep.subr.mxu0 0.0
    %827 = vmatpush1.msra.mxu0 0.0
    %828 = vmatprep.subr.mxu0 0.0
    %829 = vmatpush1.msra.mxu0 0.0
    %830 = vmatprep.subr.mxu0 0.0
    %831 = vmatpush1.msra.mxu0 0.0
    %832 = vmatprep.subr.mxu0 0.0
    %833 = vmatpush1.msra.mxu0 0.0
    %834 = vmatprep.subr.mxu0 0.0
    %835 = vmatpush1.msra.mxu0 0.0
    %836 = vmatprep.subr.mxu0 0.0
    %837 = vmatpush1.msra.mxu0 0.0
    %838 = vmatprep.subr.mxu0 0.0
    %839 = vmatpush1.msra.mxu0 0.0
    %840 = vmatprep.subr.mxu0 0.0
    %841 = vmatpush1.msra.mxu0 0.0
    %842 = vmatprep.subr.mxu0 0.0
    %843 = vmatpush1.msra.mxu0 0.0
    %844 = vmatprep.subr.mxu0 0.0
    %845 = vmatpush1.msra.mxu0 0.0
    %846 = vmatprep.subr.mxu0 0.0
    %847 = vmatpush1.msra.mxu0 0.0
    %848 = vmatprep.subr.mxu0 0.0
    %849 = vmatpush1.msra.mxu0 0.0
    %850 = vmatprep.subr.mxu0 0.0
    %851 = vmatpush1.msra.mxu0 0.0
    %852 = vmatprep.subr.mxu0 0.0
    %853 = vmatpush1.msra.mxu0 0.0
    %854 = vmatprep.subr.mxu0 0.0
    %855 = vmatpush1.msra.mxu0 0.0
    %856 = vmatprep.subr.mxu0 0.0
    %857 = vmatpush1.msra.mxu0 0.0
    %858 = vmatprep.subr.mxu0 0.0
    %859 = vmatpush1.msra.mxu0 0.0
    %860 = vmatprep.subr.mxu0 0.0
    %861 = vmatpush1.msra.mxu0 0.0
    %862 = vmatprep.subr.mxu0 0.0
    %863 = vmatpush1.msra.mxu0 0.0
    %864 = vmatprep.subr.mxu0 0.0
    %865 = vmatpush1.msra.mxu0 0.0
    %866 = vmatprep.subr.mxu0 0.0
    %867 = vmatpush1.msra.mxu0 0.0
    %868 = vmatprep.subr.mxu0 0.0
    %869 = vmatpush1.msra.mxu0 0.0
    %870 = vmatprep.mubr.f32.mxu0 0.0
    %871 = vmatmul.mubr.f32.gmra.mrb[0].mxu0 %v804
    %v872 = vpop.f32.mrb[0].mxu0
    %v873 = vadd.f32 0.0, %v872
    %v874 = vpop.f32.mrb[0].mxu0
    %875 = vdwg.mxu0
    %v876 = vadd.f32 %v803, %v873
    %v877 = vxor.u32 %v876, 2147483648
    %v878 = vmul.f32 %v877, 1.442695
    %v879 = vpow.pop %v878
    %v880 = vadd.f32 %v879, 1.0
    %v881 = vrcp.pop %v880
    %v882 = vmul.f32 1.0, %v881
    %v883 = vtanh.pop %v876
    %v884 = vmul.f32 %v882, %v789
    %886 = vrot.lane.b32.xlu0 %v883, 64
    %v887 = vpop.permute.xlu0 %886
    %v889 = vmul.f32 %v882, %v887
    %891 = vrot.lane.b32.xlu0 %v889, 32
    %v892 = vpop.permute.xlu0 %891
    %v894 = vadd.f32 %v884, %v892
    %v895 = vtanh.pop %v894
    %897 = vrot.lane.b32.xlu0 %v895, 64
    %v898 = vpop.permute.xlu0 %897
    %v900 = vmul.f32 %v882, %v898
    %902 = vrot.lane.b32.xlu0 %v900, 32
    %v903 = vpop.permute.xlu0 %902
    %s905 = scalar_lea.vmem [#allocation3], 4
    %906 = vst.msk [vmem:[%s905] sm:$0x3] %vm380, %v903
    %s907 = scalar_lea.vmem [#allocation2], 2
    %v908 = vld [vmem:[%s907] sm:$0x3]
    %v909 = vsel %vm191, %v903, 0
    %911 = vmatprep.subr.mxu0 0.0
    %912 = vmatpush1.msra.mxu0 %v61
    %913 = vmatprep.subr.mxu0 0.0
    %914 = vmatpush1.msra.mxu0 %v62
    %915 = vmatprep.subr.mxu0 0.0
    %916 = vmatpush1.msra.mxu0 %v63
    %917 = vmatprep.subr.mxu0 0.0
    %918 = vmatpush1.msra.mxu0 %v64
    %919 = vmatprep.subr.mxu0 0.0
    %920 = vmatpush1.msra.mxu0 0.0
    %921 = vmatprep.subr.mxu0 0.0
    %922 = vmatpush1.msra.mxu0 0.0
    %923 = vmatprep.subr.mxu0 0.0
    %924 = vmatpush1.msra.mxu0 0.0
    %925 = vmatprep.subr.mxu0 0.0
    %926 = vmatpush1.msra.mxu0 0.0
    %927 = vmatprep.subr.mxu0 0.0
    %928 = vmatpush1.msra.mxu0 0.0
    %929 = vmatprep.subr.mxu0 0.0
    %930 = vmatpush1.msra.mxu0 0.0
    %931 = vmatprep.subr.mxu0 0.0
    %932 = vmatpush1.msra.mxu0 0.0
    %933 = vmatprep.subr.mxu0 0.0
    %934 = vmatpush1.msra.mxu0 0.0
    %935 = vmatprep.subr.mxu0 0.0
    %936 = vmatpush1.msra.mxu0 0.0
    %937 = vmatprep.subr.mxu0 0.0
    %938 = vmatpush1.msra.mxu0 0.0
    %939 = vmatprep.subr.mxu0 0.0
    %940 = vmatpush1.msra.mxu0 0.0
    %941 = vmatprep.subr.mxu0 0.0
    %942 = vmatpush1.msra.mxu0 0.0
    %943 = vmatprep.subr.mxu0 0.0
    %944 = vmatpush1.msra.mxu0 0.0
    %945 = vmatprep.subr.mxu0 0.0
    %946 = vmatpush1.msra.mxu0 0.0
    %947 = vmatprep.subr.mxu0 0.0
    %948 = vmatpush1.msra.mxu0 0.0
    %949 = vmatprep.subr.mxu0 0.0
    %950 = vmatpush1.msra.mxu0 0.0
    %951 = vmatprep.subr.mxu0 0.0
    %952 = vmatpush1.msra.mxu0 0.0
    %953 = vmatprep.subr.mxu0 0.0
    %954 = vmatpush1.msra.mxu0 0.0
    %955 = vmatprep.subr.mxu0 0.0
    %956 = vmatpush1.msra.mxu0 0.0
    %957 = vmatprep.subr.mxu0 0.0
    %958 = vmatpush1.msra.mxu0 0.0
    %959 = vmatprep.subr.mxu0 0.0
    %960 = vmatpush1.msra.mxu0 0.0
    %961 = vmatprep.subr.mxu0 0.0
    %962 = vmatpush1.msra.mxu0 0.0
    %963 = vmatprep.subr.mxu0 0.0
    %964 = vmatpush1.msra.mxu0 0.0
    %965 = vmatprep.subr.mxu0 0.0
    %966 = vmatpush1.msra.mxu0 0.0
    %967 = vmatprep.subr.mxu0 0.0
    %968 = vmatpush1.msra.mxu0 0.0
    %969 = vmatprep.subr.mxu0 0.0
    %970 = vmatpush1.msra.mxu0 0.0
    %971 = vmatprep.subr.mxu0 0.0
    %972 = vmatpush1.msra.mxu0 0.0
    %973 = vmatprep.subr.mxu0 0.0
    %974 = vmatpush1.msra.mxu0 0.0
    %975 = vmatprep.mubr.f32.mxu0 0.0
    %976 = vmatmul.mubr.f32.gmra.mrb[0].mxu0 %v909
    %v977 = vpop.f32.mrb[0].mxu0
    %v978 = vadd.f32 0.0, %v977
    %v979 = vpop.f32.mrb[0].mxu0
    %980 = vdwg.mxu0
    %v981 = vadd.f32 %v908, %v978
    %v982 = vxor.u32 %v981, 2147483648
    %v983 = vmul.f32 %v982, 1.442695
    %v984 = vpow.pop %v983
    %v985 = vadd.f32 %v984, 1.0
    %v986 = vrcp.pop %v985
    %v987 = vmul.f32 1.0, %v986
    %v988 = vtanh.pop %v981
    %v989 = vmul.f32 %v987, %v894
    %991 = vrot.lane.b32.xlu0 %v988, 64
    %v992 = vpop.permute.xlu0 %991
    %v994 = vmul.f32 %v987, %v992
    %996 = vrot.lane.b32.xlu0 %v994, 32
    %v997 = vpop.permute.xlu0 %996
    %v999 = vadd.f32 %v989, %v997
    %v1000 = vtanh.pop %v999
    %1002 = vrot.lane.b32.xlu0 %v1000, 64
    %v1003 = vpop.permute.xlu0 %1002
    %v1005 = vmul.f32 %v987, %v1003
    %1007 = vrot.lane.b32.xlu0 %v1005, 32
    %v1008 = vpop.permute.xlu0 %1007
    %s1010 = scalar_lea.vmem [#allocation3], 2
    %1011 = vst.msk [vmem:[%s1010] sm:$0x3] %vm380, %v1008
    %v1012 = vld [vmem:[#allocation2] sm:$0x3]
    %v1013 = vsel %vm191, %v1008, 0
    %1015 = vmatprep.subr.mxu0 0.0
    %1016 = vmatpush1.msra.mxu0 %v61
    %1017 = vmatprep.subr.mxu0 0.0
    %1018 = vmatpush1.msra.mxu0 %v62
    %1019 = vmatprep.subr.mxu0 0.0
    %1020 = vmatpush1.msra.mxu0 %v63
    %1021 = vmatprep.subr.mxu0 0.0
    %1022 = vmatpush1.msra.mxu0 %v64
    %1023 = vmatprep.subr.mxu0 0.0
    %1024 = vmatpush1.msra.mxu0 0.0
    %1025 = vmatprep.subr.mxu0 0.0
    %1026 = vmatpush1.msra.mxu0 0.0
    %1027 = vmatprep.subr.mxu0 0.0
    %1028 = vmatpush1.msra.mxu0 0.0
    %1029 = vmatprep.subr.mxu0 0.0
    %1030 = vmatpush1.msra.mxu0 0.0
    %1031 = vmatprep.subr.mxu0 0.0
    %1032 = vmatpush1.msra.mxu0 0.0
    %1033 = vmatprep.subr.mxu0 0.0
    %1034 = vmatpush1.msra.mxu0 0.0
    %1035 = vmatprep.subr.mxu0 0.0
    %1036 = vmatpush1.msra.mxu0 0.0
    %1037 = vmatprep.subr.mxu0 0.0
    %1038 = vmatpush1.msra.mxu0 0.0
    %1039 = vmatprep.subr.mxu0 0.0
    %1040 = vmatpush1.msra.mxu0 0.0
    %1041 = vmatprep.subr.mxu0 0.0
    %1042 = vmatpush1.msra.mxu0 0.0
    %1043 = vmatprep.subr.mxu0 0.0
    %1044 = vmatpush1.msra.mxu0 0.0
    %1045 = vmatprep.subr.mxu0 0.0
    %1046 = vmatpush1.msra.mxu0 0.0
    %1047 = vmatprep.subr.mxu0 0.0
    %1048 = vmatpush1.msra.mxu0 0.0
    %1049 = vmatprep.subr.mxu0 0.0
    %1050 = vmatpush1.msra.mxu0 0.0
    %1051 = vmatprep.subr.mxu0 0.0
    %1052 = vmatpush1.msra.mxu0 0.0
    %1053 = vmatprep.subr.mxu0 0.0
    %1054 = vmatpush1.msra.mxu0 0.0
    %1055 = vmatprep.subr.mxu0 0.0
    %1056 = vmatpush1.msra.mxu0 0.0
    %1057 = vmatprep.subr.mxu0 0.0
    %1058 = vmatpush1.msra.mxu0 0.0
    %1059 = vmatprep.subr.mxu0 0.0
    %1060 = vmatpush1.msra.mxu0 0.0
    %1061 = vmatprep.subr.mxu0 0.0
    %1062 = vmatpush1.msra.mxu0 0.0
    %1063 = vmatprep.subr.mxu0 0.0
    %1064 = vmatpush1.msra.mxu0 0.0
    %1065 = vmatprep.subr.mxu0 0.0
    %1066 = vmatpush1.msra.mxu0 0.0
    %1067 = vmatprep.subr.mxu0 0.0
    %1068 = vmatpush1.msra.mxu0 0.0
    %1069 = vmatprep.subr.mxu0 0.0
    %1070 = vmatpush1.msra.mxu0 0.0
    %1071 = vmatprep.subr.mxu0 0.0
    %1072 = vmatpush1.msra.mxu0 0.0
    %1073 = vmatprep.subr.mxu0 0.0
    %1074 = vmatpush1.msra.mxu0 0.0
    %1075 = vmatprep.subr.mxu0 0.0
    %1076 = vmatpush1.msra.mxu0 0.0
    %1077 = vmatprep.subr.mxu0 0.0
    %1078 = vmatpush1.msra.mxu0 0.0
    %1079 = vmatprep.mubr.f32.mxu0 0.0
    %1080 = vmatmul.mubr.f32.gmra.mrb[0].mxu0 %v1013
    %v1081 = vpop.f32.mrb[0].mxu0
    %v1082 = vadd.f32 0.0, %v1081
    %v1083 = vpop.f32.mrb[0].mxu0
    %1084 = vdwg.mxu0
    %v1085 = vadd.f32 %v1012, %v1082
    %v1086 = vxor.u32 %v1085, 2147483648
    %v1087 = vmul.f32 %v1086, 1.442695
    %v1088 = vpow.pop %v1087
    %v1089 = vadd.f32 %v1088, 1.0
    %v1090 = vrcp.pop %v1089
    %v1091 = vmul.f32 1.0, %v1090
    %v1092 = vtanh.pop %v1085
    %v1093 = vmul.f32 %v1091, %v999
    %1095 = vrot.lane.b32.xlu0 %v1092, 64
    %v1096 = vpop.permute.xlu0 %1095
    %v1098 = vmul.f32 %v1091, %v1096
    %1100 = vrot.lane.b32.xlu0 %v1098, 32
    %v1101 = vpop.permute.xlu0 %1100
    %v1103 = vadd.f32 %v1093, %v1101
    %v1104 = vtanh.pop %v1103
    %1106 = vrot.lane.b32.xlu0 %v1104, 64
    %v1107 = vpop.permute.xlu0 %1106
    %v1109 = vmul.f32 %v1091, %v1107
    %1111 = vrot.lane.b32.xlu0 %v1109, 32
    %v1112 = vpop.permute.xlu0 %1111
    %1114 = vst.msk [vmem:[#allocation3] sm:$0x3] %vm380, %v1112
    %v1115 = vld [vmem:[#allocation3] sm:$0xff]
    %v1116 = vld [vmem:[#allocation3 + $0x8] sm:$0xff]
    %v1117 = vld [vmem:[%s9] sm:$0xff]
    %v1118 = vld [vmem:[%s9 + $0x8] sm:$0xff]
    %v1119 = vld [vmem:[%s9 + $0x10] sm:$0xff]
    %v1120 = vld [vmem:[%s9 + $0x18] sm:$0xff]
    %v1121 = vld [vmem:[%s11] sm:$0x1]
    %v1123 = vlaneseq
    %v1124 = vshrl.u32 %v1123, 7
    %v1125 = vsub.s32 0, %v1124
    %v1126 = vrot.slane %v1121, %v1125
    %v1129 = vsel %vm191, %v1115, 0
    %v1132 = vsel %vm191, %v1116, 0
    %1134 = vmatprep.subr.mxu0 0.0
    %1135 = vmatpush1.msra.mxu0 %v1117
    %1136 = vmatprep.subr.mxu0 0.0
    %1137 = vmatpush1.msra.mxu0 %v1118
    %1138 = vmatprep.subr.mxu0 0.0
    %1139 = vmatpush1.msra.mxu0 %v1119
    %1140 = vmatprep.subr.mxu0 0.0
    %1141 = vmatpush1.msra.mxu0 %v1120
    %1142 = vmatprep.subr.mxu0 0.0
    %1143 = vmatpush1.msra.mxu0 0.0
    %1144 = vmatprep.subr.mxu0 0.0
    %1145 = vmatpush1.msra.mxu0 0.0
    %1146 = vmatprep.subr.mxu0 0.0
    %1147 = vmatpush1.msra.mxu0 0.0
    %1148 = vmatprep.subr.mxu0 0.0
    %1149 = vmatpush1.msra.mxu0 0.0
    %1150 = vmatprep.subr.mxu0 0.0
    %1151 = vmatpush1.msra.mxu0 0.0
    %1152 = vmatprep.subr.mxu0 0.0
    %1153 = vmatpush1.msra.mxu0 0.0
    %1154 = vmatprep.subr.mxu0 0.0
    %1155 = vmatpush1.msra.mxu0 0.0
    %1156 = vmatprep.subr.mxu0 0.0
    %1157 = vmatpush1.msra.mxu0 0.0
    %1158 = vmatprep.subr.mxu0 0.0
    %1159 = vmatpush1.msra.mxu0 0.0
    %1160 = vmatprep.subr.mxu0 0.0
    %1161 = vmatpush1.msra.mxu0 0.0
    %1162 = vmatprep.subr.mxu0 0.0
    %1163 = vmatpush1.msra.mxu0 0.0
    %1164 = vmatprep.subr.mxu0 0.0
    %1165 = vmatpush1.msra.mxu0 0.0
    %1166 = vmatprep.subr.mxu0 0.0
    %1167 = vmatpush1.msra.mxu0 0.0
    %1168 = vmatprep.subr.mxu0 0.0
    %1169 = vmatpush1.msra.mxu0 0.0
    %1170 = vmatprep.subr.mxu0 0.0
    %1171 = vmatpush1.msra.mxu0 0.0
    %1172 = vmatprep.subr.mxu0 0.0
    %1173 = vmatpush1.msra.mxu0 0.0
    %1174 = vmatprep.subr.mxu0 0.0
    %1175 = vmatpush1.msra.mxu0 0.0
    %1176 = vmatprep.subr.mxu0 0.0
    %1177 = vmatpush1.msra.mxu0 0.0
    %1178 = vmatprep.subr.mxu0 0.0
    %1179 = vmatpush1.msra.mxu0 0.0
    %1180 = vmatprep.subr.mxu0 0.0
    %1181 = vmatpush1.msra.mxu0 0.0
    %1182 = vmatprep.subr.mxu0 0.0
    %1183 = vmatpush1.msra.mxu0 0.0
    %1184 = vmatprep.subr.mxu0 0.0
    %1185 = vmatpush1.msra.mxu0 0.0
    %1186 = vmatprep.subr.mxu0 0.0
    %1187 = vmatpush1.msra.mxu0 0.0
    %1188 = vmatprep.subr.mxu0 0.0
    %1189 = vmatpush1.msra.mxu0 0.0
    %1190 = vmatprep.subr.mxu0 0.0
    %1191 = vmatpush1.msra.mxu0 0.0
    %1192 = vmatprep.subr.mxu0 0.0
    %1193 = vmatpush1.msra.mxu0 0.0
    %1194 = vmatprep.subr.mxu0 0.0
    %1195 = vmatpush1.msra.mxu0 0.0
    %1196 = vmatprep.subr.mxu0 0.0
    %1197 = vmatpush1.msra.mxu0 0.0
    %1198 = vmatprep.mubr.f32.mxu0 0.0
    %1199 = vmatmul.mubr.f32.gmra.mrb[0].mxu0 %v1129
    %v1200 = vpop.f32.mrb[0].mxu0
    %v1201 = vadd.f32 %v1126, %v1200
    %v1202 = vpop.f32.mrb[0].mxu0
    %1203 = vmatprep.mubr.f32.mxu0 0.0
    %1204 = vmatmul.mubr.f32.gmra.mrb[0].mxu0 %v1132
    %v1205 = vpop.f32.mrb[0].mxu0
    %v1206 = vadd.f32 %v1126, %v1205
    %v1207 = vpop.f32.mrb[0].mxu0
    %1208 = vdwg.mxu0
    %1209 = vst.msk [vmem:[#allocation4] sm:$0xff] %vm96, %v1201
    %1210 = vst.msk [vmem:[#allocation4 + $0x8] sm:$0xff] %vm96, %v1206
    %vm1211 = vcmask 326656
    %v1212 = vsel %vm1211, 0.0, 0
    %1214 = vmatprep.subr.mxu0 0.0
    %1215 = vmatpush1.msra.mxu0 %v65
    %1216 = vmatprep.subr.mxu0 0.0
    %1217 = vmatpush1.msra.mxu0 %v66
    %1218 = vmatprep.subr.mxu0 0.0
    %1219 = vmatpush1.msra.mxu0 %v67
    %1220 = vmatprep.subr.mxu0 0.0
    %1221 = vmatpush1.msra.mxu0 %v68
    %1222 = vmatprep.subr.mxu0 0.0
    %1223 = vmatpush1.msra.mxu0 %v69
    %1224 = vmatprep.subr.mxu0 0.0
    %1225 = vmatpush1.msra.mxu0 0.0
    %1226 = vmatprep.subr.mxu0 0.0
    %1227 = vmatpush1.msra.mxu0 0.0
    %1228 = vmatprep.subr.mxu0 0.0
    %1229 = vmatpush1.msra.mxu0 0.0
    %1230 = vmatprep.subr.mxu0 0.0
    %1231 = vmatpush1.msra.mxu0 0.0
    %1232 = vmatprep.subr.mxu0 0.0
    %1233 = vmatpush1.msra.mxu0 0.0
    %1234 = vmatprep.subr.mxu0 0.0
    %1235 = vmatpush1.msra.mxu0 0.0
    %1236 = vmatprep.subr.mxu0 0.0
    %1237 = vmatpush1.msra.mxu0 0.0
    %1238 = vmatprep.subr.mxu0 0.0
    %1239 = vmatpush1.msra.mxu0 0.0
    %1240 = vmatprep.subr.mxu0 0.0
    %1241 = vmatpush1.msra.mxu0 0.0
    %1242 = vmatprep.subr.mxu0 0.0
    %1243 = vmatpush1.msra.mxu0 0.0
    %1244 = vmatprep.subr.mxu0 0.0
    %1245 = vmatpush1.msra.mxu0 0.0
    %1246 = vmatprep.subr.mxu0 0.0
    %1247 = vmatpush1.msra.mxu0 0.0
    %1248 = vmatprep.subr.mxu0 0.0
    %1249 = vmatpush1.msra.mxu0 0.0
    %1250 = vmatprep.subr.mxu0 0.0
    %1251 = vmatpush1.msra.mxu0 0.0
    %1252 = vmatprep.subr.mxu0 0.0
    %1253 = vmatpush1.msra.mxu0 0.0
    %1254 = vmatprep.subr.mxu0 0.0
    %1255 = vmatpush1.msra.mxu0 0.0
    %1256 = vmatprep.subr.mxu0 0.0
    %1257 = vmatpush1.msra.mxu0 0.0
    %1258 = vmatprep.subr.mxu0 0.0
    %1259 = vmatpush1.msra.mxu0 0.0
    %1260 = vmatprep.subr.mxu0 0.0
    %1261 = vmatpush1.msra.mxu0 0.0
    %1262 = vmatprep.subr.mxu0 0.0
    %1263 = vmatpush1.msra.mxu0 0.0
    %1264 = vmatprep.subr.mxu0 0.0
    %1265 = vmatpush1.msra.mxu0 0.0
    %1266 = vmatprep.subr.mxu0 0.0
    %1267 = vmatpush1.msra.mxu0 0.0
    %1268 = vmatprep.subr.mxu0 0.0
    %1269 = vmatpush1.msra.mxu0 0.0
    %1270 = vmatprep.subr.mxu0 0.0
    %1271 = vmatpush1.msra.mxu0 0.0
    %1272 = vmatprep.subr.mxu0 0.0
    %1273 = vmatpush1.msra.mxu0 0.0
    %1274 = vmatprep.subr.mxu0 0.0
    %1275 = vmatpush1.msra.mxu0 0.0
    %1276 = vmatprep.subr.mxu0 0.0
    %1277 = vmatpush1.msra.mxu0 0.0
    %1278 = vmatprep.mubr.f32.mxu0 0.0
    %1279 = vmatmul.mubr.f32.gmra.mrb[0].mxu0 %v1212
    %v1280 = vpop.f32.mrb[0].mxu0
    %v1281 = vadd.f32 %v83, %v1280
    %v1282 = vpop.f32.mrb[0].mxu0
    %1283 = vdwg.mxu0
    %v1284 = vxor.u32 %v1281, 2147483648
    %v1285 = vmul.f32 %v1284, 1.442695
    %v1286 = vpow.pop %v1285
    %v1287 = vadd.f32 %v1286, 1.0
    %v1288 = vrcp.pop %v1287
    %v1289 = vmul.f32 1.0, %v1288
    %v1290 = vtanh.pop %v1281
    %v1291 = vmul.f32 %v1289, 0.0
    %1293 = vrot.lane.b32.xlu0 %v1290, 64
    %v1294 = vpop.permute.xlu0 %1293
    %v1296 = vmul.f32 %v1289, %v1294
    %1298 = vrot.lane.b32.xlu0 %v1296, 32
    %v1299 = vpop.permute.xlu0 %1298
    %v1301 = vadd.f32 %v1291, %v1299
    %v1302 = vtanh.pop %v1301
    %1304 = vrot.lane.b32.xlu0 %v1302, 64
    %v1305 = vpop.permute.xlu0 %1304
    %v1307 = vmul.f32 %v1289, %v1305
    %v1308 = vld [vmem:[#allocation4] sm:$0x3]
    %1310 = vrot.lane.b32.xlu0 %v1307, 32
    %v1311 = vpop.permute.xlu0 %1310
    %v1312 = vsel %vm191, %v1311, 0
    %1314 = vmatprep.subr.mxu0 0.0
    %1315 = vmatpush1.msra.mxu0 %v70
    %1316 = vmatprep.subr.mxu0 0.0
    %1317 = vmatpush1.msra.mxu0 %v71
    %1318 = vmatprep.subr.mxu0 0.0
    %1319 = vmatpush1.msra.mxu0 %v72
    %1320 = vmatprep.subr.mxu0 0.0
    %1321 = vmatpush1.msra.mxu0 %v73
    %1322 = vmatprep.subr.mxu0 0.0
    %1323 = vmatpush1.msra.mxu0 0.0
    %1324 = vmatprep.subr.mxu0 0.0
    %1325 = vmatpush1.msra.mxu0 0.0
    %1326 = vmatprep.subr.mxu0 0.0
    %1327 = vmatpush1.msra.mxu0 0.0
    %1328 = vmatprep.subr.mxu0 0.0
    %1329 = vmatpush1.msra.mxu0 0.0
    %1330 = vmatprep.subr.mxu0 0.0
    %1331 = vmatpush1.msra.mxu0 0.0
    %1332 = vmatprep.subr.mxu0 0.0
    %1333 = vmatpush1.msra.mxu0 0.0
    %1334 = vmatprep.subr.mxu0 0.0
    %1335 = vmatpush1.msra.mxu0 0.0
    %1336 = vmatprep.subr.mxu0 0.0
    %1337 = vmatpush1.msra.mxu0 0.0
    %1338 = vmatprep.subr.mxu0 0.0
    %1339 = vmatpush1.msra.mxu0 0.0
    %1340 = vmatprep.subr.mxu0 0.0
    %1341 = vmatpush1.msra.mxu0 0.0
    %1342 = vmatprep.subr.mxu0 0.0
    %1343 = vmatpush1.msra.mxu0 0.0
    %1344 = vmatprep.subr.mxu0 0.0
    %1345 = vmatpush1.msra.mxu0 0.0
    %1346 = vmatprep.subr.mxu0 0.0
    %1347 = vmatpush1.msra.mxu0 0.0
    %1348 = vmatprep.subr.mxu0 0.0
    %1349 = vmatpush1.msra.mxu0 0.0
    %1350 = vmatprep.subr.mxu0 0.0
    %1351 = vmatpush1.msra.mxu0 0.0
    %1352 = vmatprep.subr.mxu0 0.0
    %1353 = vmatpush1.msra.mxu0 0.0
    %1354 = vmatprep.subr.mxu0 0.0
    %1355 = vmatpush1.msra.mxu0 0.0
    %1356 = vmatprep.subr.mxu0 0.0
    %1357 = vmatpush1.msra.mxu0 0.0
    %1358 = vmatprep.subr.mxu0 0.0
    %1359 = vmatpush1.msra.mxu0 0.0
    %1360 = vmatprep.subr.mxu0 0.0
    %1361 = vmatpush1.msra.mxu0 0.0
    %1362 = vmatprep.subr.mxu0 0.0
    %1363 = vmatpush1.msra.mxu0 0.0
    %1364 = vmatprep.subr.mxu0 0.0
    %1365 = vmatpush1.msra.mxu0 0.0
    %1366 = vmatprep.subr.mxu0 0.0
    %1367 = vmatpush1.msra.mxu0 0.0
    %1368 = vmatprep.subr.mxu0 0.0
    %1369 = vmatpush1.msra.mxu0 0.0
    %1370 = vmatprep.subr.mxu0 0.0
    %1371 = vmatpush1.msra.mxu0 0.0
    %1372 = vmatprep.subr.mxu0 0.0
    %1373 = vmatpush1.msra.mxu0 0.0
    %1374 = vmatprep.subr.mxu0 0.0
    %1375 = vmatpush1.msra.mxu0 0.0
    %1376 = vmatprep.subr.mxu0 0.0
    %1377 = vmatpush1.msra.mxu0 0.0
    %1378 = vmatprep.mubr.f32.mxu0 0.0
    %1379 = vmatmul.mubr.f32.gmra.mrb[0].mxu0 %v1312
    %v1380 = vpop.f32.mrb[0].mxu0
    %v1381 = vadd.f32 0.0, %v1380
    %v1382 = vpop.f32.mrb[0].mxu0
    %1383 = vdwg.mxu0
    %v1384 = vadd.f32 %v1308, %v1381
    %v1385 = vld [vmem:[%s1] sm:$0x3]
    %v1386 = vmul.f32 %v1384, 0.5
    %v1387 = vmul.f32 %v1386, 1.442695
    %v1388 = vpow.pop %v1387
    %1390 = vrot.lane.b32.xlu0 %v1388, 120
    %v1391 = vpop.permute.xlu0 %1390
    %v1393 = vmul.f32 %v1385, %v1391
    %v1394 = vadd.f32 %v1393, %v1384
    %vm1395 = vcmask 123904
    %1396 = vst.msk [vmem:[%s19] sm:$0x3] %vm1395, %v1384
    %vm1397 = vcmask 58368
    %1398 = vst.msk [vmem:[#allocation9] sm:$0x3] %vm1397, %v1394
    %1399 = vrot.lane.b32.xlu0 %v1307, 40
    %v1400 = vpop.permute.xlu0 %1399
    %vm1402 = vcmask 64512
    %v1403 = vsel %vm1402, %v1394, %v1400
    %v1405 = vsel %vm1211, %v1403, 0
    %1407 = vmatprep.subr.mxu0 0.0
    %1408 = vmatpush1.msra.mxu0 %v65
    %1409 = vmatprep.subr.mxu0 0.0
    %1410 = vmatpush1.msra.mxu0 %v66
    %1411 = vmatprep.subr.mxu0 0.0
    %1412 = vmatpush1.msra.mxu0 %v67
    %1413 = vmatprep.subr.mxu0 0.0
    %1414 = vmatpush1.msra.mxu0 %v68
    %1415 = vmatprep.subr.mxu0 0.0
    %1416 = vmatpush1.msra.mxu0 %v69
    %1417 = vmatprep.subr.mxu0 0.0
    %1418 = vmatpush1.msra.mxu0 0.0
    %1419 = vmatprep.subr.mxu0 0.0
    %1420 = vmatpush1.msra.mxu0 0.0
    %1421 = vmatprep.subr.mxu0 0.0
    %1422 = vmatpush1.msra.mxu0 0.0
    %1423 = vmatprep.subr.mxu0 0.0
    %1424 = vmatpush1.msra.mxu0 0.0
    %1425 = vmatprep.subr.mxu0 0.0
    %1426 = vmatpush1.msra.mxu0 0.0
    %1427 = vmatprep.subr.mxu0 0.0
    %1428 = vmatpush1.msra.mxu0 0.0
    %1429 = vmatprep.subr.mxu0 0.0
    %1430 = vmatpush1.msra.mxu0 0.0
    %1431 = vmatprep.subr.mxu0 0.0
    %1432 = vmatpush1.msra.mxu0 0.0
    %1433 = vmatprep.subr.mxu0 0.0
    %1434 = vmatpush1.msra.mxu0 0.0
    %1435 = vmatprep.subr.mxu0 0.0
    %1436 = vmatpush1.msra.mxu0 0.0
    %1437 = vmatprep.subr.mxu0 0.0
    %1438 = vmatpush1.msra.mxu0 0.0
    %1439 = vmatprep.subr.mxu0 0.0
    %1440 = vmatpush1.msra.mxu0 0.0
    %1441 = vmatprep.subr.mxu0 0.0
    %1442 = vmatpush1.msra.mxu0 0.0
    %1443 = vmatprep.subr.mxu0 0.0
    %1444 = vmatpush1.msra.mxu0 0.0
    %1445 = vmatprep.subr.mxu0 0.0
    %1446 = vmatpush1.msra.mxu0 0.0
    %1447 = vmatprep.subr.mxu0 0.0
    %1448 = vmatpush1.msra.mxu0 0.0
    %1449 = vmatprep.subr.mxu0 0.0
    %1450 = vmatpush1.msra.mxu0 0.0
    %1451 = vmatprep.subr.mxu0 0.0
    %1452 = vmatpush1.msra.mxu0 0.0
    %1453 = vmatprep.subr.mxu0 0.0
    %1454 = vmatpush1.msra.mxu0 0.0
    %1455 = vmatprep.subr.mxu0 0.0
    %1456 = vmatpush1.msra.mxu0 0.0
    %1457 = vmatprep.subr.mxu0 0.0
    %1458 = vmatpush1.msra.mxu0 0.0
    %1459 = vmatprep.subr.mxu0 0.0
    %1460 = vmatpush1.msra.mxu0 0.0
    %1461 = vmatprep.subr.mxu0 0.0
    %1462 = vmatpush1.msra.mxu0 0.0
    %1463 = vmatprep.subr.mxu0 0.0
    %1464 = vmatpush1.msra.mxu0 0.0
    %1465 = vmatprep.subr.mxu0 0.0
    %1466 = vmatpush1.msra.mxu0 0.0
    %1467 = vmatprep.subr.mxu0 0.0
    %1468 = vmatpush1.msra.mxu0 0.0
    %1469 = vmatprep.subr.mxu0 0.0
    %1470 = vmatpush1.msra.mxu0 0.0
    %1471 = vmatprep.mubr.f32.mxu0 0.0
    %1472 = vmatmul.mubr.f32.gmra.mrb[0].mxu0 %v1405
    %v1473 = vpop.f32.mrb[0].mxu0
    %v1474 = vadd.f32 %v83, %v1473
    %v1475 = vpop.f32.mrb[0].mxu0
    %1476 = vdwg.mxu0
    %v1477 = vxor.u32 %v1474, 2147483648
    %v1478 = vmul.f32 %v1477, 1.442695
    %v1479 = vpow.pop %v1478
    %v1480 = vadd.f32 %v1479, 1.0
    %v1481 = vrcp.pop %v1480
    %v1482 = vmul.f32 1.0, %v1481
    %v1483 = vtanh.pop %v1474
    %v1484 = vmul.f32 %v1482, %v1301
    %1486 = vrot.lane.b32.xlu0 %v1483, 64
    %v1487 = vpop.permute.xlu0 %1486
    %v1489 = vmul.f32 %v1482, %v1487
    %1491 = vrot.lane.b32.xlu0 %v1489, 32
    %v1492 = vpop.permute.xlu0 %1491
    %v1494 = vadd.f32 %v1484, %v1492
    %v1495 = vtanh.pop %v1494
    %1497 = vrot.lane.b32.xlu0 %v1495, 64
    %v1498 = vpop.permute.xlu0 %1497
    %v1500 = vmul.f32 %v1482, %v1498
    %s1501 = scalar_lea.vmem [#allocation4], 2
    %v1502 = vld [vmem:[%s1501] sm:$0x3]
    %1504 = vrot.lane.b32.xlu0 %v1500, 32
    %v1505 = vpop.permute.xlu0 %1504
    %v1506 = vsel %vm191, %v1505, 0
    %1508 = vmatprep.subr.mxu0 0.0
    %1509 = vmatpush1.msra.mxu0 %v70
    %1510 = vmatprep.subr.mxu0 0.0
    %1511 = vmatpush1.msra.mxu0 %v71
    %1512 = vmatprep.subr.mxu0 0.0
    %1513 = vmatpush1.msra.mxu0 %v72
    %1514 = vmatprep.subr.mxu0 0.0
    %1515 = vmatpush1.msra.mxu0 %v73
    %1516 = vmatprep.subr.mxu0 0.0
    %1517 = vmatpush1.msra.mxu0 0.0
    %1518 = vmatprep.subr.mxu0 0.0
    %1519 = vmatpush1.msra.mxu0 0.0
    %1520 = vmatprep.subr.mxu0 0.0
    %1521 = vmatpush1.msra.mxu0 0.0
    %1522 = vmatprep.subr.mxu0 0.0
    %1523 = vmatpush1.msra.mxu0 0.0
    %1524 = vmatprep.subr.mxu0 0.0
    %1525 = vmatpush1.msra.mxu0 0.0
    %1526 = vmatprep.subr.mxu0 0.0
    %1527 = vmatpush1.msra.mxu0 0.0
    %1528 = vmatprep.subr.mxu0 0.0
    %1529 = vmatpush1.msra.mxu0 0.0
    %1530 = vmatprep.subr.mxu0 0.0
    %1531 = vmatpush1.msra.mxu0 0.0
    %1532 = vmatprep.subr.mxu0 0.0
    %1533 = vmatpush1.msra.mxu0 0.0
    %1534 = vmatprep.subr.mxu0 0.0
    %1535 = vmatpush1.msra.mxu0 0.0
    %1536 = vmatprep.subr.mxu0 0.0
    %1537 = vmatpush1.msra.mxu0 0.0
    %1538 = vmatprep.subr.mxu0 0.0
    %1539 = vmatpush1.msra.mxu0 0.0
    %1540 = vmatprep.subr.mxu0 0.0
    %1541 = vmatpush1.msra.mxu0 0.0
    %1542 = vmatprep.subr.mxu0 0.0
    %1543 = vmatpush1.msra.mxu0 0.0
    %1544 = vmatprep.subr.mxu0 0.0
    %1545 = vmatpush1.msra.mxu0 0.0
    %1546 = vmatprep.subr.mxu0 0.0
    %1547 = vmatpush1.msra.mxu0 0.0
    %1548 = vmatprep.subr.mxu0 0.0
    %1549 = vmatpush1.msra.mxu0 0.0
    %1550 = vmatprep.subr.mxu0 0.0
    %1551 = vmatpush1.msra.mxu0 0.0
    %1552 = vmatprep.subr.mxu0 0.0
    %1553 = vmatpush1.msra.mxu0 0.0
    %1554 = vmatprep.subr.mxu0 0.0
    %1555 = vmatpush1.msra.mxu0 0.0
    %1556 = vmatprep.subr.mxu0 0.0
    %1557 = vmatpush1.msra.mxu0 0.0
    %1558 = vmatprep.subr.mxu0 0.0
    %1559 = vmatpush1.msra.mxu0 0.0
    %1560 = vmatprep.subr.mxu0 0.0
    %1561 = vmatpush1.msra.mxu0 0.0
    %1562 = vmatprep.subr.mxu0 0.0
    %1563 = vmatpush1.msra.mxu0 0.0
    %1564 = vmatprep.subr.mxu0 0.0
    %1565 = vmatpush1.msra.mxu0 0.0
    %1566 = vmatprep.subr.mxu0 0.0
    %1567 = vmatpush1.msra.mxu0 0.0
    %1568 = vmatprep.subr.mxu0 0.0
    %1569 = vmatpush1.msra.mxu0 0.0
    %1570 = vmatprep.subr.mxu0 0.0
    %1571 = vmatpush1.msra.mxu0 0.0
    %1572 = vmatprep.mubr.f32.mxu0 0.0
    %1573 = vmatmul.mubr.f32.gmra.mrb[0].mxu0 %v1506
    %v1574 = vpop.f32.mrb[0].mxu0
    %v1575 = vadd.f32 0.0, %v1574
    %v1576 = vpop.f32.mrb[0].mxu0
    %1577 = vdwg.mxu0
    %v1578 = vadd.f32 %v1502, %v1575
    %s1579 = scalar_lea.vmem %s1, 2
    %v1580 = vld [vmem:[%s1579] sm:$0x3]
    %v1581 = vmul.f32 %v1578, 0.5
    %v1582 = vmul.f32 %v1581, 1.442695
    %v1583 = vpow.pop %v1582
    %1585 = vrot.lane.b32.xlu0 %v1583, 120
    %v1586 = vpop.permute.xlu0 %1585
    %v1588 = vmul.f32 %v1580, %v1586
    %v1589 = vadd.f32 %v1588, %v1578
    %s1590 = scalar_lea.vmem %s19, 2
    %1591 = vst.msk [vmem:[%s1590] sm:$0x3] %vm1395, %v1578
    %s1592 = scalar_lea.vmem [#allocation9], 2
    %1593 = vst.msk [vmem:[%s1592] sm:$0x3] %vm1397, %v1589
    %1594 = vrot.lane.b32.xlu0 %v1500, 40
    %v1595 = vpop.permute.xlu0 %1594
    %v1597 = vsel %vm1402, %v1589, %v1595
    %v1599 = vsel %vm1211, %v1597, 0
    %1601 = vmatprep.subr.mxu0 0.0
    %1602 = vmatpush1.msra.mxu0 %v65
    %1603 = vmatprep.subr.mxu0 0.0
    %1604 = vmatpush1.msra.mxu0 %v66
    %1605 = vmatprep.subr.mxu0 0.0
    %1606 = vmatpush1.msra.mxu0 %v67
    %1607 = vmatprep.subr.mxu0 0.0
    %1608 = vmatpush1.msra.mxu0 %v68
    %1609 = vmatprep.subr.mxu0 0.0
    %1610 = vmatpush1.msra.mxu0 %v69
    %1611 = vmatprep.subr.mxu0 0.0
    %1612 = vmatpush1.msra.mxu0 0.0
    %1613 = vmatprep.subr.mxu0 0.0
    %1614 = vmatpush1.msra.mxu0 0.0
    %1615 = vmatprep.subr.mxu0 0.0
    %1616 = vmatpush1.msra.mxu0 0.0
    %1617 = vmatprep.subr.mxu0 0.0
    %1618 = vmatpush1.msra.mxu0 0.0
    %1619 = vmatprep.subr.mxu0 0.0
    %1620 = vmatpush1.msra.mxu0 0.0
    %1621 = vmatprep.subr.mxu0 0.0
    %1622 = vmatpush1.msra.mxu0 0.0
    %1623 = vmatprep.subr.mxu0 0.0
    %1624 = vmatpush1.msra.mxu0 0.0
    %1625 = vmatprep.subr.mxu0 0.0
    %1626 = vmatpush1.msra.mxu0 0.0
    %1627 = vmatprep.subr.mxu0 0.0
    %1628 = vmatpush1.msra.mxu0 0.0
    %1629 = vmatprep.subr.mxu0 0.0
    %1630 = vmatpush1.msra.mxu0 0.0
    %1631 = vmatprep.subr.mxu0 0.0
    %1632 = vmatpush1.msra.mxu0 0.0
    %1633 = vmatprep.subr.mxu0 0.0
    %1634 = vmatpush1.msra.mxu0 0.0
    %1635 = vmatprep.subr.mxu0 0.0
    %1636 = vmatpush1.msra.mxu0 0.0
    %1637 = vmatprep.subr.mxu0 0.0
    %1638 = vmatpush1.msra.mxu0 0.0
    %1639 = vmatprep.subr.mxu0 0.0
    %1640 = vmatpush1.msra.mxu0 0.0
    %1641 = vmatprep.subr.mxu0 0.0
    %1642 = vmatpush1.msra.mxu0 0.0
    %1643 = vmatprep.subr.mxu0 0.0
    %1644 = vmatpush1.msra.mxu0 0.0
    %1645 = vmatprep.subr.mxu0 0.0
    %1646 = vmatpush1.msra.mxu0 0.0
    %1647 = vmatprep.subr.mxu0 0.0
    %1648 = vmatpush1.msra.mxu0 0.0
    %1649 = vmatprep.subr.mxu0 0.0
    %1650 = vmatpush1.msra.mxu0 0.0
    %1651 = vmatprep.subr.mxu0 0.0
    %1652 = vmatpush1.msra.mxu0 0.0
    %1653 = vmatprep.subr.mxu0 0.0
    %1654 = vmatpush1.msra.mxu0 0.0
    %1655 = vmatprep.subr.mxu0 0.0
    %1656 = vmatpush1.msra.mxu0 0.0
    %1657 = vmatprep.subr.mxu0 0.0
    %1658 = vmatpush1.msra.mxu0 0.0
    %1659 = vmatprep.subr.mxu0 0.0
    %1660 = vmatpush1.msra.mxu0 0.0
    %1661 = vmatprep.subr.mxu0 0.0
    %1662 = vmatpush1.msra.mxu0 0.0
    %1663 = vmatprep.subr.mxu0 0.0
    %1664 = vmatpush1.msra.mxu0 0.0
    %1665 = vmatprep.mubr.f32.mxu0 0.0
    %1666 = vmatmul.mubr.f32.gmra.mrb[0].mxu0 %v1599
    %v1667 = vpop.f32.mrb[0].mxu0
    %v1668 = vadd.f32 %v83, %v1667
    %v1669 = vpop.f32.mrb[0].mxu0
    %1670 = vdwg.mxu0
    %v1671 = vxor.u32 %v1668, 2147483648
    %v1672 = vmul.f32 %v1671, 1.442695
    %v1673 = vpow.pop %v1672
    %v1674 = vadd.f32 %v1673, 1.0
    %v1675 = vrcp.pop %v1674
    %v1676 = vmul.f32 1.0, %v1675
    %v1677 = vtanh.pop %v1668
    %v1678 = vmul.f32 %v1676, %v1494
    %1680 = vrot.lane.b32.xlu0 %v1677, 64
    %v1681 = vpop.permute.xlu0 %1680
    %v1683 = vmul.f32 %v1676, %v1681
    %1685 = vrot.lane.b32.xlu0 %v1683, 32
    %v1686 = vpop.permute.xlu0 %1685
    %v1688 = vadd.f32 %v1678, %v1686
    %v1689 = vtanh.pop %v1688
    %1691 = vrot.lane.b32.xlu0 %v1689, 64
    %v1692 = vpop.permute.xlu0 %1691
    %v1694 = vmul.f32 %v1676, %v1692
    %s1695 = scalar_lea.vmem [#allocation4], 4
    %v1696 = vld [vmem:[%s1695] sm:$0x3]
    %1698 = vrot.lane.b32.xlu0 %v1694, 32
    %v1699 = vpop.permute.xlu0 %1698
    %v1700 = vsel %vm191, %v1699, 0
    %1702 = vmatprep.subr.mxu0 0.0
    %1703 = vmatpush1.msra.mxu0 %v70
    %1704 = vmatprep.subr.mxu0 0.0
    %1705 = vmatpush1.msra.mxu0 %v71
    %1706 = vmatprep.subr.mxu0 0.0
    %1707 = vmatpush1.msra.mxu0 %v72
    %1708 = vmatprep.subr.mxu0 0.0
    %1709 = vmatpush1.msra.mxu0 %v73
    %1710 = vmatprep.subr.mxu0 0.0
    %1711 = vmatpush1.msra.mxu0 0.0
    %1712 = vmatprep.subr.mxu0 0.0
    %1713 = vmatpush1.msra.mxu0 0.0
    %1714 = vmatprep.subr.mxu0 0.0
    %1715 = vmatpush1.msra.mxu0 0.0
    %1716 = vmatprep.subr.mxu0 0.0
    %1717 = vmatpush1.msra.mxu0 0.0
    %1718 = vmatprep.subr.mxu0 0.0
    %1719 = vmatpush1.msra.mxu0 0.0
    %1720 = vmatprep.subr.mxu0 0.0
    %1721 = vmatpush1.msra.mxu0 0.0
    %1722 = vmatprep.subr.mxu0 0.0
    %1723 = vmatpush1.msra.mxu0 0.0
    %1724 = vmatprep.subr.mxu0 0.0
    %1725 = vmatpush1.msra.mxu0 0.0
    %1726 = vmatprep.subr.mxu0 0.0
    %1727 = vmatpush1.msra.mxu0 0.0
    %1728 = vmatprep.subr.mxu0 0.0
    %1729 = vmatpush1.msra.mxu0 0.0
    %1730 = vmatprep.subr.mxu0 0.0
    %1731 = vmatpush1.msra.mxu0 0.0
    %1732 = vmatprep.subr.mxu0 0.0
    %1733 = vmatpush1.msra.mxu0 0.0
    %1734 = vmatprep.subr.mxu0 0.0
    %1735 = vmatpush1.msra.mxu0 0.0
    %1736 = vmatprep.subr.mxu0 0.0
    %1737 = vmatpush1.msra.mxu0 0.0
    %1738 = vmatprep.subr.mxu0 0.0
    %1739 = vmatpush1.msra.mxu0 0.0
    %1740 = vmatprep.subr.mxu0 0.0
    %1741 = vmatpush1.msra.mxu0 0.0
    %1742 = vmatprep.subr.mxu0 0.0
    %1743 = vmatpush1.msra.mxu0 0.0
    %1744 = vmatprep.subr.mxu0 0.0
    %1745 = vmatpush1.msra.mxu0 0.0
    %1746 = vmatprep.subr.mxu0 0.0
    %1747 = vmatpush1.msra.mxu0 0.0
    %1748 = vmatprep.subr.mxu0 0.0
    %1749 = vmatpush1.msra.mxu0 0.0
    %1750 = vmatprep.subr.mxu0 0.0
    %1751 = vmatpush1.msra.mxu0 0.0
    %1752 = vmatprep.subr.mxu0 0.0
    %1753 = vmatpush1.msra.mxu0 0.0
    %1754 = vmatprep.subr.mxu0 0.0
    %1755 = vmatpush1.msra.mxu0 0.0
    %1756 = vmatprep.subr.mxu0 0.0
    %1757 = vmatpush1.msra.mxu0 0.0
    %1758 = vmatprep.subr.mxu0 0.0
    %1759 = vmatpush1.msra.mxu0 0.0
    %1760 = vmatprep.subr.mxu0 0.0
    %1761 = vmatpush1.msra.mxu0 0.0
    %1762 = vmatprep.subr.mxu0 0.0
    %1763 = vmatpush1.msra.mxu0 0.0
    %1764 = vmatprep.subr.mxu0 0.0
    %1765 = vmatpush1.msra.mxu0 0.0
    %1766 = vmatprep.mubr.f32.mxu0 0.0
    %1767 = vmatmul.mubr.f32.gmra.mrb[0].mxu0 %v1700
    %v1768 = vpop.f32.mrb[0].mxu0
    %v1769 = vadd.f32 0.0, %v1768
    %v1770 = vpop.f32.mrb[0].mxu0
    %1771 = vdwg.mxu0
    %v1772 = vadd.f32 %v1696, %v1769
    %s1773 = scalar_lea.vmem %s1, 4
    %v1774 = vld [vmem:[%s1773] sm:$0x3]
    %v1775 = vmul.f32 %v1772, 0.5
    %v1776 = vmul.f32 %v1775, 1.442695
    %v1777 = vpow.pop %v1776
    %1779 = vrot.lane.b32.xlu0 %v1777, 120
    %v1780 = vpop.permute.xlu0 %1779
    %v1782 = vmul.f32 %v1774, %v1780
    %v1783 = vadd.f32 %v1782, %v1772
    %s1784 = scalar_lea.vmem %s19, 4
    %1785 = vst.msk [vmem:[%s1784] sm:$0x3] %vm1395, %v1772
    %s1786 = scalar_lea.vmem [#allocation9], 4
    %1787 = vst.msk [vmem:[%s1786] sm:$0x3] %vm1397, %v1783
    %1788 = vrot.lane.b32.xlu0 %v1694, 40
    %v1789 = vpop.permute.xlu0 %1788
    %v1791 = vsel %vm1402, %v1783, %v1789
    %v1793 = vsel %vm1211, %v1791, 0
    %1795 = vmatprep.subr.mxu0 0.0
    %1796 = vmatpush1.msra.mxu0 %v65
    %1797 = vmatprep.subr.mxu0 0.0
    %1798 = vmatpush1.msra.mxu0 %v66
    %1799 = vmatprep.subr.mxu0 0.0
    %1800 = vmatpush1.msra.mxu0 %v67
    %1801 = vmatprep.subr.mxu0 0.0
    %1802 = vmatpush1.msra.mxu0 %v68
    %1803 = vmatprep.subr.mxu0 0.0
    %1804 = vmatpush1.msra.mxu0 %v69
    %1805 = vmatprep.subr.mxu0 0.0
    %1806 = vmatpush1.msra.mxu0 0.0
    %1807 = vmatprep.subr.mxu0 0.0
    %1808 = vmatpush1.msra.mxu0 0.0
    %1809 = vmatprep.subr.mxu0 0.0
    %1810 = vmatpush1.msra.mxu0 0.0
    %1811 = vmatprep.subr.mxu0 0.0
    %1812 = vmatpush1.msra.mxu0 0.0
    %1813 = vmatprep.subr.mxu0 0.0
    %1814 = vmatpush1.msra.mxu0 0.0
    %1815 = vmatprep.subr.mxu0 0.0
    %1816 = vmatpush1.msra.mxu0 0.0
    %1817 = vmatprep.subr.mxu0 0.0
    %1818 = vmatpush1.msra.mxu0 0.0
    %1819 = vmatprep.subr.mxu0 0.0
    %1820 = vmatpush1.msra.mxu0 0.0
    %1821 = vmatprep.subr.mxu0 0.0
    %1822 = vmatpush1.msra.mxu0 0.0
    %1823 = vmatprep.subr.mxu0 0.0
    %1824 = vmatpush1.msra.mxu0 0.0
    %1825 = vmatprep.subr.mxu0 0.0
    %1826 = vmatpush1.msra.mxu0 0.0
    %1827 = vmatprep.subr.mxu0 0.0
    %1828 = vmatpush1.msra.mxu0 0.0
    %1829 = vmatprep.subr.mxu0 0.0
    %1830 = vmatpush1.msra.mxu0 0.0
    %1831 = vmatprep.subr.mxu0 0.0
    %1832 = vmatpush1.msra.mxu0 0.0
    %1833 = vmatprep.subr.mxu0 0.0
    %1834 = vmatpush1.msra.mxu0 0.0
    %1835 = vmatprep.subr.mxu0 0.0
    %1836 = vmatpush1.msra.mxu0 0.0
    %1837 = vmatprep.subr.mxu0 0.0
    %1838 = vmatpush1.msra.mxu0 0.0
    %1839 = vmatprep.subr.mxu0 0.0
    %1840 = vmatpush1.msra.mxu0 0.0
    %1841 = vmatprep.subr.mxu0 0.0
    %1842 = vmatpush1.msra.mxu0 0.0
    %1843 = vmatprep.subr.mxu0 0.0
    %1844 = vmatpush1.msra.mxu0 0.0
    %1845 = vmatprep.subr.mxu0 0.0
    %1846 = vmatpush1.msra.mxu0 0.0
    %1847 = vmatprep.subr.mxu0 0.0
    %1848 = vmatpush1.msra.mxu0 0.0
    %1849 = vmatprep.subr.mxu0 0.0
    %1850 = vmatpush1.msra.mxu0 0.0
    %1851 = vmatprep.subr.mxu0 0.0
    %1852 = vmatpush1.msra.mxu0 0.0
    %1853 = vmatprep.subr.mxu0 0.0
    %1854 = vmatpush1.msra.mxu0 0.0
    %1855 = vmatprep.subr.mxu0 0.0
    %1856 = vmatpush1.msra.mxu0 0.0
    %1857 = vmatprep.subr.mxu0 0.0
    %1858 = vmatpush1.msra.mxu0 0.0
    %1859 = vmatprep.mubr.f32.mxu0 0.0
    %1860 = vmatmul.mubr.f32.gmra.mrb[0].mxu0 %v1793
    %v1861 = vpop.f32.mrb[0].mxu0
    %v1862 = vadd.f32 %v83, %v1861
    %v1863 = vpop.f32.mrb[0].mxu0
    %1864 = vdwg.mxu0
    %v1865 = vxor.u32 %v1862, 2147483648
    %v1866 = vmul.f32 %v1865, 1.442695
    %v1867 = vpow.pop %v1866
    %v1868 = vadd.f32 %v1867, 1.0
    %v1869 = vrcp.pop %v1868
    %v1870 = vmul.f32 1.0, %v1869
    %v1871 = vtanh.pop %v1862
    %v1872 = vmul.f32 %v1870, %v1688
    %1874 = vrot.lane.b32.xlu0 %v1871, 64
    %v1875 = vpop.permute.xlu0 %1874
    %v1877 = vmul.f32 %v1870, %v1875
    %1879 = vrot.lane.b32.xlu0 %v1877, 32
    %v1880 = vpop.permute.xlu0 %1879
    %v1882 = vadd.f32 %v1872, %v1880
    %v1883 = vtanh.pop %v1882
    %1885 = vrot.lane.b32.xlu0 %v1883, 64
    %v1886 = vpop.permute.xlu0 %1885
    %v1888 = vmul.f32 %v1870, %v1886
    %s1889 = scalar_lea.vmem [#allocation4], 6
    %v1890 = vld [vmem:[%s1889] sm:$0x3]
    %1892 = vrot.lane.b32.xlu0 %v1888, 32
    %v1893 = vpop.permute.xlu0 %1892
    %v1894 = vsel %vm191, %v1893, 0
    %1896 = vmatprep.subr.mxu0 0.0
    %1897 = vmatpush1.msra.mxu0 %v70
    %1898 = vmatprep.subr.mxu0 0.0
    %1899 = vmatpush1.msra.mxu0 %v71
    %1900 = vmatprep.subr.mxu0 0.0
    %1901 = vmatpush1.msra.mxu0 %v72
    %1902 = vmatprep.subr.mxu0 0.0
    %1903 = vmatpush1.msra.mxu0 %v73
    %1904 = vmatprep.subr.mxu0 0.0
    %1905 = vmatpush1.msra.mxu0 0.0
    %1906 = vmatprep.subr.mxu0 0.0
    %1907 = vmatpush1.msra.mxu0 0.0
    %1908 = vmatprep.subr.mxu0 0.0
    %1909 = vmatpush1.msra.mxu0 0.0
    %1910 = vmatprep.subr.mxu0 0.0
    %1911 = vmatpush1.msra.mxu0 0.0
    %1912 = vmatprep.subr.mxu0 0.0
    %1913 = vmatpush1.msra.mxu0 0.0
    %1914 = vmatprep.subr.mxu0 0.0
    %1915 = vmatpush1.msra.mxu0 0.0
    %1916 = vmatprep.subr.mxu0 0.0
    %1917 = vmatpush1.msra.mxu0 0.0
    %1918 = vmatprep.subr.mxu0 0.0
    %1919 = vmatpush1.msra.mxu0 0.0
    %1920 = vmatprep.subr.mxu0 0.0
    %1921 = vmatpush1.msra.mxu0 0.0
    %1922 = vmatprep.subr.mxu0 0.0
    %1923 = vmatpush1.msra.mxu0 0.0
    %1924 = vmatprep.subr.mxu0 0.0
    %1925 = vmatpush1.msra.mxu0 0.0
    %1926 = vmatprep.subr.mxu0 0.0
    %1927 = vmatpush1.msra.mxu0 0.0
    %1928 = vmatprep.subr.mxu0 0.0
    %1929 = vmatpush1.msra.mxu0 0.0
    %1930 = vmatprep.subr.mxu0 0.0
    %1931 = vmatpush1.msra.mxu0 0.0
    %1932 = vmatprep.subr.mxu0 0.0
    %1933 = vmatpush1.msra.mxu0 0.0
    %1934 = vmatprep.subr.mxu0 0.0
    %1935 = vmatpush1.msra.mxu0 0.0
    %1936 = vmatprep.subr.mxu0 0.0
    %1937 = vmatpush1.msra.mxu0 0.0
    %1938 = vmatprep.subr.mxu0 0.0
    %1939 = vmatpush1.msra.mxu0 0.0
    %1940 = vmatprep.subr.mxu0 0.0
    %1941 = vmatpush1.msra.mxu0 0.0
    %1942 = vmatprep.subr.mxu0 0.0
    %1943 = vmatpush1.msra.mxu0 0.0
    %1944 = vmatprep.subr.mxu0 0.0
    %1945 = vmatpush1.msra.mxu0 0.0
    %1946 = vmatprep.subr.mxu0 0.0
    %1947 = vmatpush1.msra.mxu0 0.0
    %1948 = vmatprep.subr.mxu0 0.0
    %1949 = vmatpush1.msra.mxu0 0.0
    %1950 = vmatprep.subr.mxu0 0.0
    %1951 = vmatpush1.msra.mxu0 0.0
    %1952 = vmatprep.subr.mxu0 0.0
    %1953 = vmatpush1.msra.mxu0 0.0
    %1954 = vmatprep.subr.mxu0 0.0
    %1955 = vmatpush1.msra.mxu0 0.0
    %1956 = vmatprep.subr.mxu0 0.0
    %1957 = vmatpush1.msra.mxu0 0.0
    %1958 = vmatprep.subr.mxu0 0.0
    %1959 = vmatpush1.msra.mxu0 0.0
    %1960 = vmatprep.mubr.f32.mxu0 0.0
    %1961 = vmatmul.mubr.f32.gmra.mrb[0].mxu0 %v1894
    %v1962 = vpop.f32.mrb[0].mxu0
    %v1963 = vadd.f32 0.0, %v1962
    %v1964 = vpop.f32.mrb[0].mxu0
    %1965 = vdwg.mxu0
    %v1966 = vadd.f32 %v1890, %v1963
    %s1967 = scalar_lea.vmem %s1, 6
    %v1968 = vld [vmem:[%s1967] sm:$0x3]
    %v1969 = vmul.f32 %v1966, 0.5
    %v1970 = vmul.f32 %v1969, 1.442695
    %v1971 = vpow.pop %v1970
    %1973 = vrot.lane.b32.xlu0 %v1971, 120
    %v1974 = vpop.permute.xlu0 %1973
    %v1976 = vmul.f32 %v1968, %v1974
    %v1977 = vadd.f32 %v1976, %v1966
    %s1978 = scalar_lea.vmem %s19, 6
    %1979 = vst.msk [vmem:[%s1978] sm:$0x3] %vm1395, %v1966
    %s1980 = scalar_lea.vmem [#allocation9], 6
    %1981 = vst.msk [vmem:[%s1980] sm:$0x3] %vm1397, %v1977
    %1982 = vrot.lane.b32.xlu0 %v1888, 40
    %v1983 = vpop.permute.xlu0 %1982
    %v1985 = vsel %vm1402, %v1977, %v1983
    %v1987 = vsel %vm1211, %v1985, 0
    %1989 = vmatprep.subr.mxu0 0.0
    %1990 = vmatpush1.msra.mxu0 %v65
    %1991 = vmatprep.subr.mxu0 0.0
    %1992 = vmatpush1.msra.mxu0 %v66
    %1993 = vmatprep.subr.mxu0 0.0
    %1994 = vmatpush1.msra.mxu0 %v67
    %1995 = vmatprep.subr.mxu0 0.0
    %1996 = vmatpush1.msra.mxu0 %v68
    %1997 = vmatprep.subr.mxu0 0.0
    %1998 = vmatpush1.msra.mxu0 %v69
    %1999 = vmatprep.subr.mxu0 0.0
    %2000 = vmatpush1.msra.mxu0 0.0
    %2001 = vmatprep.subr.mxu0 0.0
    %2002 = vmatpush1.msra.mxu0 0.0
    %2003 = vmatprep.subr.mxu0 0.0
    %2004 = vmatpush1.msra.mxu0 0.0
    %2005 = vmatprep.subr.mxu0 0.0
    %2006 = vmatpush1.msra.mxu0 0.0
    %2007 = vmatprep.subr.mxu0 0.0
    %2008 = vmatpush1.msra.mxu0 0.0
    %2009 = vmatprep.subr.mxu0 0.0
    %2010 = vmatpush1.msra.mxu0 0.0
    %2011 = vmatprep.subr.mxu0 0.0
    %2012 = vmatpush1.msra.mxu0 0.0
    %2013 = vmatprep.subr.mxu0 0.0
    %2014 = vmatpush1.msra.mxu0 0.0
    %2015 = vmatprep.subr.mxu0 0.0
    %2016 = vmatpush1.msra.mxu0 0.0
    %2017 = vmatprep.subr.mxu0 0.0
    %2018 = vmatpush1.msra.mxu0 0.0
    %2019 = vmatprep.subr.mxu0 0.0
    %2020 = vmatpush1.msra.mxu0 0.0
    %2021 = vmatprep.subr.mxu0 0.0
    %2022 = vmatpush1.msra.mxu0 0.0
    %2023 = vmatprep.subr.mxu0 0.0
    %2024 = vmatpush1.msra.mxu0 0.0
    %2025 = vmatprep.subr.mxu0 0.0
    %2026 = vmatpush1.msra.mxu0 0.0
    %2027 = vmatprep.subr.mxu0 0.0
    %2028 = vmatpush1.msra.mxu0 0.0
    %2029 = vmatprep.subr.mxu0 0.0
    %2030 = vmatpush1.msra.mxu0 0.0
    %2031 = vmatprep.subr.mxu0 0.0
    %2032 = vmatpush1.msra.mxu0 0.0
    %2033 = vmatprep.subr.mxu0 0.0
    %2034 = vmatpush1.msra.mxu0 0.0
    %2035 = vmatprep.subr.mxu0 0.0
    %2036 = vmatpush1.msra.mxu0 0.0
    %2037 = vmatprep.subr.mxu0 0.0
    %2038 = vmatpush1.msra.mxu0 0.0
    %2039 = vmatprep.subr.mxu0 0.0
    %2040 = vmatpush1.msra.mxu0 0.0
    %2041 = vmatprep.subr.mxu0 0.0
    %2042 = vmatpush1.msra.mxu0 0.0
    %2043 = vmatprep.subr.mxu0 0.0
    %2044 = vmatpush1.msra.mxu0 0.0
    %2045 = vmatprep.subr.mxu0 0.0
    %2046 = vmatpush1.msra.mxu0 0.0
    %2047 = vmatprep.subr.mxu0 0.0
    %2048 = vmatpush1.msra.mxu0 0.0
    %2049 = vmatprep.subr.mxu0 0.0
    %2050 = vmatpush1.msra.mxu0 0.0
    %2051 = vmatprep.subr.mxu0 0.0
    %2052 = vmatpush1.msra.mxu0 0.0
    %2053 = vmatprep.mubr.f32.mxu0 0.0
    %2054 = vmatmul.mubr.f32.gmra.mrb[0].mxu0 %v1987
    %v2055 = vpop.f32.mrb[0].mxu0
    %v2056 = vadd.f32 %v83, %v2055
    %v2057 = vpop.f32.mrb[0].mxu0
    %2058 = vdwg.mxu0
    %v2059 = vxor.u32 %v2056, 2147483648
    %v2060 = vmul.f32 %v2059, 1.442695
    %v2061 = vpow.pop %v2060
    %v2062 = vadd.f32 %v2061, 1.0
    %v2063 = vrcp.pop %v2062
    %v2064 = vmul.f32 1.0, %v2063
    %v2065 = vtanh.pop %v2056
    %v2066 = vmul.f32 %v2064, %v1882
    %2068 = vrot.lane.b32.xlu0 %v2065, 64
    %v2069 = vpop.permute.xlu0 %2068
    %v2071 = vmul.f32 %v2064, %v2069
    %2073 = vrot.lane.b32.xlu0 %v2071, 32
    %v2074 = vpop.permute.xlu0 %2073
    %v2076 = vadd.f32 %v2066, %v2074
    %v2077 = vtanh.pop %v2076
    %2079 = vrot.lane.b32.xlu0 %v2077, 64
    %v2080 = vpop.permute.xlu0 %2079
    %v2082 = vmul.f32 %v2064, %v2080
    %s2083 = scalar_lea.vmem [#allocation4], 8
    %v2084 = vld [vmem:[%s2083] sm:$0x3]
    %2086 = vrot.lane.b32.xlu0 %v2082, 32
    %v2087 = vpop.permute.xlu0 %2086
    %v2088 = vsel %vm191, %v2087, 0
    %2090 = vmatprep.subr.mxu0 0.0
    %2091 = vmatpush1.msra.mxu0 %v70
    %2092 = vmatprep.subr.mxu0 0.0
    %2093 = vmatpush1.msra.mxu0 %v71
    %2094 = vmatprep.subr.mxu0 0.0
    %2095 = vmatpush1.msra.mxu0 %v72
    %2096 = vmatprep.subr.mxu0 0.0
    %2097 = vmatpush1.msra.mxu0 %v73
    %2098 = vmatprep.subr.mxu0 0.0
    %2099 = vmatpush1.msra.mxu0 0.0
    %2100 = vmatprep.subr.mxu0 0.0
    %2101 = vmatpush1.msra.mxu0 0.0
    %2102 = vmatprep.subr.mxu0 0.0
    %2103 = vmatpush1.msra.mxu0 0.0
    %2104 = vmatprep.subr.mxu0 0.0
    %2105 = vmatpush1.msra.mxu0 0.0
    %2106 = vmatprep.subr.mxu0 0.0
    %2107 = vmatpush1.msra.mxu0 0.0
    %2108 = vmatprep.subr.mxu0 0.0
    %2109 = vmatpush1.msra.mxu0 0.0
    %2110 = vmatprep.subr.mxu0 0.0
    %2111 = vmatpush1.msra.mxu0 0.0
    %2112 = vmatprep.subr.mxu0 0.0
    %2113 = vmatpush1.msra.mxu0 0.0
    %2114 = vmatprep.subr.mxu0 0.0
    %2115 = vmatpush1.msra.mxu0 0.0
    %2116 = vmatprep.subr.mxu0 0.0
    %2117 = vmatpush1.msra.mxu0 0.0
    %2118 = vmatprep.subr.mxu0 0.0
    %2119 = vmatpush1.msra.mxu0 0.0
    %2120 = vmatprep.subr.mxu0 0.0
    %2121 = vmatpush1.msra.mxu0 0.0
    %2122 = vmatprep.subr.mxu0 0.0
    %2123 = vmatpush1.msra.mxu0 0.0
    %2124 = vmatprep.subr.mxu0 0.0
    %2125 = vmatpush1.msra.mxu0 0.0
    %2126 = vmatprep.subr.mxu0 0.0
    %2127 = vmatpush1.msra.mxu0 0.0
    %2128 = vmatprep.subr.mxu0 0.0
    %2129 = vmatpush1.msra.mxu0 0.0
    %2130 = vmatprep.subr.mxu0 0.0
    %2131 = vmatpush1.msra.mxu0 0.0
    %2132 = vmatprep.subr.mxu0 0.0
    %2133 = vmatpush1.msra.mxu0 0.0
    %2134 = vmatprep.subr.mxu0 0.0
    %2135 = vmatpush1.msra.mxu0 0.0
    %2136 = vmatprep.subr.mxu0 0.0
    %2137 = vmatpush1.msra.mxu0 0.0
    %2138 = vmatprep.subr.mxu0 0.0
    %2139 = vmatpush1.msra.mxu0 0.0
    %2140 = vmatprep.subr.mxu0 0.0
    %2141 = vmatpush1.msra.mxu0 0.0
    %2142 = vmatprep.subr.mxu0 0.0
    %2143 = vmatpush1.msra.mxu0 0.0
    %2144 = vmatprep.subr.mxu0 0.0
    %2145 = vmatpush1.msra.mxu0 0.0
    %2146 = vmatprep.subr.mxu0 0.0
    %2147 = vmatpush1.msra.mxu0 0.0
    %2148 = vmatprep.subr.mxu0 0.0
    %2149 = vmatpush1.msra.mxu0 0.0
    %2150 = vmatprep.subr.mxu0 0.0
    %2151 = vmatpush1.msra.mxu0 0.0
    %2152 = vmatprep.subr.mxu0 0.0
    %2153 = vmatpush1.msra.mxu0 0.0
    %2154 = vmatprep.mubr.f32.mxu0 0.0
    %2155 = vmatmul.mubr.f32.gmra.mrb[0].mxu0 %v2088
    %v2156 = vpop.f32.mrb[0].mxu0
    %v2157 = vadd.f32 0.0, %v2156
    %v2158 = vpop.f32.mrb[0].mxu0
    %2159 = vdwg.mxu0
    %v2160 = vadd.f32 %v2084, %v2157
    %s2161 = scalar_lea.vmem %s1, 8
    %v2162 = vld [vmem:[%s2161] sm:$0x3]
    %v2163 = vmul.f32 %v2160, 0.5
    %v2164 = vmul.f32 %v2163, 1.442695
    %v2165 = vpow.pop %v2164
    %2167 = vrot.lane.b32.xlu0 %v2165, 120
    %v2168 = vpop.permute.xlu0 %2167
    %v2170 = vmul.f32 %v2162, %v2168
    %v2171 = vadd.f32 %v2170, %v2160
    %s2172 = scalar_lea.vmem %s19, 8
    %2173 = vst.msk [vmem:[%s2172] sm:$0x3] %vm1395, %v2160
    %s2174 = scalar_lea.vmem [#allocation9], 8
    %2175 = vst.msk [vmem:[%s2174] sm:$0x3] %vm1397, %v2171
    %2176 = vrot.lane.b32.xlu0 %v2082, 40
    %v2177 = vpop.permute.xlu0 %2176
    %v2179 = vsel %vm1402, %v2171, %v2177
    %v2181 = vsel %vm1211, %v2179, 0
    %2183 = vmatprep.subr.mxu0 0.0
    %2184 = vmatpush1.msra.mxu0 %v65
    %2185 = vmatprep.subr.mxu0 0.0
    %2186 = vmatpush1.msra.mxu0 %v66
    %2187 = vmatprep.subr.mxu0 0.0
    %2188 = vmatpush1.msra.mxu0 %v67
    %2189 = vmatprep.subr.mxu0 0.0
    %2190 = vmatpush1.msra.mxu0 %v68
    %2191 = vmatprep.subr.mxu0 0.0
    %2192 = vmatpush1.msra.mxu0 %v69
    %2193 = vmatprep.subr.mxu0 0.0
    %2194 = vmatpush1.msra.mxu0 0.0
    %2195 = vmatprep.subr.mxu0 0.0
    %2196 = vmatpush1.msra.mxu0 0.0
    %2197 = vmatprep.subr.mxu0 0.0
    %2198 = vmatpush1.msra.mxu0 0.0
    %2199 = vmatprep.subr.mxu0 0.0
    %2200 = vmatpush1.msra.mxu0 0.0
    %2201 = vmatprep.subr.mxu0 0.0
    %2202 = vmatpush1.msra.mxu0 0.0
    %2203 = vmatprep.subr.mxu0 0.0
    %2204 = vmatpush1.msra.mxu0 0.0
    %2205 = vmatprep.subr.mxu0 0.0
    %2206 = vmatpush1.msra.mxu0 0.0
    %2207 = vmatprep.subr.mxu0 0.0
    %2208 = vmatpush1.msra.mxu0 0.0
    %2209 = vmatprep.subr.mxu0 0.0
    %2210 = vmatpush1.msra.mxu0 0.0
    %2211 = vmatprep.subr.mxu0 0.0
    %2212 = vmatpush1.msra.mxu0 0.0
    %2213 = vmatprep.subr.mxu0 0.0
    %2214 = vmatpush1.msra.mxu0 0.0
    %2215 = vmatprep.subr.mxu0 0.0
    %2216 = vmatpush1.msra.mxu0 0.0
    %2217 = vmatprep.subr.mxu0 0.0
    %2218 = vmatpush1.msra.mxu0 0.0
    %2219 = vmatprep.subr.mxu0 0.0
    %2220 = vmatpush1.msra.mxu0 0.0
    %2221 = vmatprep.subr.mxu0 0.0
    %2222 = vmatpush1.msra.mxu0 0.0
    %2223 = vmatprep.subr.mxu0 0.0
    %2224 = vmatpush1.msra.mxu0 0.0
    %2225 = vmatprep.subr.mxu0 0.0
    %2226 = vmatpush1.msra.mxu0 0.0
    %2227 = vmatprep.subr.mxu0 0.0
    %2228 = vmatpush1.msra.mxu0 0.0
    %2229 = vmatprep.subr.mxu0 0.0
    %2230 = vmatpush1.msra.mxu0 0.0
    %2231 = vmatprep.subr.mxu0 0.0
    %2232 = vmatpush1.msra.mxu0 0.0
    %2233 = vmatprep.subr.mxu0 0.0
    %2234 = vmatpush1.msra.mxu0 0.0
    %2235 = vmatprep.subr.mxu0 0.0
    %2236 = vmatpush1.msra.mxu0 0.0
    %2237 = vmatprep.subr.mxu0 0.0
    %2238 = vmatpush1.msra.mxu0 0.0
    %2239 = vmatprep.subr.mxu0 0.0
    %2240 = vmatpush1.msra.mxu0 0.0
    %2241 = vmatprep.subr.mxu0 0.0
    %2242 = vmatpush1.msra.mxu0 0.0
    %2243 = vmatprep.subr.mxu0 0.0
    %2244 = vmatpush1.msra.mxu0 0.0
    %2245 = vmatprep.subr.mxu0 0.0
    %2246 = vmatpush1.msra.mxu0 0.0
    %2247 = vmatprep.mubr.f32.mxu0 0.0
    %2248 = vmatmul.mubr.f32.gmra.mrb[0].mxu0 %v2181
    %v2249 = vpop.f32.mrb[0].mxu0
    %v2250 = vadd.f32 %v83, %v2249
    %v2251 = vpop.f32.mrb[0].mxu0
    %2252 = vdwg.mxu0
    %v2253 = vxor.u32 %v2250, 2147483648
    %v2254 = vmul.f32 %v2253, 1.442695
    %v2255 = vpow.pop %v2254
    %v2256 = vadd.f32 %v2255, 1.0
    %v2257 = vrcp.pop %v2256
    %v2258 = vmul.f32 1.0, %v2257
    %v2259 = vtanh.pop %v2250
    %v2260 = vmul.f32 %v2258, %v2076
    %2262 = vrot.lane.b32.xlu0 %v2259, 64
    %v2263 = vpop.permute.xlu0 %2262
    %v2265 = vmul.f32 %v2258, %v2263
    %2267 = vrot.lane.b32.xlu0 %v2265, 32
    %v2268 = vpop.permute.xlu0 %2267
    %v2270 = vadd.f32 %v2260, %v2268
    %v2271 = vtanh.pop %v2270
    %2273 = vrot.lane.b32.xlu0 %v2271, 64
    %v2274 = vpop.permute.xlu0 %2273
    %v2276 = vmul.f32 %v2258, %v2274
    %s2277 = scalar_lea.vmem [#allocation4], 10
    %v2278 = vld [vmem:[%s2277] sm:$0x3]
    %2280 = vrot.lane.b32.xlu0 %v2276, 32
    %v2281 = vpop.permute.xlu0 %2280
    %v2282 = vsel %vm191, %v2281, 0
    %2284 = vmatprep.subr.mxu0 0.0
    %2285 = vmatpush1.msra.mxu0 %v70
    %2286 = vmatprep.subr.mxu0 0.0
    %2287 = vmatpush1.msra.mxu0 %v71
    %2288 = vmatprep.subr.mxu0 0.0
    %2289 = vmatpush1.msra.mxu0 %v72
    %2290 = vmatprep.subr.mxu0 0.0
    %2291 = vmatpush1.msra.mxu0 %v73
    %2292 = vmatprep.subr.mxu0 0.0
    %2293 = vmatpush1.msra.mxu0 0.0
    %2294 = vmatprep.subr.mxu0 0.0
    %2295 = vmatpush1.msra.mxu0 0.0
    %2296 = vmatprep.subr.mxu0 0.0
    %2297 = vmatpush1.msra.mxu0 0.0
    %2298 = vmatprep.subr.mxu0 0.0
    %2299 = vmatpush1.msra.mxu0 0.0
    %2300 = vmatprep.subr.mxu0 0.0
    %2301 = vmatpush1.msra.mxu0 0.0
    %2302 = vmatprep.subr.mxu0 0.0
    %2303 = vmatpush1.msra.mxu0 0.0
    %2304 = vmatprep.subr.mxu0 0.0
    %2305 = vmatpush1.msra.mxu0 0.0
    %2306 = vmatprep.subr.mxu0 0.0
    %2307 = vmatpush1.msra.mxu0 0.0
    %2308 = vmatprep.subr.mxu0 0.0
    %2309 = vmatpush1.msra.mxu0 0.0
    %2310 = vmatprep.subr.mxu0 0.0
    %2311 = vmatpush1.msra.mxu0 0.0
    %2312 = vmatprep.subr.mxu0 0.0
    %2313 = vmatpush1.msra.mxu0 0.0
    %2314 = vmatprep.subr.mxu0 0.0
    %2315 = vmatpush1.msra.mxu0 0.0
    %2316 = vmatprep.subr.mxu0 0.0
    %2317 = vmatpush1.msra.mxu0 0.0
    %2318 = vmatprep.subr.mxu0 0.0
    %2319 = vmatpush1.msra.mxu0 0.0
    %2320 = vmatprep.subr.mxu0 0.0
    %2321 = vmatpush1.msra.mxu0 0.0
    %2322 = vmatprep.subr.mxu0 0.0
    %2323 = vmatpush1.msra.mxu0 0.0
    %2324 = vmatprep.subr.mxu0 0.0
    %2325 = vmatpush1.msra.mxu0 0.0
    %2326 = vmatprep.subr.mxu0 0.0
    %2327 = vmatpush1.msra.mxu0 0.0
    %2328 = vmatprep.subr.mxu0 0.0
    %2329 = vmatpush1.msra.mxu0 0.0
    %2330 = vmatprep.subr.mxu0 0.0
    %2331 = vmatpush1.msra.mxu0 0.0
    %2332 = vmatprep.subr.mxu0 0.0
    %2333 = vmatpush1.msra.mxu0 0.0
    %2334 = vmatprep.subr.mxu0 0.0
    %2335 = vmatpush1.msra.mxu0 0.0
    %2336 = vmatprep.subr.mxu0 0.0
    %2337 = vmatpush1.msra.mxu0 0.0
    %2338 = vmatprep.subr.mxu0 0.0
    %2339 = vmatpush1.msra.mxu0 0.0
    %2340 = vmatprep.subr.mxu0 0.0
    %2341 = vmatpush1.msra.mxu0 0.0
    %2342 = vmatprep.subr.mxu0 0.0
    %2343 = vmatpush1.msra.mxu0 0.0
    %2344 = vmatprep.subr.mxu0 0.0
    %2345 = vmatpush1.msra.mxu0 0.0
    %2346 = vmatprep.subr.mxu0 0.0
    %2347 = vmatpush1.msra.mxu0 0.0
    %2348 = vmatprep.mubr.f32.mxu0 0.0
    %2349 = vmatmul.mubr.f32.gmra.mrb[0].mxu0 %v2282
    %v2350 = vpop.f32.mrb[0].mxu0
    %v2351 = vadd.f32 0.0, %v2350
    %v2352 = vpop.f32.mrb[0].mxu0
    %2353 = vdwg.mxu0
    %v2354 = vadd.f32 %v2278, %v2351
    %s2355 = scalar_lea.vmem %s1, 10
    %v2356 = vld [vmem:[%s2355] sm:$0x3]
    %v2357 = vmul.f32 %v2354, 0.5
    %v2358 = vmul.f32 %v2357, 1.442695
    %v2359 = vpow.pop %v2358
    %2361 = vrot.lane.b32.xlu0 %v2359, 120
    %v2362 = vpop.permute.xlu0 %2361
    %v2364 = vmul.f32 %v2356, %v2362
    %v2365 = vadd.f32 %v2364, %v2354
    %s2366 = scalar_lea.vmem %s19, 10
    %2367 = vst.msk [vmem:[%s2366] sm:$0x3] %vm1395, %v2354
    %s2368 = scalar_lea.vmem [#allocation9], 10
    %2369 = vst.msk [vmem:[%s2368] sm:$0x3] %vm1397, %v2365
    %2370 = vrot.lane.b32.xlu0 %v2276, 40
    %v2371 = vpop.permute.xlu0 %2370
    %v2373 = vsel %vm1402, %v2365, %v2371
    %v2375 = vsel %vm1211, %v2373, 0
    %2377 = vmatprep.subr.mxu0 0.0
    %2378 = vmatpush1.msra.mxu0 %v65
    %2379 = vmatprep.subr.mxu0 0.0
    %2380 = vmatpush1.msra.mxu0 %v66
    %2381 = vmatprep.subr.mxu0 0.0
    %2382 = vmatpush1.msra.mxu0 %v67
    %2383 = vmatprep.subr.mxu0 0.0
    %2384 = vmatpush1.msra.mxu0 %v68
    %2385 = vmatprep.subr.mxu0 0.0
    %2386 = vmatpush1.msra.mxu0 %v69
    %2387 = vmatprep.subr.mxu0 0.0
    %2388 = vmatpush1.msra.mxu0 0.0
    %2389 = vmatprep.subr.mxu0 0.0
    %2390 = vmatpush1.msra.mxu0 0.0
    %2391 = vmatprep.subr.mxu0 0.0
    %2392 = vmatpush1.msra.mxu0 0.0
    %2393 = vmatprep.subr.mxu0 0.0
    %2394 = vmatpush1.msra.mxu0 0.0
    %2395 = vmatprep.subr.mxu0 0.0
    %2396 = vmatpush1.msra.mxu0 0.0
    %2397 = vmatprep.subr.mxu0 0.0
    %2398 = vmatpush1.msra.mxu0 0.0
    %2399 = vmatprep.subr.mxu0 0.0
    %2400 = vmatpush1.msra.mxu0 0.0
    %2401 = vmatprep.subr.mxu0 0.0
    %2402 = vmatpush1.msra.mxu0 0.0
    %2403 = vmatprep.subr.mxu0 0.0
    %2404 = vmatpush1.msra.mxu0 0.0
    %2405 = vmatprep.subr.mxu0 0.0
    %2406 = vmatpush1.msra.mxu0 0.0
    %2407 = vmatprep.subr.mxu0 0.0
    %2408 = vmatpush1.msra.mxu0 0.0
    %2409 = vmatprep.subr.mxu0 0.0
    %2410 = vmatpush1.msra.mxu0 0.0
    %2411 = vmatprep.subr.mxu0 0.0
    %2412 = vmatpush1.msra.mxu0 0.0
    %2413 = vmatprep.subr.mxu0 0.0
    %2414 = vmatpush1.msra.mxu0 0.0
    %2415 = vmatprep.subr.mxu0 0.0
    %2416 = vmatpush1.msra.mxu0 0.0
    %2417 = vmatprep.subr.mxu0 0.0
    %2418 = vmatpush1.msra.mxu0 0.0
    %2419 = vmatprep.subr.mxu0 0.0
    %2420 = vmatpush1.msra.mxu0 0.0
    %2421 = vmatprep.subr.mxu0 0.0
    %2422 = vmatpush1.msra.mxu0 0.0
    %2423 = vmatprep.subr.mxu0 0.0
    %2424 = vmatpush1.msra.mxu0 0.0
    %2425 = vmatprep.subr.mxu0 0.0
    %2426 = vmatpush1.msra.mxu0 0.0
    %2427 = vmatprep.subr.mxu0 0.0
    %2428 = vmatpush1.msra.mxu0 0.0
    %2429 = vmatprep.subr.mxu0 0.0
    %2430 = vmatpush1.msra.mxu0 0.0
    %2431 = vmatprep.subr.mxu0 0.0
    %2432 = vmatpush1.msra.mxu0 0.0
    %2433 = vmatprep.subr.mxu0 0.0
    %2434 = vmatpush1.msra.mxu0 0.0
    %2435 = vmatprep.subr.mxu0 0.0
    %2436 = vmatpush1.msra.mxu0 0.0
    %2437 = vmatprep.subr.mxu0 0.0
    %2438 = vmatpush1.msra.mxu0 0.0
    %2439 = vmatprep.subr.mxu0 0.0
    %2440 = vmatpush1.msra.mxu0 0.0
    %2441 = vmatprep.mubr.f32.mxu0 0.0
    %2442 = vmatmul.mubr.f32.gmra.mrb[0].mxu0 %v2375
    %v2443 = vpop.f32.mrb[0].mxu0
    %v2444 = vadd.f32 %v83, %v2443
    %v2445 = vpop.f32.mrb[0].mxu0
    %2446 = vdwg.mxu0
    %v2447 = vxor.u32 %v2444, 2147483648
    %v2448 = vmul.f32 %v2447, 1.442695
    %v2449 = vpow.pop %v2448
    %v2450 = vadd.f32 %v2449, 1.0
    %v2451 = vrcp.pop %v2450
    %v2452 = vmul.f32 1.0, %v2451
    %v2453 = vtanh.pop %v2444
    %v2454 = vmul.f32 %v2452, %v2270
    %2456 = vrot.lane.b32.xlu0 %v2453, 64
    %v2457 = vpop.permute.xlu0 %2456
    %v2459 = vmul.f32 %v2452, %v2457
    %2461 = vrot.lane.b32.xlu0 %v2459, 32
    %v2462 = vpop.permute.xlu0 %2461
    %v2464 = vadd.f32 %v2454, %v2462
    %v2465 = vtanh.pop %v2464
    %2467 = vrot.lane.b32.xlu0 %v2465, 64
    %v2468 = vpop.permute.xlu0 %2467
    %v2470 = vmul.f32 %v2452, %v2468
    %s2471 = scalar_lea.vmem [#allocation4], 12
    %v2472 = vld [vmem:[%s2471] sm:$0x3]
    %2474 = vrot.lane.b32.xlu0 %v2470, 32
    %v2475 = vpop.permute.xlu0 %2474
    %v2476 = vsel %vm191, %v2475, 0
    %2478 = vmatprep.subr.mxu0 0.0
    %2479 = vmatpush1.msra.mxu0 %v70
    %2480 = vmatprep.subr.mxu0 0.0
    %2481 = vmatpush1.msra.mxu0 %v71
    %2482 = vmatprep.subr.mxu0 0.0
    %2483 = vmatpush1.msra.mxu0 %v72
    %2484 = vmatprep.subr.mxu0 0.0
    %2485 = vmatpush1.msra.mxu0 %v73
    %2486 = vmatprep.subr.mxu0 0.0
    %2487 = vmatpush1.msra.mxu0 0.0
    %2488 = vmatprep.subr.mxu0 0.0
    %2489 = vmatpush1.msra.mxu0 0.0
    %2490 = vmatprep.subr.mxu0 0.0
    %2491 = vmatpush1.msra.mxu0 0.0
    %2492 = vmatprep.subr.mxu0 0.0
    %2493 = vmatpush1.msra.mxu0 0.0
    %2494 = vmatprep.subr.mxu0 0.0
    %2495 = vmatpush1.msra.mxu0 0.0
    %2496 = vmatprep.subr.mxu0 0.0
    %2497 = vmatpush1.msra.mxu0 0.0
    %2498 = vmatprep.subr.mxu0 0.0
    %2499 = vmatpush1.msra.mxu0 0.0
    %2500 = vmatprep.subr.mxu0 0.0
    %2501 = vmatpush1.msra.mxu0 0.0
    %2502 = vmatprep.subr.mxu0 0.0
    %2503 = vmatpush1.msra.mxu0 0.0
    %2504 = vmatprep.subr.mxu0 0.0
    %2505 = vmatpush1.msra.mxu0 0.0
    %2506 = vmatprep.subr.mxu0 0.0
    %2507 = vmatpush1.msra.mxu0 0.0
    %2508 = vmatprep.subr.mxu0 0.0
    %2509 = vmatpush1.msra.mxu0 0.0
    %2510 = vmatprep.subr.mxu0 0.0
    %2511 = vmatpush1.msra.mxu0 0.0
    %2512 = vmatprep.subr.mxu0 0.0
    %2513 = vmatpush1.msra.mxu0 0.0
    %2514 = vmatprep.subr.mxu0 0.0
    %2515 = vmatpush1.msra.mxu0 0.0
    %2516 = vmatprep.subr.mxu0 0.0
    %2517 = vmatpush1.msra.mxu0 0.0
    %2518 = vmatprep.subr.mxu0 0.0
    %2519 = vmatpush1.msra.mxu0 0.0
    %2520 = vmatprep.subr.mxu0 0.0
    %2521 = vmatpush1.msra.mxu0 0.0
    %2522 = vmatprep.subr.mxu0 0.0
    %2523 = vmatpush1.msra.mxu0 0.0
    %2524 = vmatprep.subr.mxu0 0.0
    %2525 = vmatpush1.msra.mxu0 0.0
    %2526 = vmatprep.subr.mxu0 0.0
    %2527 = vmatpush1.msra.mxu0 0.0
    %2528 = vmatprep.subr.mxu0 0.0
    %2529 = vmatpush1.msra.mxu0 0.0
    %2530 = vmatprep.subr.mxu0 0.0
    %2531 = vmatpush1.msra.mxu0 0.0
    %2532 = vmatprep.subr.mxu0 0.0
    %2533 = vmatpush1.msra.mxu0 0.0
    %2534 = vmatprep.subr.mxu0 0.0
    %2535 = vmatpush1.msra.mxu0 0.0
    %2536 = vmatprep.subr.mxu0 0.0
    %2537 = vmatpush1.msra.mxu0 0.0
    %2538 = vmatprep.subr.mxu0 0.0
    %2539 = vmatpush1.msra.mxu0 0.0
    %2540 = vmatprep.subr.mxu0 0.0
    %2541 = vmatpush1.msra.mxu0 0.0
    %2542 = vmatprep.mubr.f32.mxu0 0.0
    %2543 = vmatmul.mubr.f32.gmra.mrb[0].mxu0 %v2476
    %v2544 = vpop.f32.mrb[0].mxu0
    %v2545 = vadd.f32 0.0, %v2544
    %v2546 = vpop.f32.mrb[0].mxu0
    %2547 = vdwg.mxu0
    %v2548 = vadd.f32 %v2472, %v2545
    %s2549 = scalar_lea.vmem %s1, 12
    %v2550 = vld [vmem:[%s2549] sm:$0x3]
    %v2551 = vmul.f32 %v2548, 0.5
    %v2552 = vmul.f32 %v2551, 1.442695
    %v2553 = vpow.pop %v2552
    %2555 = vrot.lane.b32.xlu0 %v2553, 120
    %v2556 = vpop.permute.xlu0 %2555
    %v2558 = vmul.f32 %v2550, %v2556
    %v2559 = vadd.f32 %v2558, %v2548
    %s2560 = scalar_lea.vmem %s19, 12
    %2561 = vst.msk [vmem:[%s2560] sm:$0x3] %vm1395, %v2548
    %s2562 = scalar_lea.vmem [#allocation9], 12
    %2563 = vst.msk [vmem:[%s2562] sm:$0x3] %vm1397, %v2559
    %2564 = vrot.lane.b32.xlu0 %v2470, 40
    %v2565 = vpop.permute.xlu0 %2564
    %v2567 = vsel %vm1402, %v2559, %v2565
    %v2569 = vsel %vm1211, %v2567, 0
    %2571 = vmatprep.subr.mxu0 0.0
    %2572 = vmatpush1.msra.mxu0 %v65
    %2573 = vmatprep.subr.mxu0 0.0
    %2574 = vmatpush1.msra.mxu0 %v66
    %2575 = vmatprep.subr.mxu0 0.0
    %2576 = vmatpush1.msra.mxu0 %v67
    %2577 = vmatprep.subr.mxu0 0.0
    %2578 = vmatpush1.msra.mxu0 %v68
    %2579 = vmatprep.subr.mxu0 0.0
    %2580 = vmatpush1.msra.mxu0 %v69
    %2581 = vmatprep.subr.mxu0 0.0
    %2582 = vmatpush1.msra.mxu0 0.0
    %2583 = vmatprep.subr.mxu0 0.0
    %2584 = vmatpush1.msra.mxu0 0.0
    %2585 = vmatprep.subr.mxu0 0.0
    %2586 = vmatpush1.msra.mxu0 0.0
    %2587 = vmatprep.subr.mxu0 0.0
    %2588 = vmatpush1.msra.mxu0 0.0
    %2589 = vmatprep.subr.mxu0 0.0
    %2590 = vmatpush1.msra.mxu0 0.0
    %2591 = vmatprep.subr.mxu0 0.0
    %2592 = vmatpush1.msra.mxu0 0.0
    %2593 = vmatprep.subr.mxu0 0.0
    %2594 = vmatpush1.msra.mxu0 0.0
    %2595 = vmatprep.subr.mxu0 0.0
    %2596 = vmatpush1.msra.mxu0 0.0
    %2597 = vmatprep.subr.mxu0 0.0
    %2598 = vmatpush1.msra.mxu0 0.0
    %2599 = vmatprep.subr.mxu0 0.0
    %2600 = vmatpush1.msra.mxu0 0.0
    %2601 = vmatprep.subr.mxu0 0.0
    %2602 = vmatpush1.msra.mxu0 0.0
    %2603 = vmatprep.subr.mxu0 0.0
    %2604 = vmatpush1.msra.mxu0 0.0
    %2605 = vmatprep.subr.mxu0 0.0
    %2606 = vmatpush1.msra.mxu0 0.0
    %2607 = vmatprep.subr.mxu0 0.0
    %2608 = vmatpush1.msra.mxu0 0.0
    %2609 = vmatprep.subr.mxu0 0.0
    %2610 = vmatpush1.msra.mxu0 0.0
    %2611 = vmatprep.subr.mxu0 0.0
    %2612 = vmatpush1.msra.mxu0 0.0
    %2613 = vmatprep.subr.mxu0 0.0
    %2614 = vmatpush1.msra.mxu0 0.0
    %2615 = vmatprep.subr.mxu0 0.0
    %2616 = vmatpush1.msra.mxu0 0.0
    %2617 = vmatprep.subr.mxu0 0.0
    %2618 = vmatpush1.msra.mxu0 0.0
    %2619 = vmatprep.subr.mxu0 0.0
    %2620 = vmatpush1.msra.mxu0 0.0
    %2621 = vmatprep.subr.mxu0 0.0
    %2622 = vmatpush1.msra.mxu0 0.0
    %2623 = vmatprep.subr.mxu0 0.0
    %2624 = vmatpush1.msra.mxu0 0.0
    %2625 = vmatprep.subr.mxu0 0.0
    %2626 = vmatpush1.msra.mxu0 0.0
    %2627 = vmatprep.subr.mxu0 0.0
    %2628 = vmatpush1.msra.mxu0 0.0
    %2629 = vmatprep.subr.mxu0 0.0
    %2630 = vmatpush1.msra.mxu0 0.0
    %2631 = vmatprep.subr.mxu0 0.0
    %2632 = vmatpush1.msra.mxu0 0.0
    %2633 = vmatprep.subr.mxu0 0.0
    %2634 = vmatpush1.msra.mxu0 0.0
    %2635 = vmatprep.mubr.f32.mxu0 0.0
    %2636 = vmatmul.mubr.f32.gmra.mrb[0].mxu0 %v2569
    %v2637 = vpop.f32.mrb[0].mxu0
    %v2638 = vadd.f32 %v83, %v2637
    %v2639 = vpop.f32.mrb[0].mxu0
    %2640 = vdwg.mxu0
    %v2641 = vxor.u32 %v2638, 2147483648
    %v2642 = vmul.f32 %v2641, 1.442695
    %v2643 = vpow.pop %v2642
    %v2644 = vadd.f32 %v2643, 1.0
    %v2645 = vrcp.pop %v2644
    %v2646 = vmul.f32 1.0, %v2645
    %v2647 = vtanh.pop %v2638
    %v2648 = vmul.f32 %v2646, %v2464
    %2650 = vrot.lane.b32.xlu0 %v2647, 64
    %v2651 = vpop.permute.xlu0 %2650
    %v2653 = vmul.f32 %v2646, %v2651
    %2655 = vrot.lane.b32.xlu0 %v2653, 32
    %v2656 = vpop.permute.xlu0 %2655
    %v2658 = vadd.f32 %v2648, %v2656
    %v2659 = vtanh.pop %v2658
    %2661 = vrot.lane.b32.xlu0 %v2659, 64
    %v2662 = vpop.permute.xlu0 %2661
    %v2664 = vmul.f32 %v2646, %v2662
    %s2665 = scalar_lea.vmem [#allocation4], 14
    %v2666 = vld [vmem:[%s2665] sm:$0x3]
    %2668 = vrot.lane.b32.xlu0 %v2664, 32
    %v2669 = vpop.permute.xlu0 %2668
    %v2670 = vsel %vm191, %v2669, 0
    %2672 = vmatprep.subr.mxu0 0.0
    %2673 = vmatpush1.msra.mxu0 %v70
    %2674 = vmatprep.subr.mxu0 0.0
    %2675 = vmatpush1.msra.mxu0 %v71
    %2676 = vmatprep.subr.mxu0 0.0
    %2677 = vmatpush1.msra.mxu0 %v72
    %2678 = vmatprep.subr.mxu0 0.0
    %2679 = vmatpush1.msra.mxu0 %v73
    %2680 = vmatprep.subr.mxu0 0.0
    %2681 = vmatpush1.msra.mxu0 0.0
    %2682 = vmatprep.subr.mxu0 0.0
    %2683 = vmatpush1.msra.mxu0 0.0
    %2684 = vmatprep.subr.mxu0 0.0
    %2685 = vmatpush1.msra.mxu0 0.0
    %2686 = vmatprep.subr.mxu0 0.0
    %2687 = vmatpush1.msra.mxu0 0.0
    %2688 = vmatprep.subr.mxu0 0.0
    %2689 = vmatpush1.msra.mxu0 0.0
    %2690 = vmatprep.subr.mxu0 0.0
    %2691 = vmatpush1.msra.mxu0 0.0
    %2692 = vmatprep.subr.mxu0 0.0
    %2693 = vmatpush1.msra.mxu0 0.0
    %2694 = vmatprep.subr.mxu0 0.0
    %2695 = vmatpush1.msra.mxu0 0.0
    %2696 = vmatprep.subr.mxu0 0.0
    %2697 = vmatpush1.msra.mxu0 0.0
    %2698 = vmatprep.subr.mxu0 0.0
    %2699 = vmatpush1.msra.mxu0 0.0
    %2700 = vmatprep.subr.mxu0 0.0
    %2701 = vmatpush1.msra.mxu0 0.0
    %2702 = vmatprep.subr.mxu0 0.0
    %2703 = vmatpush1.msra.mxu0 0.0
    %2704 = vmatprep.subr.mxu0 0.0
    %2705 = vmatpush1.msra.mxu0 0.0
    %2706 = vmatprep.subr.mxu0 0.0
    %2707 = vmatpush1.msra.mxu0 0.0
    %2708 = vmatprep.subr.mxu0 0.0
    %2709 = vmatpush1.msra.mxu0 0.0
    %2710 = vmatprep.subr.mxu0 0.0
    %2711 = vmatpush1.msra.mxu0 0.0
    %2712 = vmatprep.subr.mxu0 0.0
    %2713 = vmatpush1.msra.mxu0 0.0
    %2714 = vmatprep.subr.mxu0 0.0
    %2715 = vmatpush1.msra.mxu0 0.0
    %2716 = vmatprep.subr.mxu0 0.0
    %2717 = vmatpush1.msra.mxu0 0.0
    %2718 = vmatprep.subr.mxu0 0.0
    %2719 = vmatpush1.msra.mxu0 0.0
    %2720 = vmatprep.subr.mxu0 0.0
    %2721 = vmatpush1.msra.mxu0 0.0
    %2722 = vmatprep.subr.mxu0 0.0
    %2723 = vmatpush1.msra.mxu0 0.0
    %2724 = vmatprep.subr.mxu0 0.0
    %2725 = vmatpush1.msra.mxu0 0.0
    %2726 = vmatprep.subr.mxu0 0.0
    %2727 = vmatpush1.msra.mxu0 0.0
    %2728 = vmatprep.subr.mxu0 0.0
    %2729 = vmatpush1.msra.mxu0 0.0
    %2730 = vmatprep.subr.mxu0 0.0
    %2731 = vmatpush1.msra.mxu0 0.0
    %2732 = vmatprep.subr.mxu0 0.0
    %2733 = vmatpush1.msra.mxu0 0.0
    %2734 = vmatprep.subr.mxu0 0.0
    %2735 = vmatpush1.msra.mxu0 0.0
    %2736 = vmatprep.mubr.f32.mxu0 0.0
    %2737 = vmatmul.mubr.f32.gmra.mrb[0].mxu0 %v2670
    %v2738 = vpop.f32.mrb[0].mxu0
    %v2739 = vadd.f32 0.0, %v2738
    %v2740 = vpop.f32.mrb[0].mxu0
    %2741 = vdwg.mxu0
    %v2742 = vadd.f32 %v2666, %v2739
    %s2743 = scalar_lea.vmem %s1, 14
    %v2744 = vld [vmem:[%s2743] sm:$0x3]
    %v2745 = vmul.f32 %v2742, 0.5
    %v2746 = vmul.f32 %v2745, 1.442695
    %v2747 = vpow.pop %v2746
    %2749 = vrot.lane.b32.xlu0 %v2747, 120
    %v2750 = vpop.permute.xlu0 %2749
    %v2752 = vmul.f32 %v2744, %v2750
    %v2753 = vadd.f32 %v2752, %v2742
    %s2754 = scalar_lea.vmem %s19, 14
    %2755 = vst.msk [vmem:[%s2754] sm:$0x3] %vm1395, %v2742
    %s2756 = scalar_lea.vmem [#allocation9], 14
    %2757 = vst.msk [vmem:[%s2756] sm:$0x3] %vm1397, %v2753
    %v2758 = vld [vmem:[#allocation9] sm:$0xff]
    %v2759 = vld [vmem:[#allocation9 + $0x8] sm:$0xff]
    %v2760 = vld [vmem:[%s12] sm:$0xff]
    %v2761 = vld [vmem:[%s14] sm:$0x1]
    %v2763 = vlaneseq
    %v2764 = vshrl.u32 %v2763, 7
    %v2765 = vsub.s32 0, %v2764
    %v2766 = vrot.slane %v2761, %v2765
    %v2769 = vsel %vm1402, %v2758, 0
    %v2772 = vsel %vm1402, %v2759, 0
    %2774 = vmatprep.subr.mxu0 0.0
    %2775 = vmatpush1.msra.mxu0 %v2760
    %2776 = vmatprep.subr.mxu0 0.0
    %2777 = vmatpush1.msra.mxu0 0.0
    %2778 = vmatprep.subr.mxu0 0.0
    %2779 = vmatpush1.msra.mxu0 0.0
    %2780 = vmatprep.subr.mxu0 0.0
    %2781 = vmatpush1.msra.mxu0 0.0
    %2782 = vmatprep.subr.mxu0 0.0
    %2783 = vmatpush1.msra.mxu0 0.0
    %2784 = vmatprep.subr.mxu0 0.0
    %2785 = vmatpush1.msra.mxu0 0.0
    %2786 = vmatprep.subr.mxu0 0.0
    %2787 = vmatpush1.msra.mxu0 0.0
    %2788 = vmatprep.subr.mxu0 0.0
    %2789 = vmatpush1.msra.mxu0 0.0
    %2790 = vmatprep.subr.mxu0 0.0
    %2791 = vmatpush1.msra.mxu0 0.0
    %2792 = vmatprep.subr.mxu0 0.0
    %2793 = vmatpush1.msra.mxu0 0.0
    %2794 = vmatprep.subr.mxu0 0.0
    %2795 = vmatpush1.msra.mxu0 0.0
    %2796 = vmatprep.subr.mxu0 0.0
    %2797 = vmatpush1.msra.mxu0 0.0
    %2798 = vmatprep.subr.mxu0 0.0
    %2799 = vmatpush1.msra.mxu0 0.0
    %2800 = vmatprep.subr.mxu0 0.0
    %2801 = vmatpush1.msra.mxu0 0.0
    %2802 = vmatprep.subr.mxu0 0.0
    %2803 = vmatpush1.msra.mxu0 0.0
    %2804 = vmatprep.subr.mxu0 0.0
    %2805 = vmatpush1.msra.mxu0 0.0
    %2806 = vmatprep.subr.mxu0 0.0
    %2807 = vmatpush1.msra.mxu0 0.0
    %2808 = vmatprep.subr.mxu0 0.0
    %2809 = vmatpush1.msra.mxu0 0.0
    %2810 = vmatprep.subr.mxu0 0.0
    %2811 = vmatpush1.msra.mxu0 0.0
    %2812 = vmatprep.subr.mxu0 0.0
    %2813 = vmatpush1.msra.mxu0 0.0
    %2814 = vmatprep.subr.mxu0 0.0
    %2815 = vmatpush1.msra.mxu0 0.0
    %2816 = vmatprep.subr.mxu0 0.0
    %2817 = vmatpush1.msra.mxu0 0.0
    %2818 = vmatprep.subr.mxu0 0.0
    %2819 = vmatpush1.msra.mxu0 0.0
    %2820 = vmatprep.subr.mxu0 0.0
    %2821 = vmatpush1.msra.mxu0 0.0
    %2822 = vmatprep.subr.mxu0 0.0
    %2823 = vmatpush1.msra.mxu0 0.0
    %2824 = vmatprep.subr.mxu0 0.0
    %2825 = vmatpush1.msra.mxu0 0.0
    %2826 = vmatprep.subr.mxu0 0.0
    %2827 = vmatpush1.msra.mxu0 0.0
    %2828 = vmatprep.subr.mxu0 0.0
    %2829 = vmatpush1.msra.mxu0 0.0
    %2830 = vmatprep.subr.mxu0 0.0
    %2831 = vmatpush1.msra.mxu0 0.0
    %2832 = vmatprep.subr.mxu0 0.0
    %2833 = vmatpush1.msra.mxu0 0.0
    %2834 = vmatprep.subr.mxu0 0.0
    %2835 = vmatpush1.msra.mxu0 0.0
    %2836 = vmatprep.subr.mxu0 0.0
    %2837 = vmatpush1.msra.mxu0 0.0
    %2838 = vmatprep.mubr.f32.mxu0 0.0
    %2839 = vmatmul.mubr.f32.gmra.mrb[0].mxu0 %v2769
    %v2840 = vpop.f32.mrb[0].mxu0
    %v2841 = vadd.f32 %v2766, %v2840
    %v2842 = vpop.f32.mrb[0].mxu0
    %2843 = vmatprep.mubr.f32.mxu0 0.0
    %2844 = vmatmul.mubr.f32.gmra.mrb[0].mxu0 %v2772
    %v2845 = vpop.f32.mrb[0].mxu0
    %v2846 = vadd.f32 %v2766, %v2845
    %v2847 = vpop.f32.mrb[0].mxu0
    %2848 = vdwg.mxu0
    %2849 = vst [vmem:[#allocation5] sm:$0xff] %v2841
    %2850 = vst [vmem:[#allocation5 + $0x8] sm:$0xff] %v2846
    %v2851 = vld [vmem:[#allocation5] sm:$0x3]
    %2852 = vmatprep.subr.mxu0 0.0
    %2853 = vmatpush1.msra.mxu0 %v74
    %2854 = vmatprep.subr.mxu0 0.0
    %2855 = vmatpush1.msra.mxu0 %v75
    %2856 = vmatprep.subr.mxu0 0.0
    %2857 = vmatpush1.msra.mxu0 %v76
    %2858 = vmatprep.subr.mxu0 0.0
    %2859 = vmatpush1.msra.mxu0 %v77
    %2860 = vmatprep.subr.mxu0 0.0
    %2861 = vmatpush1.msra.mxu0 0.0
    %2862 = vmatprep.subr.mxu0 0.0
    %2863 = vmatpush1.msra.mxu0 0.0
    %2864 = vmatprep.subr.mxu0 0.0
    %2865 = vmatpush1.msra.mxu0 0.0
    %2866 = vmatprep.subr.mxu0 0.0
    %2867 = vmatpush1.msra.mxu0 0.0
    %2868 = vmatprep.subr.mxu0 0.0
    %2869 = vmatpush1.msra.mxu0 0.0
    %2870 = vmatprep.subr.mxu0 0.0
    %2871 = vmatpush1.msra.mxu0 0.0
    %2872 = vmatprep.subr.mxu0 0.0
    %2873 = vmatpush1.msra.mxu0 0.0
    %2874 = vmatprep.subr.mxu0 0.0
    %2875 = vmatpush1.msra.mxu0 0.0
    %2876 = vmatprep.subr.mxu0 0.0
    %2877 = vmatpush1.msra.mxu0 0.0
    %2878 = vmatprep.subr.mxu0 0.0
    %2879 = vmatpush1.msra.mxu0 0.0
    %2880 = vmatprep.subr.mxu0 0.0
    %2881 = vmatpush1.msra.mxu0 0.0
    %2882 = vmatprep.subr.mxu0 0.0
    %2883 = vmatpush1.msra.mxu0 0.0
    %2884 = vmatprep.subr.mxu0 0.0
    %2885 = vmatpush1.msra.mxu0 0.0
    %2886 = vmatprep.subr.mxu0 0.0
    %2887 = vmatpush1.msra.mxu0 0.0
    %2888 = vmatprep.subr.mxu0 0.0
    %2889 = vmatpush1.msra.mxu0 0.0
    %2890 = vmatprep.subr.mxu0 0.0
    %2891 = vmatpush1.msra.mxu0 0.0
    %2892 = vmatprep.subr.mxu0 0.0
    %2893 = vmatpush1.msra.mxu0 0.0
    %2894 = vmatprep.subr.mxu0 0.0
    %2895 = vmatpush1.msra.mxu0 0.0
    %2896 = vmatprep.subr.mxu0 0.0
    %2897 = vmatpush1.msra.mxu0 0.0
    %2898 = vmatprep.subr.mxu0 0.0
    %2899 = vmatpush1.msra.mxu0 0.0
    %2900 = vmatprep.subr.mxu0 0.0
    %2901 = vmatpush1.msra.mxu0 0.0
    %2902 = vmatprep.subr.mxu0 0.0
    %2903 = vmatpush1.msra.mxu0 0.0
    %2904 = vmatprep.subr.mxu0 0.0
    %2905 = vmatpush1.msra.mxu0 0.0
    %2906 = vmatprep.subr.mxu0 0.0
    %2907 = vmatpush1.msra.mxu0 0.0
    %2908 = vmatprep.subr.mxu0 0.0
    %2909 = vmatpush1.msra.mxu0 0.0
    %2910 = vmatprep.subr.mxu0 0.0
    %2911 = vmatpush1.msra.mxu0 0.0
    %2912 = vmatprep.subr.mxu0 0.0
    %2913 = vmatpush1.msra.mxu0 0.0
    %2914 = vmatprep.subr.mxu0 0.0
    %2915 = vmatpush1.msra.mxu0 0.0
    %2916 = vmatprep.mubr.f32.mxu0 0.0
    %2917 = vmatmul.mubr.f32.gmra.mrb[0].mxu0 %v278
    %v2918 = vpop.f32.mrb[0].mxu0
    %v2919 = vadd.f32 0.0, %v2918
    %v2920 = vpop.f32.mrb[0].mxu0
    %2921 = vdwg.mxu0
    %v2922 = vadd.f32 %v2851, %v2919
    %v2923 = vxor.u32 %v2922, 2147483648
    %v2924 = vmul.f32 %v2923, 1.442695
    %v2925 = vpow.pop %v2924
    %v2926 = vadd.f32 %v2925, 1.0
    %v2927 = vrcp.pop %v2926
    %v2928 = vmul.f32 1.0, %v2927
    %v2929 = vtanh.pop %v2922
    %v2930 = vmul.f32 %v2928, 0.0
    %2932 = vrot.lane.b32.xlu0 %v2929, 64
    %v2933 = vpop.permute.xlu0 %2932
    %v2935 = vmul.f32 %v2928, %v2933
    %2937 = vrot.lane.b32.xlu0 %v2935, 32
    %v2938 = vpop.permute.xlu0 %2937
    %v2940 = vadd.f32 %v2930, %v2938
    %v2941 = vtanh.pop %v2940
    %2943 = vrot.lane.b32.xlu0 %v2941, 64
    %v2944 = vpop.permute.xlu0 %2943
    %v2946 = vmul.f32 %v2928, %v2944
    %2948 = vrot.lane.b32.xlu0 %v2946, 32
    %v2949 = vpop.permute.xlu0 %2948
    %2951 = vst.msk [vmem:[#allocation6] sm:$0x3] %vm380, %v2949
    %s2952 = scalar_lea.vmem [#allocation5], 2
    %v2953 = vld [vmem:[%s2952] sm:$0x3]
    %v2954 = vsel %vm191, %v2949, 0
    %2956 = vmatprep.subr.mxu0 0.0
    %2957 = vmatpush1.msra.mxu0 %v74
    %2958 = vmatprep.subr.mxu0 0.0
    %2959 = vmatpush1.msra.mxu0 %v75
    %2960 = vmatprep.subr.mxu0 0.0
    %2961 = vmatpush1.msra.mxu0 %v76
    %2962 = vmatprep.subr.mxu0 0.0
    %2963 = vmatpush1.msra.mxu0 %v77
    %2964 = vmatprep.subr.mxu0 0.0
    %2965 = vmatpush1.msra.mxu0 0.0
    %2966 = vmatprep.subr.mxu0 0.0
    %2967 = vmatpush1.msra.mxu0 0.0
    %2968 = vmatprep.subr.mxu0 0.0
    %2969 = vmatpush1.msra.mxu0 0.0
    %2970 = vmatprep.subr.mxu0 0.0
    %2971 = vmatpush1.msra.mxu0 0.0
    %2972 = vmatprep.subr.mxu0 0.0
    %2973 = vmatpush1.msra.mxu0 0.0
    %2974 = vmatprep.subr.mxu0 0.0
    %2975 = vmatpush1.msra.mxu0 0.0
    %2976 = vmatprep.subr.mxu0 0.0
    %2977 = vmatpush1.msra.mxu0 0.0
    %2978 = vmatprep.subr.mxu0 0.0
    %2979 = vmatpush1.msra.mxu0 0.0
    %2980 = vmatprep.subr.mxu0 0.0
    %2981 = vmatpush1.msra.mxu0 0.0
    %2982 = vmatprep.subr.mxu0 0.0
    %2983 = vmatpush1.msra.mxu0 0.0
    %2984 = vmatprep.subr.mxu0 0.0
    %2985 = vmatpush1.msra.mxu0 0.0
    %2986 = vmatprep.subr.mxu0 0.0
    %2987 = vmatpush1.msra.mxu0 0.0
    %2988 = vmatprep.subr.mxu0 0.0
    %2989 = vmatpush1.msra.mxu0 0.0
    %2990 = vmatprep.subr.mxu0 0.0
    %2991 = vmatpush1.msra.mxu0 0.0
    %2992 = vmatprep.subr.mxu0 0.0
    %2993 = vmatpush1.msra.mxu0 0.0
    %2994 = vmatprep.subr.mxu0 0.0
    %2995 = vmatpush1.msra.mxu0 0.0
    %2996 = vmatprep.subr.mxu0 0.0
    %2997 = vmatpush1.msra.mxu0 0.0
    %2998 = vmatprep.subr.mxu0 0.0
    %2999 = vmatpush1.msra.mxu0 0.0
    %3000 = vmatprep.subr.mxu0 0.0
    %3001 = vmatpush1.msra.mxu0 0.0
    %3002 = vmatprep.subr.mxu0 0.0
    %3003 = vmatpush1.msra.mxu0 0.0
    %3004 = vmatprep.subr.mxu0 0.0
    %3005 = vmatpush1.msra.mxu0 0.0
    %3006 = vmatprep.subr.mxu0 0.0
    %3007 = vmatpush1.msra.mxu0 0.0
    %3008 = vmatprep.subr.mxu0 0.0
    %3009 = vmatpush1.msra.mxu0 0.0
    %3010 = vmatprep.subr.mxu0 0.0
    %3011 = vmatpush1.msra.mxu0 0.0
    %3012 = vmatprep.subr.mxu0 0.0
    %3013 = vmatpush1.msra.mxu0 0.0
    %3014 = vmatprep.subr.mxu0 0.0
    %3015 = vmatpush1.msra.mxu0 0.0
    %3016 = vmatprep.subr.mxu0 0.0
    %3017 = vmatpush1.msra.mxu0 0.0
    %3018 = vmatprep.subr.mxu0 0.0
    %3019 = vmatpush1.msra.mxu0 0.0
    %3020 = vmatprep.mubr.f32.mxu0 0.0
    %3021 = vmatmul.mubr.f32.gmra.mrb[0].mxu0 %v2954
    %v3022 = vpop.f32.mrb[0].mxu0
    %v3023 = vadd.f32 0.0, %v3022
    %v3024 = vpop.f32.mrb[0].mxu0
    %3025 = vdwg.mxu0
    %v3026 = vadd.f32 %v2953, %v3023
    %v3027 = vxor.u32 %v3026, 2147483648
    %v3028 = vmul.f32 %v3027, 1.442695
    %v3029 = vpow.pop %v3028
    %v3030 = vadd.f32 %v3029, 1.0
    %v3031 = vrcp.pop %v3030
    %v3032 = vmul.f32 1.0, %v3031
    %v3033 = vtanh.pop %v3026
    %v3034 = vmul.f32 %v3032, %v2940
    %3036 = vrot.lane.b32.xlu0 %v3033, 64
    %v3037 = vpop.permute.xlu0 %3036
    %v3039 = vmul.f32 %v3032, %v3037
    %3041 = vrot.lane.b32.xlu0 %v3039, 32
    %v3042 = vpop.permute.xlu0 %3041
    %v3044 = vadd.f32 %v3034, %v3042
    %v3045 = vtanh.pop %v3044
    %3047 = vrot.lane.b32.xlu0 %v3045, 64
    %v3048 = vpop.permute.xlu0 %3047
    %v3050 = vmul.f32 %v3032, %v3048
    %3052 = vrot.lane.b32.xlu0 %v3050, 32
    %v3053 = vpop.permute.xlu0 %3052
    %s3055 = scalar_lea.vmem [#allocation6], 2
    %3056 = vst.msk [vmem:[%s3055] sm:$0x3] %vm380, %v3053
    %s3057 = scalar_lea.vmem [#allocation5], 4
    %v3058 = vld [vmem:[%s3057] sm:$0x3]
    %v3059 = vsel %vm191, %v3053, 0
    %3061 = vmatprep.subr.mxu0 0.0
    %3062 = vmatpush1.msra.mxu0 %v74
    %3063 = vmatprep.subr.mxu0 0.0
    %3064 = vmatpush1.msra.mxu0 %v75
    %3065 = vmatprep.subr.mxu0 0.0
    %3066 = vmatpush1.msra.mxu0 %v76
    %3067 = vmatprep.subr.mxu0 0.0
    %3068 = vmatpush1.msra.mxu0 %v77
    %3069 = vmatprep.subr.mxu0 0.0
    %3070 = vmatpush1.msra.mxu0 0.0
    %3071 = vmatprep.subr.mxu0 0.0
    %3072 = vmatpush1.msra.mxu0 0.0
    %3073 = vmatprep.subr.mxu0 0.0
    %3074 = vmatpush1.msra.mxu0 0.0
    %3075 = vmatprep.subr.mxu0 0.0
    %3076 = vmatpush1.msra.mxu0 0.0
    %3077 = vmatprep.subr.mxu0 0.0
    %3078 = vmatpush1.msra.mxu0 0.0
    %3079 = vmatprep.subr.mxu0 0.0
    %3080 = vmatpush1.msra.mxu0 0.0
    %3081 = vmatprep.subr.mxu0 0.0
    %3082 = vmatpush1.msra.mxu0 0.0
    %3083 = vmatprep.subr.mxu0 0.0
    %3084 = vmatpush1.msra.mxu0 0.0
    %3085 = vmatprep.subr.mxu0 0.0
    %3086 = vmatpush1.msra.mxu0 0.0
    %3087 = vmatprep.subr.mxu0 0.0
    %3088 = vmatpush1.msra.mxu0 0.0
    %3089 = vmatprep.subr.mxu0 0.0
    %3090 = vmatpush1.msra.mxu0 0.0
    %3091 = vmatprep.subr.mxu0 0.0
    %3092 = vmatpush1.msra.mxu0 0.0
    %3093 = vmatprep.subr.mxu0 0.0
    %3094 = vmatpush1.msra.mxu0 0.0
    %3095 = vmatprep.subr.mxu0 0.0
    %3096 = vmatpush1.msra.mxu0 0.0
    %3097 = vmatprep.subr.mxu0 0.0
    %3098 = vmatpush1.msra.mxu0 0.0
    %3099 = vmatprep.subr.mxu0 0.0
    %3100 = vmatpush1.msra.mxu0 0.0
    %3101 = vmatprep.subr.mxu0 0.0
    %3102 = vmatpush1.msra.mxu0 0.0
    %3103 = vmatprep.subr.mxu0 0.0
    %3104 = vmatpush1.msra.mxu0 0.0
    %3105 = vmatprep.subr.mxu0 0.0
    %3106 = vmatpush1.msra.mxu0 0.0
    %3107 = vmatprep.subr.mxu0 0.0
    %3108 = vmatpush1.msra.mxu0 0.0
    %3109 = vmatprep.subr.mxu0 0.0
    %3110 = vmatpush1.msra.mxu0 0.0
    %3111 = vmatprep.subr.mxu0 0.0
    %3112 = vmatpush1.msra.mxu0 0.0
    %3113 = vmatprep.subr.mxu0 0.0
    %3114 = vmatpush1.msra.mxu0 0.0
    %3115 = vmatprep.subr.mxu0 0.0
    %3116 = vmatpush1.msra.mxu0 0.0
    %3117 = vmatprep.subr.mxu0 0.0
    %3118 = vmatpush1.msra.mxu0 0.0
    %3119 = vmatprep.subr.mxu0 0.0
    %3120 = vmatpush1.msra.mxu0 0.0
    %3121 = vmatprep.subr.mxu0 0.0
    %3122 = vmatpush1.msra.mxu0 0.0
    %3123 = vmatprep.subr.mxu0 0.0
    %3124 = vmatpush1.msra.mxu0 0.0
    %3125 = vmatprep.mubr.f32.mxu0 0.0
    %3126 = vmatmul.mubr.f32.gmra.mrb[0].mxu0 %v3059
    %v3127 = vpop.f32.mrb[0].mxu0
    %v3128 = vadd.f32 0.0, %v3127
    %v3129 = vpop.f32.mrb[0].mxu0
    %3130 = vdwg.mxu0
    %v3131 = vadd.f32 %v3058, %v3128
    %v3132 = vxor.u32 %v3131, 2147483648
    %v3133 = vmul.f32 %v3132, 1.442695
    %v3134 = vpow.pop %v3133
    %v3135 = vadd.f32 %v3134, 1.0
    %v3136 = vrcp.pop %v3135
    %v3137 = vmul.f32 1.0, %v3136
    %v3138 = vtanh.pop %v3131
    %v3139 = vmul.f32 %v3137, %v3044
    %3141 = vrot.lane.b32.xlu0 %v3138, 64
    %v3142 = vpop.permute.xlu0 %3141
    %v3144 = vmul.f32 %v3137, %v3142
    %3146 = vrot.lane.b32.xlu0 %v3144, 32
    %v3147 = vpop.permute.xlu0 %3146
    %v3149 = vadd.f32 %v3139, %v3147
    %v3150 = vtanh.pop %v3149
    %3152 = vrot.lane.b32.xlu0 %v3150, 64
    %v3153 = vpop.permute.xlu0 %3152
    %v3155 = vmul.f32 %v3137, %v3153
    %3157 = vrot.lane.b32.xlu0 %v3155, 32
    %v3158 = vpop.permute.xlu0 %3157
    %s3160 = scalar_lea.vmem [#allocation6], 4
    %3161 = vst.msk [vmem:[%s3160] sm:$0x3] %vm380, %v3158
    %s3162 = scalar_lea.vmem [#allocation5], 6
    %v3163 = vld [vmem:[%s3162] sm:$0x3]
    %v3164 = vsel %vm191, %v3158, 0
    %3166 = vmatprep.subr.mxu0 0.0
    %3167 = vmatpush1.msra.mxu0 %v74
    %3168 = vmatprep.subr.mxu0 0.0
    %3169 = vmatpush1.msra.mxu0 %v75
    %3170 = vmatprep.subr.mxu0 0.0
    %3171 = vmatpush1.msra.mxu0 %v76
    %3172 = vmatprep.subr.mxu0 0.0
    %3173 = vmatpush1.msra.mxu0 %v77
    %3174 = vmatprep.subr.mxu0 0.0
    %3175 = vmatpush1.msra.mxu0 0.0
    %3176 = vmatprep.subr.mxu0 0.0
    %3177 = vmatpush1.msra.mxu0 0.0
    %3178 = vmatprep.subr.mxu0 0.0
    %3179 = vmatpush1.msra.mxu0 0.0
    %3180 = vmatprep.subr.mxu0 0.0
    %3181 = vmatpush1.msra.mxu0 0.0
    %3182 = vmatprep.subr.mxu0 0.0
    %3183 = vmatpush1.msra.mxu0 0.0
    %3184 = vmatprep.subr.mxu0 0.0
    %3185 = vmatpush1.msra.mxu0 0.0
    %3186 = vmatprep.subr.mxu0 0.0
    %3187 = vmatpush1.msra.mxu0 0.0
    %3188 = vmatprep.subr.mxu0 0.0
    %3189 = vmatpush1.msra.mxu0 0.0
    %3190 = vmatprep.subr.mxu0 0.0
    %3191 = vmatpush1.msra.mxu0 0.0
    %3192 = vmatprep.subr.mxu0 0.0
    %3193 = vmatpush1.msra.mxu0 0.0
    %3194 = vmatprep.subr.mxu0 0.0
    %3195 = vmatpush1.msra.mxu0 0.0
    %3196 = vmatprep.subr.mxu0 0.0
    %3197 = vmatpush1.msra.mxu0 0.0
    %3198 = vmatprep.subr.mxu0 0.0
    %3199 = vmatpush1.msra.mxu0 0.0
    %3200 = vmatprep.subr.mxu0 0.0
    %3201 = vmatpush1.msra.mxu0 0.0
    %3202 = vmatprep.subr.mxu0 0.0
    %3203 = vmatpush1.msra.mxu0 0.0
    %3204 = vmatprep.subr.mxu0 0.0
    %3205 = vmatpush1.msra.mxu0 0.0
    %3206 = vmatprep.subr.mxu0 0.0
    %3207 = vmatpush1.msra.mxu0 0.0
    %3208 = vmatprep.subr.mxu0 0.0
    %3209 = vmatpush1.msra.mxu0 0.0
    %3210 = vmatprep.subr.mxu0 0.0
    %3211 = vmatpush1.msra.mxu0 0.0
    %3212 = vmatprep.subr.mxu0 0.0
    %3213 = vmatpush1.msra.mxu0 0.0
    %3214 = vmatprep.subr.mxu0 0.0
    %3215 = vmatpush1.msra.mxu0 0.0
    %3216 = vmatprep.subr.mxu0 0.0
    %3217 = vmatpush1.msra.mxu0 0.0
    %3218 = vmatprep.subr.mxu0 0.0
    %3219 = vmatpush1.msra.mxu0 0.0
    %3220 = vmatprep.subr.mxu0 0.0
    %3221 = vmatpush1.msra.mxu0 0.0
    %3222 = vmatprep.subr.mxu0 0.0
    %3223 = vmatpush1.msra.mxu0 0.0
    %3224 = vmatprep.subr.mxu0 0.0
    %3225 = vmatpush1.msra.mxu0 0.0
    %3226 = vmatprep.subr.mxu0 0.0
    %3227 = vmatpush1.msra.mxu0 0.0
    %3228 = vmatprep.subr.mxu0 0.0
    %3229 = vmatpush1.msra.mxu0 0.0
    %3230 = vmatprep.mubr.f32.mxu0 0.0
    %3231 = vmatmul.mubr.f32.gmra.mrb[0].mxu0 %v3164
    %v3232 = vpop.f32.mrb[0].mxu0
    %v3233 = vadd.f32 0.0, %v3232
    %v3234 = vpop.f32.mrb[0].mxu0
    %3235 = vdwg.mxu0
    %v3236 = vadd.f32 %v3163, %v3233
    %v3237 = vxor.u32 %v3236, 2147483648
    %v3238 = vmul.f32 %v3237, 1.442695
    %v3239 = vpow.pop %v3238
    %v3240 = vadd.f32 %v3239, 1.0
    %v3241 = vrcp.pop %v3240
    %v3242 = vmul.f32 1.0, %v3241
    %v3243 = vtanh.pop %v3236
    %v3244 = vmul.f32 %v3242, %v3149
    %3246 = vrot.lane.b32.xlu0 %v3243, 64
    %v3247 = vpop.permute.xlu0 %3246
    %v3249 = vmul.f32 %v3242, %v3247
    %3251 = vrot.lane.b32.xlu0 %v3249, 32
    %v3252 = vpop.permute.xlu0 %3251
    %v3254 = vadd.f32 %v3244, %v3252
    %v3255 = vtanh.pop %v3254
    %3257 = vrot.lane.b32.xlu0 %v3255, 64
    %v3258 = vpop.permute.xlu0 %3257
    %v3260 = vmul.f32 %v3242, %v3258
    %3262 = vrot.lane.b32.xlu0 %v3260, 32
    %v3263 = vpop.permute.xlu0 %3262
    %s3265 = scalar_lea.vmem [#allocation6], 6
    %3266 = vst.msk [vmem:[%s3265] sm:$0x3] %vm380, %v3263
    %s3267 = scalar_lea.vmem [#allocation5], 8
    %v3268 = vld [vmem:[%s3267] sm:$0x3]
    %v3269 = vsel %vm191, %v3263, 0
    %3271 = vmatprep.subr.mxu0 0.0
    %3272 = vmatpush1.msra.mxu0 %v74
    %3273 = vmatprep.subr.mxu0 0.0
    %3274 = vmatpush1.msra.mxu0 %v75
    %3275 = vmatprep.subr.mxu0 0.0
    %3276 = vmatpush1.msra.mxu0 %v76
    %3277 = vmatprep.subr.mxu0 0.0
    %3278 = vmatpush1.msra.mxu0 %v77
    %3279 = vmatprep.subr.mxu0 0.0
    %3280 = vmatpush1.msra.mxu0 0.0
    %3281 = vmatprep.subr.mxu0 0.0
    %3282 = vmatpush1.msra.mxu0 0.0
    %3283 = vmatprep.subr.mxu0 0.0
    %3284 = vmatpush1.msra.mxu0 0.0
    %3285 = vmatprep.subr.mxu0 0.0
    %3286 = vmatpush1.msra.mxu0 0.0
    %3287 = vmatprep.subr.mxu0 0.0
    %3288 = vmatpush1.msra.mxu0 0.0
    %3289 = vmatprep.subr.mxu0 0.0
    %3290 = vmatpush1.msra.mxu0 0.0
    %3291 = vmatprep.subr.mxu0 0.0
    %3292 = vmatpush1.msra.mxu0 0.0
    %3293 = vmatprep.subr.mxu0 0.0
    %3294 = vmatpush1.msra.mxu0 0.0
    %3295 = vmatprep.subr.mxu0 0.0
    %3296 = vmatpush1.msra.mxu0 0.0
    %3297 = vmatprep.subr.mxu0 0.0
    %3298 = vmatpush1.msra.mxu0 0.0
    %3299 = vmatprep.subr.mxu0 0.0
    %3300 = vmatpush1.msra.mxu0 0.0
    %3301 = vmatprep.subr.mxu0 0.0
    %3302 = vmatpush1.msra.mxu0 0.0
    %3303 = vmatprep.subr.mxu0 0.0
    %3304 = vmatpush1.msra.mxu0 0.0
    %3305 = vmatprep.subr.mxu0 0.0
    %3306 = vmatpush1.msra.mxu0 0.0
    %3307 = vmatprep.subr.mxu0 0.0
    %3308 = vmatpush1.msra.mxu0 0.0
    %3309 = vmatprep.subr.mxu0 0.0
    %3310 = vmatpush1.msra.mxu0 0.0
    %3311 = vmatprep.subr.mxu0 0.0
    %3312 = vmatpush1.msra.mxu0 0.0
    %3313 = vmatprep.subr.mxu0 0.0
    %3314 = vmatpush1.msra.mxu0 0.0
    %3315 = vmatprep.subr.mxu0 0.0
    %3316 = vmatpush1.msra.mxu0 0.0
    %3317 = vmatprep.subr.mxu0 0.0
    %3318 = vmatpush1.msra.mxu0 0.0
    %3319 = vmatprep.subr.mxu0 0.0
    %3320 = vmatpush1.msra.mxu0 0.0
    %3321 = vmatprep.subr.mxu0 0.0
    %3322 = vmatpush1.msra.mxu0 0.0
    %3323 = vmatprep.subr.mxu0 0.0
    %3324 = vmatpush1.msra.mxu0 0.0
    %3325 = vmatprep.subr.mxu0 0.0
    %3326 = vmatpush1.msra.mxu0 0.0
    %3327 = vmatprep.subr.mxu0 0.0
    %3328 = vmatpush1.msra.mxu0 0.0
    %3329 = vmatprep.subr.mxu0 0.0
    %3330 = vmatpush1.msra.mxu0 0.0
    %3331 = vmatprep.subr.mxu0 0.0
    %3332 = vmatpush1.msra.mxu0 0.0
    %3333 = vmatprep.subr.mxu0 0.0
    %3334 = vmatpush1.msra.mxu0 0.0
    %3335 = vmatprep.mubr.f32.mxu0 0.0
    %3336 = vmatmul.mubr.f32.gmra.mrb[0].mxu0 %v3269
    %v3337 = vpop.f32.mrb[0].mxu0
    %v3338 = vadd.f32 0.0, %v3337
    %v3339 = vpop.f32.mrb[0].mxu0
    %3340 = vdwg.mxu0
    %v3341 = vadd.f32 %v3268, %v3338
    %v3342 = vxor.u32 %v3341, 2147483648
    %v3343 = vmul.f32 %v3342, 1.442695
    %v3344 = vpow.pop %v3343
    %v3345 = vadd.f32 %v3344, 1.0
    %v3346 = vrcp.pop %v3345
    %v3347 = vmul.f32 1.0, %v3346
    %v3348 = vtanh.pop %v3341
    %v3349 = vmul.f32 %v3347, %v3254
    %3351 = vrot.lane.b32.xlu0 %v3348, 64
    %v3352 = vpop.permute.xlu0 %3351
    %v3354 = vmul.f32 %v3347, %v3352
    %3356 = vrot.lane.b32.xlu0 %v3354, 32
    %v3357 = vpop.permute.xlu0 %3356
    %v3359 = vadd.f32 %v3349, %v3357
    %v3360 = vtanh.pop %v3359
    %3362 = vrot.lane.b32.xlu0 %v3360, 64
    %v3363 = vpop.permute.xlu0 %3362
    %v3365 = vmul.f32 %v3347, %v3363
    %3367 = vrot.lane.b32.xlu0 %v3365, 32
    %v3368 = vpop.permute.xlu0 %3367
    %s3370 = scalar_lea.vmem [#allocation6], 8
    %3371 = vst.msk [vmem:[%s3370] sm:$0x3] %vm380, %v3368
    %s3372 = scalar_lea.vmem [#allocation5], 10
    %v3373 = vld [vmem:[%s3372] sm:$0x3]
    %v3374 = vsel %vm191, %v3368, 0
    %3376 = vmatprep.subr.mxu0 0.0
    %3377 = vmatpush1.msra.mxu0 %v74
    %3378 = vmatprep.subr.mxu0 0.0
    %3379 = vmatpush1.msra.mxu0 %v75
    %3380 = vmatprep.subr.mxu0 0.0
    %3381 = vmatpush1.msra.mxu0 %v76
    %3382 = vmatprep.subr.mxu0 0.0
    %3383 = vmatpush1.msra.mxu0 %v77
    %3384 = vmatprep.subr.mxu0 0.0
    %3385 = vmatpush1.msra.mxu0 0.0
    %3386 = vmatprep.subr.mxu0 0.0
    %3387 = vmatpush1.msra.mxu0 0.0
    %3388 = vmatprep.subr.mxu0 0.0
    %3389 = vmatpush1.msra.mxu0 0.0
    %3390 = vmatprep.subr.mxu0 0.0
    %3391 = vmatpush1.msra.mxu0 0.0
    %3392 = vmatprep.subr.mxu0 0.0
    %3393 = vmatpush1.msra.mxu0 0.0
    %3394 = vmatprep.subr.mxu0 0.0
    %3395 = vmatpush1.msra.mxu0 0.0
    %3396 = vmatprep.subr.mxu0 0.0
    %3397 = vmatpush1.msra.mxu0 0.0
    %3398 = vmatprep.subr.mxu0 0.0
    %3399 = vmatpush1.msra.mxu0 0.0
    %3400 = vmatprep.subr.mxu0 0.0
    %3401 = vmatpush1.msra.mxu0 0.0
    %3402 = vmatprep.subr.mxu0 0.0
    %3403 = vmatpush1.msra.mxu0 0.0
    %3404 = vmatprep.subr.mxu0 0.0
    %3405 = vmatpush1.msra.mxu0 0.0
    %3406 = vmatprep.subr.mxu0 0.0
    %3407 = vmatpush1.msra.mxu0 0.0
    %3408 = vmatprep.subr.mxu0 0.0
    %3409 = vmatpush1.msra.mxu0 0.0
    %3410 = vmatprep.subr.mxu0 0.0
    %3411 = vmatpush1.msra.mxu0 0.0
    %3412 = vmatprep.subr.mxu0 0.0
    %3413 = vmatpush1.msra.mxu0 0.0
    %3414 = vmatprep.subr.mxu0 0.0
    %3415 = vmatpush1.msra.mxu0 0.0
    %3416 = vmatprep.subr.mxu0 0.0
    %3417 = vmatpush1.msra.mxu0 0.0
    %3418 = vmatprep.subr.mxu0 0.0
    %3419 = vmatpush1.msra.mxu0 0.0
    %3420 = vmatprep.subr.mxu0 0.0
    %3421 = vmatpush1.msra.mxu0 0.0
    %3422 = vmatprep.subr.mxu0 0.0
    %3423 = vmatpush1.msra.mxu0 0.0
    %3424 = vmatprep.subr.mxu0 0.0
    %3425 = vmatpush1.msra.mxu0 0.0
    %3426 = vmatprep.subr.mxu0 0.0
    %3427 = vmatpush1.msra.mxu0 0.0
    %3428 = vmatprep.subr.mxu0 0.0
    %3429 = vmatpush1.msra.mxu0 0.0
    %3430 = vmatprep.subr.mxu0 0.0
    %3431 = vmatpush1.msra.mxu0 0.0
    %3432 = vmatprep.subr.mxu0 0.0
    %3433 = vmatpush1.msra.mxu0 0.0
    %3434 = vmatprep.subr.mxu0 0.0
    %3435 = vmatpush1.msra.mxu0 0.0
    %3436 = vmatprep.subr.mxu0 0.0
    %3437 = vmatpush1.msra.mxu0 0.0
    %3438 = vmatprep.subr.mxu0 0.0
    %3439 = vmatpush1.msra.mxu0 0.0
    %3440 = vmatprep.mubr.f32.mxu0 0.0
    %3441 = vmatmul.mubr.f32.gmra.mrb[0].mxu0 %v3374
    %v3442 = vpop.f32.mrb[0].mxu0
    %v3443 = vadd.f32 0.0, %v3442
    %v3444 = vpop.f32.mrb[0].mxu0
    %3445 = vdwg.mxu0
    %v3446 = vadd.f32 %v3373, %v3443
    %v3447 = vxor.u32 %v3446, 2147483648
    %v3448 = vmul.f32 %v3447, 1.442695
    %v3449 = vpow.pop %v3448
    %v3450 = vadd.f32 %v3449, 1.0
    %v3451 = vrcp.pop %v3450
    %v3452 = vmul.f32 1.0, %v3451
    %v3453 = vtanh.pop %v3446
    %v3454 = vmul.f32 %v3452, %v3359
    %3456 = vrot.lane.b32.xlu0 %v3453, 64
    %v3457 = vpop.permute.xlu0 %3456
    %v3459 = vmul.f32 %v3452, %v3457
    %3461 = vrot.lane.b32.xlu0 %v3459, 32
    %v3462 = vpop.permute.xlu0 %3461
    %v3464 = vadd.f32 %v3454, %v3462
    %v3465 = vtanh.pop %v3464
    %3467 = vrot.lane.b32.xlu0 %v3465, 64
    %v3468 = vpop.permute.xlu0 %3467
    %v3470 = vmul.f32 %v3452, %v3468
    %3472 = vrot.lane.b32.xlu0 %v3470, 32
    %v3473 = vpop.permute.xlu0 %3472
    %s3475 = scalar_lea.vmem [#allocation6], 10
    %3476 = vst.msk [vmem:[%s3475] sm:$0x3] %vm380, %v3473
    %s3477 = scalar_lea.vmem [#allocation5], 12
    %v3478 = vld [vmem:[%s3477] sm:$0x3]
    %v3479 = vsel %vm191, %v3473, 0
    %3481 = vmatprep.subr.mxu0 0.0
    %3482 = vmatpush1.msra.mxu0 %v74
    %3483 = vmatprep.subr.mxu0 0.0
    %3484 = vmatpush1.msra.mxu0 %v75
    %3485 = vmatprep.subr.mxu0 0.0
    %3486 = vmatpush1.msra.mxu0 %v76
    %3487 = vmatprep.subr.mxu0 0.0
    %3488 = vmatpush1.msra.mxu0 %v77
    %3489 = vmatprep.subr.mxu0 0.0
    %3490 = vmatpush1.msra.mxu0 0.0
    %3491 = vmatprep.subr.mxu0 0.0
    %3492 = vmatpush1.msra.mxu0 0.0
    %3493 = vmatprep.subr.mxu0 0.0
    %3494 = vmatpush1.msra.mxu0 0.0
    %3495 = vmatprep.subr.mxu0 0.0
    %3496 = vmatpush1.msra.mxu0 0.0
    %3497 = vmatprep.subr.mxu0 0.0
    %3498 = vmatpush1.msra.mxu0 0.0
    %3499 = vmatprep.subr.mxu0 0.0
    %3500 = vmatpush1.msra.mxu0 0.0
    %3501 = vmatprep.subr.mxu0 0.0
    %3502 = vmatpush1.msra.mxu0 0.0
    %3503 = vmatprep.subr.mxu0 0.0
    %3504 = vmatpush1.msra.mxu0 0.0
    %3505 = vmatprep.subr.mxu0 0.0
    %3506 = vmatpush1.msra.mxu0 0.0
    %3507 = vmatprep.subr.mxu0 0.0
    %3508 = vmatpush1.msra.mxu0 0.0
    %3509 = vmatprep.subr.mxu0 0.0
    %3510 = vmatpush1.msra.mxu0 0.0
    %3511 = vmatprep.subr.mxu0 0.0
    %3512 = vmatpush1.msra.mxu0 0.0
    %3513 = vmatprep.subr.mxu0 0.0
    %3514 = vmatpush1.msra.mxu0 0.0
    %3515 = vmatprep.subr.mxu0 0.0
    %3516 = vmatpush1.msra.mxu0 0.0
    %3517 = vmatprep.subr.mxu0 0.0
    %3518 = vmatpush1.msra.mxu0 0.0
    %3519 = vmatprep.subr.mxu0 0.0
    %3520 = vmatpush1.msra.mxu0 0.0
    %3521 = vmatprep.subr.mxu0 0.0
    %3522 = vmatpush1.msra.mxu0 0.0
    %3523 = vmatprep.subr.mxu0 0.0
    %3524 = vmatpush1.msra.mxu0 0.0
    %3525 = vmatprep.subr.mxu0 0.0
    %3526 = vmatpush1.msra.mxu0 0.0
    %3527 = vmatprep.subr.mxu0 0.0
    %3528 = vmatpush1.msra.mxu0 0.0
    %3529 = vmatprep.subr.mxu0 0.0
    %3530 = vmatpush1.msra.mxu0 0.0
    %3531 = vmatprep.subr.mxu0 0.0
    %3532 = vmatpush1.msra.mxu0 0.0
    %3533 = vmatprep.subr.mxu0 0.0
    %3534 = vmatpush1.msra.mxu0 0.0
    %3535 = vmatprep.subr.mxu0 0.0
    %3536 = vmatpush1.msra.mxu0 0.0
    %3537 = vmatprep.subr.mxu0 0.0
    %3538 = vmatpush1.msra.mxu0 0.0
    %3539 = vmatprep.subr.mxu0 0.0
    %3540 = vmatpush1.msra.mxu0 0.0
    %3541 = vmatprep.subr.mxu0 0.0
    %3542 = vmatpush1.msra.mxu0 0.0
    %3543 = vmatprep.subr.mxu0 0.0
    %3544 = vmatpush1.msra.mxu0 0.0
    %3545 = vmatprep.mubr.f32.mxu0 0.0
    %3546 = vmatmul.mubr.f32.gmra.mrb[0].mxu0 %v3479
    %v3547 = vpop.f32.mrb[0].mxu0
    %v3548 = vadd.f32 0.0, %v3547
    %v3549 = vpop.f32.mrb[0].mxu0
    %3550 = vdwg.mxu0
    %v3551 = vadd.f32 %v3478, %v3548
    %v3552 = vxor.u32 %v3551, 2147483648
    %v3553 = vmul.f32 %v3552, 1.442695
    %v3554 = vpow.pop %v3553
    %v3555 = vadd.f32 %v3554, 1.0
    %v3556 = vrcp.pop %v3555
    %v3557 = vmul.f32 1.0, %v3556
    %v3558 = vtanh.pop %v3551
    %v3559 = vmul.f32 %v3557, %v3464
    %3561 = vrot.lane.b32.xlu0 %v3558, 64
    %v3562 = vpop.permute.xlu0 %3561
    %v3564 = vmul.f32 %v3557, %v3562
    %3566 = vrot.lane.b32.xlu0 %v3564, 32
    %v3567 = vpop.permute.xlu0 %3566
    %v3569 = vadd.f32 %v3559, %v3567
    %v3570 = vtanh.pop %v3569
    %3572 = vrot.lane.b32.xlu0 %v3570, 64
    %v3573 = vpop.permute.xlu0 %3572
    %v3575 = vmul.f32 %v3557, %v3573
    %3577 = vrot.lane.b32.xlu0 %v3575, 32
    %v3578 = vpop.permute.xlu0 %3577
    %s3580 = scalar_lea.vmem [#allocation6], 12
    %3581 = vst.msk [vmem:[%s3580] sm:$0x3] %vm380, %v3578
    %s3582 = scalar_lea.vmem [#allocation5], 14
    %v3583 = vld [vmem:[%s3582] sm:$0x3]
    %v3584 = vsel %vm191, %v3578, 0
    %3586 = vmatprep.subr.mxu0 0.0
    %3587 = vmatpush1.msra.mxu0 %v74
    %3588 = vmatprep.subr.mxu0 0.0
    %3589 = vmatpush1.msra.mxu0 %v75
    %3590 = vmatprep.subr.mxu0 0.0
    %3591 = vmatpush1.msra.mxu0 %v76
    %3592 = vmatprep.subr.mxu0 0.0
    %3593 = vmatpush1.msra.mxu0 %v77
    %3594 = vmatprep.subr.mxu0 0.0
    %3595 = vmatpush1.msra.mxu0 0.0
    %3596 = vmatprep.subr.mxu0 0.0
    %3597 = vmatpush1.msra.mxu0 0.0
    %3598 = vmatprep.subr.mxu0 0.0
    %3599 = vmatpush1.msra.mxu0 0.0
    %3600 = vmatprep.subr.mxu0 0.0
    %3601 = vmatpush1.msra.mxu0 0.0
    %3602 = vmatprep.subr.mxu0 0.0
    %3603 = vmatpush1.msra.mxu0 0.0
    %3604 = vmatprep.subr.mxu0 0.0
    %3605 = vmatpush1.msra.mxu0 0.0
    %3606 = vmatprep.subr.mxu0 0.0
    %3607 = vmatpush1.msra.mxu0 0.0
    %3608 = vmatprep.subr.mxu0 0.0
    %3609 = vmatpush1.msra.mxu0 0.0
    %3610 = vmatprep.subr.mxu0 0.0
    %3611 = vmatpush1.msra.mxu0 0.0
    %3612 = vmatprep.subr.mxu0 0.0
    %3613 = vmatpush1.msra.mxu0 0.0
    %3614 = vmatprep.subr.mxu0 0.0
    %3615 = vmatpush1.msra.mxu0 0.0
    %3616 = vmatprep.subr.mxu0 0.0
    %3617 = vmatpush1.msra.mxu0 0.0
    %3618 = vmatprep.subr.mxu0 0.0
    %3619 = vmatpush1.msra.mxu0 0.0
    %3620 = vmatprep.subr.mxu0 0.0
    %3621 = vmatpush1.msra.mxu0 0.0
    %3622 = vmatprep.subr.mxu0 0.0
    %3623 = vmatpush1.msra.mxu0 0.0
    %3624 = vmatprep.subr.mxu0 0.0
    %3625 = vmatpush1.msra.mxu0 0.0
    %3626 = vmatprep.subr.mxu0 0.0
    %3627 = vmatpush1.msra.mxu0 0.0
    %3628 = vmatprep.subr.mxu0 0.0
    %3629 = vmatpush1.msra.mxu0 0.0
    %3630 = vmatprep.subr.mxu0 0.0
    %3631 = vmatpush1.msra.mxu0 0.0
    %3632 = vmatprep.subr.mxu0 0.0
    %3633 = vmatpush1.msra.mxu0 0.0
    %3634 = vmatprep.subr.mxu0 0.0
    %3635 = vmatpush1.msra.mxu0 0.0
    %3636 = vmatprep.subr.mxu0 0.0
    %3637 = vmatpush1.msra.mxu0 0.0
    %3638 = vmatprep.subr.mxu0 0.0
    %3639 = vmatpush1.msra.mxu0 0.0
    %3640 = vmatprep.subr.mxu0 0.0
    %3641 = vmatpush1.msra.mxu0 0.0
    %3642 = vmatprep.subr.mxu0 0.0
    %3643 = vmatpush1.msra.mxu0 0.0
    %3644 = vmatprep.subr.mxu0 0.0
    %3645 = vmatpush1.msra.mxu0 0.0
    %3646 = vmatprep.subr.mxu0 0.0
    %3647 = vmatpush1.msra.mxu0 0.0
    %3648 = vmatprep.subr.mxu0 0.0
    %3649 = vmatpush1.msra.mxu0 0.0
    %3650 = vmatprep.mubr.f32.mxu0 0.0
    %3651 = vmatmul.mubr.f32.gmra.mrb[0].mxu0 %v3584
    %v3652 = vpop.f32.mrb[0].mxu0
    %v3653 = vadd.f32 0.0, %v3652
    %v3654 = vpop.f32.mrb[0].mxu0
    %3655 = vdwg.mxu0
    %v3656 = vadd.f32 %v3583, %v3653
    %v3657 = vxor.u32 %v3656, 2147483648
    %v3658 = vmul.f32 %v3657, 1.442695
    %v3659 = vpow.pop %v3658
    %v3660 = vadd.f32 %v3659, 1.0
    %v3661 = vrcp.pop %v3660
    %v3662 = vmul.f32 1.0, %v3661
    %v3663 = vtanh.pop %v3656
    %v3664 = vmul.f32 %v3662, %v3569
    %3666 = vrot.lane.b32.xlu0 %v3663, 64
    %v3667 = vpop.permute.xlu0 %3666
    %v3669 = vmul.f32 %v3662, %v3667
    %3671 = vrot.lane.b32.xlu0 %v3669, 32
    %v3672 = vpop.permute.xlu0 %3671
    %v3674 = vadd.f32 %v3664, %v3672
    %v3675 = vtanh.pop %v3674
    %3677 = vrot.lane.b32.xlu0 %v3675, 64
    %v3678 = vpop.permute.xlu0 %3677
    %v3680 = vmul.f32 %v3662, %v3678
    %3682 = vrot.lane.b32.xlu0 %v3680, 32
    %v3683 = vpop.permute.xlu0 %3682
    %s3685 = scalar_lea.vmem [#allocation6], 14
    %3686 = vst.msk [vmem:[%s3685] sm:$0x3] %vm380, %v3683
    %v3687 = vld [vmem:[#allocation6] sm:$0xff]
    %v3688 = vld [vmem:[#allocation6 + $0x8] sm:$0xff]
    %v3689 = vld [vmem:[%s15] sm:$0xff]
    %v3690 = vld [vmem:[%s15 + $0x8] sm:$0xff]
    %v3691 = vld [vmem:[%s15 + $0x10] sm:$0xff]
    %v3692 = vld [vmem:[%s15 + $0x18] sm:$0xff]
    %v3693 = vld [vmem:[%s16] sm:$0x1]
    %v3695 = vlaneseq
    %v3696 = vshrl.u32 %v3695, 7
    %v3697 = vsub.s32 0, %v3696
    %v3698 = vrot.slane %v3693, %v3697
    %v3701 = vsel %vm191, %v3687, 0
    %v3704 = vsel %vm191, %v3688, 0
    %3706 = vmatprep.subr.mxu0 0.0
    %3707 = vmatpush1.msra.mxu0 %v3689
    %3708 = vmatprep.subr.mxu0 0.0
    %3709 = vmatpush1.msra.mxu0 %v3690
    %3710 = vmatprep.subr.mxu0 0.0
    %3711 = vmatpush1.msra.mxu0 %v3691
    %3712 = vmatprep.subr.mxu0 0.0
    %3713 = vmatpush1.msra.mxu0 %v3692
    %3714 = vmatprep.subr.mxu0 0.0
    %3715 = vmatpush1.msra.mxu0 0.0
    %3716 = vmatprep.subr.mxu0 0.0
    %3717 = vmatpush1.msra.mxu0 0.0
    %3718 = vmatprep.subr.mxu0 0.0
    %3719 = vmatpush1.msra.mxu0 0.0
    %3720 = vmatprep.subr.mxu0 0.0
    %3721 = vmatpush1.msra.mxu0 0.0
    %3722 = vmatprep.subr.mxu0 0.0
    %3723 = vmatpush1.msra.mxu0 0.0
    %3724 = vmatprep.subr.mxu0 0.0
    %3725 = vmatpush1.msra.mxu0 0.0
    %3726 = vmatprep.subr.mxu0 0.0
    %3727 = vmatpush1.msra.mxu0 0.0
    %3728 = vmatprep.subr.mxu0 0.0
    %3729 = vmatpush1.msra.mxu0 0.0
    %3730 = vmatprep.subr.mxu0 0.0
    %3731 = vmatpush1.msra.mxu0 0.0
    %3732 = vmatprep.subr.mxu0 0.0
    %3733 = vmatpush1.msra.mxu0 0.0
    %3734 = vmatprep.subr.mxu0 0.0
    %3735 = vmatpush1.msra.mxu0 0.0
    %3736 = vmatprep.subr.mxu0 0.0
    %3737 = vmatpush1.msra.mxu0 0.0
    %3738 = vmatprep.subr.mxu0 0.0
    %3739 = vmatpush1.msra.mxu0 0.0
    %3740 = vmatprep.subr.mxu0 0.0
    %3741 = vmatpush1.msra.mxu0 0.0
    %3742 = vmatprep.subr.mxu0 0.0
    %3743 = vmatpush1.msra.mxu0 0.0
    %3744 = vmatprep.subr.mxu0 0.0
    %3745 = vmatpush1.msra.mxu0 0.0
    %3746 = vmatprep.subr.mxu0 0.0
    %3747 = vmatpush1.msra.mxu0 0.0
    %3748 = vmatprep.subr.mxu0 0.0
    %3749 = vmatpush1.msra.mxu0 0.0
    %3750 = vmatprep.subr.mxu0 0.0
    %3751 = vmatpush1.msra.mxu0 0.0
    %3752 = vmatprep.subr.mxu0 0.0
    %3753 = vmatpush1.msra.mxu0 0.0
    %3754 = vmatprep.subr.mxu0 0.0
    %3755 = vmatpush1.msra.mxu0 0.0
    %3756 = vmatprep.subr.mxu0 0.0
    %3757 = vmatpush1.msra.mxu0 0.0
    %3758 = vmatprep.subr.mxu0 0.0
    %3759 = vmatpush1.msra.mxu0 0.0
    %3760 = vmatprep.subr.mxu0 0.0
    %3761 = vmatpush1.msra.mxu0 0.0
    %3762 = vmatprep.subr.mxu0 0.0
    %3763 = vmatpush1.msra.mxu0 0.0
    %3764 = vmatprep.subr.mxu0 0.0
    %3765 = vmatpush1.msra.mxu0 0.0
    %3766 = vmatprep.subr.mxu0 0.0
    %3767 = vmatpush1.msra.mxu0 0.0
    %3768 = vmatprep.subr.mxu0 0.0
    %3769 = vmatpush1.msra.mxu0 0.0
    %3770 = vmatprep.mubr.f32.mxu0 0.0
    %3771 = vmatmul.mubr.f32.gmra.mrb[0].mxu0 %v3701
    %v3772 = vpop.f32.mrb[0].mxu0
    %v3773 = vadd.f32 %v3698, %v3772
    %v3774 = vpop.f32.mrb[0].mxu0
    %3775 = vmatprep.mubr.f32.mxu0 0.0
    %3776 = vmatmul.mubr.f32.gmra.mrb[0].mxu0 %v3704
    %v3777 = vpop.f32.mrb[0].mxu0
    %v3778 = vadd.f32 %v3698, %v3777
    %v3779 = vpop.f32.mrb[0].mxu0
    %3780 = vdwg.mxu0
    %v3781 = vmul.f32 %v3773, 1.442695
    %v3782 = vpow.pop %v3781
    %v3783 = vmul.f32 %v3778, 1.442695
    %v3784 = vpow.pop %v3783
    %3785 = vst.msk [vmem:[#allocation7] sm:$0xff] %vm96, %v3782
    %3786 = vst.msk [vmem:[#allocation7 + $0x8] sm:$0xff] %vm96, %v3784
    // Predicated region
    $region70: #{rvae_forward.1} parent=1 // pred_check
      _
    $region71: #{rvae_forward.1} parent=1 // pred_check_branch
      %3788 = sbr.rel (0) target = $region73
    $region72: #{rvae_forward.1} parent=1 // pred_region
      %s3790 = ssub.s32 256, 256
      %3791 = vsyncadd [#allocation8], %s3790
      %s3792 = sshll.u32 [#allocation7], 4
      %s3793 = int_to_ptr.vmem [resolvable:$true] %s3792
      %3798 = dma.vmem_to_hbm [thread:$0]  %s3793, 256, %s17, [#allocation8], 128, 128, 8
    $region73: #{rvae_forward.1} parent=1 // pred_fallthru
      _
    // Predicated region
    $region74: #{rvae_forward.1} parent=1 // pred_check
      _
    $region75: #{rvae_forward.1} parent=1 // pred_check_branch
      %3800 = sbr.rel (0) target = $region77
    $region76: #{rvae_forward.1} parent=1 // pred_region
      %s3802 = ssub.s32 256, 256
      %3803 = vsyncadd [#allocation10], %s3802
      %s3804 = sshll.u32 [#allocation9], 4
      %s3805 = int_to_ptr.vmem [resolvable:$true] %s3804
      %3810 = dma.vmem_to_hbm [thread:$0]  %s3805, 256, %s18, [#allocation10], 128, 128, 8
    $region77: #{rvae_forward.1} parent=1 // pred_fallthru
      _
    // Predicated region
    $region78: #{rvae_forward.1} parent=1 // pred_check
      _
    $region79: #{rvae_forward.1} parent=1 // pred_check_branch
      %3812 = sbr.rel (0) target = $region81
    $region80: #{rvae_forward.1} parent=1 // pred_region
      _
    $region81: #{rvae_forward.1} parent=1 // pred_fallthru
      _
    // Predicated region
    $region82: #{rvae_forward.1} parent=1 // pred_check
      _
    $region83: #{rvae_forward.1} parent=1 // pred_check_branch
      %3814 = sbr.rel (0) target = $region85
    $region84: #{rvae_forward.1} parent=1 // pred_region
      %3815 = dma.done [#allocation8], 256
    $region85: #{rvae_forward.1} parent=1 // pred_fallthru
      _
    // Predicated region
    $region86: #{rvae_forward.1} parent=1 // pred_check
      _
    $region87: #{rvae_forward.1} parent=1 // pred_check_branch
      %3817 = sbr.rel (0) target = $region89
    $region88: #{rvae_forward.1} parent=1 // pred_region
      %3818 = dma.done [#allocation10], 256
    $region89: #{rvae_forward.1} parent=1 // pred_fallthru
      _
    // Predicated region
    $region90: #{rvae_forward.1} parent=1 // pred_check
      _
    $region91: #{rvae_forward.1} parent=1 // pred_check_branch
      %3820 = sbr.rel (0) target = $region93
    $region92: #{rvae_forward.1} parent=1 // pred_region
      _
    $region93: #{rvae_forward.1} parent=1 // pred_fallthru
      _
    %3821 = vsyncpa [#allocation8], 1
    %3822 = vsyncpa [#allocation10], 1

</llo_original>
